<compile_context>
chip_gen: v7x
topology: tpu7x:2x2x1
jax: 0.10.0
libtpu: 0.0.40
codegen_flags: <defaults>
</compile_context>

<pallas_src>
import math
import functools

import jax
import jax.numpy as jnp
from jax import lax
from jax.experimental import pallas as pl
from jax.experimental.pallas import tpu as pltpu

EPS = 1e-5  # torch.nn.LayerNorm default


def _vmem_limit_bytes():
    """Generation-aware VMEM scoped limit (v7x has 64 MiB, v5e/v6e have 128 MiB)."""
    try:
        cap = int(pltpu.get_tpu_info().vmem_capacity_bytes)
    except Exception:
        cap = 64 * 1024 * 1024
    return int(min(cap * 5 // 8, 100 * 1024 * 1024))


def _row_tiles(nrows, target=512):
    """Pick a row tile (multiple of 16) and the padded row count it divides."""
    target = max(16, (target // 16) * 16)
    if nrows <= target:
        t = ((nrows + 15) // 16) * 16
        return t, t
    for t in range(target, 15, -16):          # prefer an exact divisor (zero padding)
        if nrows % t == 0:
            return t, nrows
    pad_to = ((nrows + target - 1) // target) * target
    return target, pad_to


def _pad_rows(a, pad_to):
    n = a.shape[0]
    if pad_to == n:
        return a
    return jnp.pad(a, ((0, pad_to - n), (0, 0)))


# ----------------------------- Pallas kernels -----------------------------

def _qkv_proj_kernel(x_ref, w_ref, b_ref, o_ref):
    # x_ref: (R, E) f32 row tile (both streams flattened into the row axis)
    # w_ref: (E, 3E) bf16 packed [Wq | Wk | Wv], resident across the grid
    # b_ref: (1, 3E) f32 packed bias
    # o_ref: (3, R, E) bf16 -> q / k / v planes (bf16 inter-kernel slab)
    E = x_ref.shape[1]
    y = jnp.dot(x_ref[...].astype(jnp.bfloat16), w_ref[...],
                preferred_element_type=jnp.float32) + b_ref[...]
    y = y.astype(jnp.bfloat16)
    o_ref[0] = y[:, :E]
    o_ref[1] = y[:, E:2 * E]
    o_ref[2] = y[:, 2 * E:]


def _attn_mix_kernel(q_ref, k_ref, v_ref, m_ref, res_ref, wo_ref, bo_ref,
                     g_ref, be_ref, o_ref, *, num_heads, scale, dp):
    # Fused per (batch, q_stream): attention over BOTH kv streams, 0.5/0.5*dp mix,
    # out-projection, +residual, LayerNorm.  All stores are full-width (T, E).
    #   q_ref:   (T, E)    bf16   query stream qs
    #   k_ref:   (2, T, E) bf16   keys of both kv streams
    #   v_ref:   (2, T, E) bf16   values of both kv streams
    #   m_ref:   (2, 1, T) int32  key-pad masks of both kv streams
    #   res_ref: (T, E)    f32    residual (original activation of stream qs)
    #   wo_ref:  (E, E)    bf16   out-projection weight
    #   bo/g/be: (1, E)    f32    out-proj bias, LN gamma, LN beta
    #   o_ref:   (T, E)    f32    post-LN output
    qs = pl.program_id(1)
    T, E = q_ref.shape
    hd = E // num_heads
    q = q_ref[...]                                   # (T, E) bf16

    attn = []
    for ks in range(2):
        k_all = k_ref[ks]                            # (T, E) bf16
        v_all = v_ref[ks]
        bias = jnp.where(m_ref[ks] > 0, -1e9, 0.0).astype(jnp.float32)  # (1, T)
        heads = []
        for h in range(num_heads):
            sl = slice(h * hd, (h + 1) * hd)
            qh, kh, vh = q[:, sl], k_all[:, sl], v_all[:, sl]
            # q @ k^T via dot_general contracting last dims (no explicit transpose)
            s = lax.dot_general(qh, kh, (((1,), (1,)), ((), ())),
                                preferred_element_type=jnp.float32) * scale
            s = s + bias                              # broadcast over query rows
            s = s - jnp.max(s, axis=-1, keepdims=True)
            p = jnp.exp(s)
            p = p * pl.reciprocal(jnp.sum(p, axis=-1, keepdims=True), approx=True)
            heads.append(jnp.dot(p.astype(jnp.bfloat16), vh,
                                 preferred_element_type=jnp.float32))
        attn.append(jnp.concatenate(heads, axis=-1))  # (T, E) f32, one per kv stream

    # stream-dependent mixing coefficients (x: 0.5 / 0.5*dp ; x_sen_piece: 0.5*dp / 0.5)
    c0 = jnp.where(qs == 0, jnp.float32(0.5), jnp.float32(0.5 * dp))
    c1 = jnp.where(qs == 0, jnp.float32(0.5 * dp), jnp.float32(0.5))
    mix = c0 * attn[0] + c1 * attn[1]

    y = jnp.dot(mix.astype(jnp.bfloat16), wo_ref[...],
                preferred_element_type=jnp.float32)
    y = y + (0.5 * (1.0 + dp)) * bo_ref[...]          # bias coefficient from the mix
    y = y + res_ref[...]
    mu = jnp.mean(y, axis=-1, keepdims=True)
    var = jnp.mean(jnp.square(y - mu), axis=-1, keepdims=True)
    o_ref[...] = (y - mu) * lax.rsqrt(var + EPS) * g_ref[...] + be_ref[...]


def _ffn_kernel(x_ref, w1_ref, b1_ref, w2_ref, b2_ref, g_ref, be_ref, o_ref):
    # fused: fc2(relu(fc1(x))) + x -> LayerNorm   (post-norm FFN block, eval mode)
    x = x_ref[...]
    h = jnp.dot(x.astype(jnp.bfloat16), w1_ref[...],
                preferred_element_type=jnp.float32) + b1_ref[...]
    h = jnp.maximum(h, 0.0)
    y = jnp.dot(h.astype(jnp.bfloat16), w2_ref[...],
                preferred_element_type=jnp.float32) + b2_ref[...]
    y = y + x
    mu = jnp.mean(y, axis=-1, keepdims=True)
    var = jnp.mean(jnp.square(y - mu), axis=-1, keepdims=True)
    o_ref[...] = (y - mu) * lax.rsqrt(var + EPS) * g_ref[...] + be_ref[...]


# ----------------------------- forward pass --------------------------------

def encoder_layer_forward(params, x, pad_mask, x_sp, pad_mask_sp, num_heads,
                          enc_drop_path_ratio=0.0):
    # all_share=True, normalize_before=False, eval mode.
    T, B, E = x.shape
    F_dim = params['w_fc1'].shape[1]
    assert E % num_heads == 0
    hd = E // num_heads
    scale = float(hd) ** -0.5
    dp = 1.0 - enc_drop_path_ratio if enc_drop_path_ratio != 0.0 else 1.0
    vmem_limit = _vmem_limit_bytes()

    # bf16 MXU operands (f32 accumulation / bias / LN / softmax math stays f32)
    w_qkv = params['w_qkv']                                        # (3, E, E) in->out
    w_qkv_packed = jnp.concatenate([w_qkv[0], w_qkv[1], w_qkv[2]],
                                   axis=1).astype(jnp.bfloat16)    # (E, 3E)
    b_qkv_packed = params['b_qkv'].reshape(1, 3 * E)               # f32 (1, 3E)
    w_o = params['w_o'].astype(jnp.bfloat16)                       # (E, E)
    w_fc1 = params['w_fc1'].astype(jnp.bfloat16)                   # (E, F)
    w_fc2 = params['w_fc2'].astype(jnp.bfloat16)                   # (F, E)

    # single (T,B,E)->(B,T,E) relayout per stream (see TODO at top)
    x_bt = jnp.stack([x, x_sp]).transpose(0, 2, 1, 3)              # (2, B, T, E) f32

    # ---- fused QKV projection, both streams, one launch, bf16 output ----
    N = 2 * B * T
    Rp, Np = _row_tiles(N, target=512)
    x2d = _pad_rows(x_bt.reshape(N, E), Np)
    qkv = pl.pallas_call(
        _qkv_proj_kernel,
        out_shape=jax.ShapeDtypeStruct((3, Np, E), jnp.bfloat16),
        grid=(Np // Rp,),
        in_specs=[
            pl.BlockSpec((Rp, E), lambda r: (r, 0)),
            pl.BlockSpec((E, 3 * E), lambda r: (0, 0)),
            pl.BlockSpec((1, 3 * E), lambda r: (0, 0)),
        ],
        out_specs=pl.BlockSpec((3, Rp, E), lambda r: (0, r, 0)),
        compiler_params=pltpu.CompilerParams(
            dimension_semantics=("parallel",), vmem_limit_bytes=vmem_limit),
    )(x2d, w_qkv_packed, b_qkv_packed)
    if Np != N:
        qkv = qkv[:, :N]
    qkv5 = qkv.reshape(3, 2, B, T, E)                              # (3, 2, B, T, E) bf16

    pad_all = jnp.stack([pad_mask, pad_mask_sp]).astype(jnp.int32).reshape(2, B, 1, T)

    # ---- fused attention (both kv streams) + mix + out-proj + residual + LN ----
    # grid (B, q_stream); K/V/mask blocks depend only on b -> fetched once per batch.
    attn_out = pl.pallas_call(
        functools.partial(_attn_mix_kernel, num_heads=num_heads, scale=scale, dp=dp),
        out_shape=jax.ShapeDtypeStruct((2, B, T, E), jnp.float32),
        grid=(B, 2),
        in_specs=[
            pl.BlockSpec((None, None, None, T, E), lambda b, qs: (0, qs, b, 0, 0)),  # q
            pl.BlockSpec((None, 2, None, T, E), lambda b, qs: (1, 0, b, 0, 0)),      # k
            pl.BlockSpec((None, 2, None, T, E), lambda b, qs: (2, 0, b, 0, 0)),      # v
            pl.BlockSpec((2, None, 1, T), lambda b, qs: (0, b, 0, 0)),               # masks
            pl.BlockSpec((None, None, T, E), lambda b, qs: (qs, b, 0, 0)),           # residual
            pl.BlockSpec((E, E), lambda b, qs: (0, 0)),                              # W_o
            pl.BlockSpec((1, E), lambda b, qs: (0, 0)),                              # b_o
            pl.BlockSpec((1, E), lambda b, qs: (0, 0)),                              # ln gamma
            pl.BlockSpec((1, E), lambda b, qs: (0, 0)),                              # ln beta
        ],
        out_specs=pl.BlockSpec((None, None, T, E), lambda b, qs: (qs, b, 0, 0)),
        compiler_params=pltpu.CompilerParams(
            dimension_semantics=("parallel", "arbitrary"),
            vmem_limit_bytes=vmem_limit),
    )(qkv5, qkv5, qkv5, pad_all, x_bt, w_o,
      params['b_o'].reshape(1, E),
      params['ln_attn_g'].reshape(1, E), params['ln_attn_b'].reshape(1, E))

    # ---- fused FFN + residual + LayerNorm, both streams' rows in one grid ----
    rows = 2 * B * T
    # cap row tile so the (R, F) f32 hidden stays modest in VMEM (v7x headroom)
    ffn_target = min(512, max(16, ((2 * 1024 * 1024) // max(1, 4 * F_dim)) // 16 * 16))
    Rf, rows_p = _row_tiles(rows, target=ffn_target)
    y1_2d = _pad_rows(attn_out.reshape(rows, E), rows_p)
    y2 = pl.pallas_call(
        _ffn_kernel,
        out_shape=jax.ShapeDtypeStruct((rows_p, E), jnp.float32),
        grid=(rows_p // Rf,),
        in_specs=[
            pl.BlockSpec((Rf, E), lambda r: (r, 0)),
            pl.BlockSpec((E, F_dim), lambda r: (0, 0)),
            pl.BlockSpec((1, F_dim), lambda r: (0, 0)),
            pl.BlockSpec((F_dim, E), lambda r: (0, 0)),
            pl.BlockSpec((1, E), lambda r: (0, 0)),
            pl.BlockSpec((1, E), lambda r: (0, 0)),
            pl.BlockSpec((1, E), lambda r: (0, 0)),
        ],
        out_specs=pl.BlockSpec((Rf, E), lambda r: (r, 0)),
        compiler_params=pltpu.CompilerParams(
            dimension_semantics=("parallel",), vmem_limit_bytes=vmem_limit),
    )(y1_2d, w_fc1, params['b_fc1'].reshape(1, F_dim),
      w_fc2, params['b_fc2'].reshape(1, E),
      params['ln_ffn_g'].reshape(1, E), params['ln_ffn_b'].reshape(1, E))
    if rows_p != rows:
        y2 = y2[:rows]

    out = y2.reshape(2, B, T, E).transpose(0, 2, 1, 3)             # back to (2, T, B, E)
    return out[0], out[1]


# ----------------------------- reference (pure JAX, f32) --------------------

def reference_forward(params, x, pad_mask, x_sp, pad_mask_sp, num_heads, dp=1.0):
    E = x.shape[-1]
    hd = E // num_heads
    scale = hd ** -0.5
    wq, wk, wv = params['w_qkv'][0], params['w_qkv'][1], params['w_qkv'][2]
    bq, bk, bv = params['b_qkv'][0], params['b_qkv'][1], params['b_qkv'][2]

    def ln(y, g, b):
        mu = y.mean(-1, keepdims=True)
        var = ((y - mu) ** 2).mean(-1, keepdims=True)
        return (y - mu) / jnp.sqrt(var + EPS) * g + b

    def mha(q_in, kv_in, mask):
        T, B, _ = q_in.shape
        S = kv_in.shape[0]
        q = (q_in @ wq + bq) * scale
        k = kv_in @ wk + bk
        v = kv_in @ wv + bv
        q = q.reshape(T, B, num_heads, hd).transpose(1, 2, 0, 3)
        k = k.reshape(S, B, num_heads, hd).transpose(1, 2, 0, 3)
        v = v.reshape(S, B, num_heads, hd).transpose(1, 2, 0, 3)
        s = jnp.einsum('bhqd,bhkd->bhqk', q, k)
        s = s + jnp.where(mask[:, None, None, :] > 0, -1e9, 0.0)
        p = jax.nn.softmax(s, axis=-1)
        o = jnp.einsum('bhqk,bhkd->bhqd', p, v)
        o = o.transpose(2, 0, 1, 3).reshape(T, B, E)
        return o @ params['w_o'] + params['b_o']

    x1 = mha(x, x, pad_mask)
    x1_sp = mha(x, x_sp, pad_mask_sp)
    x2 = mha(x_sp, x, pad_mask)
    x2_sp = mha(x_sp, x_sp, pad_mask_sp)
    a = ln(x + 0.5 * x1 + 0.5 * dp * x1_sp, params['ln_attn_g'], params['ln_attn_b'])
    a_sp = ln(x_sp + 0.5 * dp * x2 + 0.5 * x2_sp,
              params['ln_attn_g'], params['ln_attn_b'])

    def ffn(y):
        h = jnp.maximum(y @ params['w_fc1'] + params['b_fc1'], 0.0)
        return ln(y + h @ params['w_fc2'] + params['b_fc2'],
                  params['ln_ffn_g'], params['ln_ffn_b'])

    return ffn(a), ffn(a_sp)


# ----------------------------- parameter init ------------------------------

def xavier_uniform(key, shape):
    fan_out, fan_in = shape          # torch Linear weight layout (out, in)
    a = math.sqrt(6.0 / (fan_in + fan_out))
    return jax.random.uniform(key, shape, jnp.float32, -a, a)


def init_params(key, embed_dim, ffn_dim):
    E, F = embed_dim, ffn_dim
    ks = jax.random.split(key, 4)
    in_proj_w = xavier_uniform(ks[0], (3 * E, E))    # fairseq in_proj_weight (out, in)
    out_proj_w = xavier_uniform(ks[1], (E, E))
    fc1_w = xavier_uniform(ks[2], (F, E))
    fc2_w = xavier_uniform(ks[3], (E, F))
    return {
        # packed q/k/v weights stored as (3, E_in, E_out) so kernels do x @ w[i]
        'w_qkv': in_proj_w.reshape(3, E, E).transpose(0, 2, 1),
        'b_qkv': jnp.zeros((3, E), jnp.float32),
        'w_o': out_proj_w.T, 'b_o': jnp.zeros((E,), jnp.float32),
        'w_fc1': fc1_w.T, 'b_fc1': jnp.zeros((F,), jnp.float32),
        'w_fc2': fc2_w.T, 'b_fc2': jnp.zeros((E,), jnp.float32),
        'ln_attn_g': jnp.ones((E,), jnp.float32), 'ln_attn_b': jnp.zeros((E,), jnp.float32),
        'ln_ffn_g': jnp.ones((E,), jnp.float32), 'ln_ffn_b': jnp.zeros((E,), jnp.float32),
    }


# ----------------------------- main ----------------------------------------

if __name__ == "__main__":
    T, B, E, H, F_DIM = 8, 2, 32, 4, 64

    root = jax.random.PRNGKey(0)
    k_param, k_x, k_xsp = jax.random.split(root, 3)

    params = init_params(k_param, E, F_DIM)

    x = jax.random.normal(k_x, (T, B, E), jnp.float32)            # (seq, batch, embed)
    x_sp = jax.random.normal(k_xsp, (T, B, E), jnp.float32)

    # (batch, src_len) padding masks, 1 = padded position
    pad_mask = jnp.zeros((B, T), jnp.int32).at[1, -1].set(1)
    pad_mask_sp = jnp.zeros((B, T), jnp.int32).at[0, -2:].set(1)

    fwd = jax.jit(lambda p, a, m, b, msp: encoder_layer_forward(p, a, m, b, msp, H))
    out_x, out_x_sp = fwd(params, x, pad_mask, x_sp, pad_mask_sp)
    jax.block_until_ready((out_x, out_x_sp))

    assert out_x.shape == (T, B, E) and out_x_sp.shape == (T, B, E)
    assert bool(jnp.all(jnp.isfinite(out_x))) and bool(jnp.all(jnp.isfinite(out_x_sp)))

    # loose sanity check vs f32 pure-JAX reference (kernel matmuls run in bf16)
    ref_x, ref_x_sp = reference_forward(params, x, pad_mask, x_sp, pad_mask_sp, H)
    err = max(float(jnp.max(jnp.abs(out_x - ref_x))),
              float(jnp.max(jnp.abs(out_x_sp - ref_x_sp))))
    assert err < 1e-1, f"max abs error vs reference too large: {err}"

    print("KERNEL_OK")
</pallas_src>

<mosaic_0001>
module attributes {stable_mosaic.version = 11 : i64} {
  func.func @_qkv_proj_kernel(%arg0: i32, %arg1: memref<32x32xf32, #tpu.memory_space<vmem>>, %arg2: memref<32x96xbf16, #tpu.memory_space<vmem>>, %arg3: memref<1x96xf32, #tpu.memory_space<vmem>>, %arg4: memref<3x32x32xbf16, #tpu.memory_space<vmem>>) attributes {dimension_semantics = [#tpu.dimension_semantics<parallel>], iteration_bounds = array<i64: 1>, scalar_prefetch = 0 : i64, scratch_operands = 0 : i64, tpu.core_type = #tpu.core_type<tc>, window_params = [{transform_indices = @transform_0, window_bounds = array<i64: 32, 32>}, {pipeline_mode = #tpu.pipeline_mode<synchronous>, transform_indices = @transform_1, window_bounds = array<i64: 32, 96>}, {pipeline_mode = #tpu.pipeline_mode<synchronous>, transform_indices = @transform_2, window_bounds = array<i64: 1, 96>}, {transform_indices = @transform_3, window_bounds = array<i64: 3, 32, 32>}]} {
    %c0 = arith.constant 0 : index
    %c0_0 = arith.constant 0 : index
    %0 = vector.load %arg1[%c0, %c0_0] : memref<32x32xf32, #tpu.memory_space<vmem>>, vector<32x32xf32>
    %1 = arith.truncf %0 : vector<32x32xf32> to vector<32x32xbf16>
    %c0_1 = arith.constant 0 : index
    %c0_2 = arith.constant 0 : index
    %2 = vector.load %arg2[%c0_1, %c0_2] : memref<32x96xbf16, #tpu.memory_space<vmem>>, vector<32x96xbf16>
    %cst = arith.constant dense<0.000000e+00> : vector<32x96xf32>
    %3 = tpu.matmul %1, %2, %cst {dimension_numbers = #tpu.dot_dimension_numbers<[1], [0], [0], [1], [0, 0, 1, 1], [], []>} : vector<32x32xbf16>, vector<32x96xbf16>, vector<32x96xf32> -> vector<32x96xf32>
    %c0_3 = arith.constant 0 : index
    %c0_4 = arith.constant 0 : index
    %4 = vector.load %arg3[%c0_3, %c0_4] : memref<1x96xf32, #tpu.memory_space<vmem>>, vector<1x96xf32>
    %5 = vector.broadcast %4 : vector<1x96xf32> to vector<32x96xf32>
    %6 = arith.addf %3, %5 : vector<32x96xf32>
    %7 = arith.truncf %6 : vector<32x96xf32> to vector<32x96xbf16>
    %8 = vector.extract_strided_slice %7 {offsets = [0, 0], sizes = [32, 32], strides = [1, 1]} : vector<32x96xbf16> to vector<32x32xbf16>
    %c0_5 = arith.constant 0 : index
    %c0_6 = arith.constant 0 : index
    %c0_7 = arith.constant 0 : index
    %9 = vector.load %arg4[%c0_5, %c0_6, %c0_7] : memref<3x32x32xbf16, #tpu.memory_space<vmem>>, vector<1x32x32xbf16>
    %10 = vector.shape_cast %9 : vector<1x32x32xbf16> to vector<32x32xbf16>
    %11 = vector.shape_cast %8 : vector<32x32xbf16> to vector<1x32x32xbf16>
    tpu.vector_store %arg4[%c0_5, %c0_6, %c0_7], %11 {strides = array<i32>} : memref<3x32x32xbf16, #tpu.memory_space<vmem>>, vector<1x32x32xbf16>,
    %12 = vector.extract_strided_slice %7 {offsets = [0, 32], sizes = [32, 32], strides = [1, 1]} : vector<32x96xbf16> to vector<32x32xbf16>
    %c1 = arith.constant 1 : index
    %c0_8 = arith.constant 0 : index
    %c0_9 = arith.constant 0 : index
    %13 = vector.load %arg4[%c1, %c0_8, %c0_9] : memref<3x32x32xbf16, #tpu.memory_space<vmem>>, vector<1x32x32xbf16>
    %14 = vector.shape_cast %13 : vector<1x32x32xbf16> to vector<32x32xbf16>
    %15 = vector.shape_cast %12 : vector<32x32xbf16> to vector<1x32x32xbf16>
    tpu.vector_store %arg4[%c1, %c0_8, %c0_9], %15 {strides = array<i32>} : memref<3x32x32xbf16, #tpu.memory_space<vmem>>, vector<1x32x32xbf16>,
    %16 = vector.extract_strided_slice %7 {offsets = [0, 64], sizes = [32, 32], strides = [1, 1]} : vector<32x96xbf16> to vector<32x32xbf16>
    %c2 = arith.constant 2 : index
    %c0_10 = arith.constant 0 : index
    %c0_11 = arith.constant 0 : index
    %17 = vector.load %arg4[%c2, %c0_10, %c0_11] : memref<3x32x32xbf16, #tpu.memory_space<vmem>>, vector<1x32x32xbf16>
    %18 = vector.shape_cast %17 : vector<1x32x32xbf16> to vector<32x32xbf16>
    %19 = vector.shape_cast %16 : vector<32x32xbf16> to vector<1x32x32xbf16>
    tpu.vector_store %arg4[%c2, %c0_10, %c0_11], %19 {strides = array<i32>} : memref<3x32x32xbf16, #tpu.memory_space<vmem>>, vector<1x32x32xbf16>,
    return
  }
  func.func @transform_0(%arg0: i32) -> (i32, i32) {
    %c0_i32 = arith.constant 0 : i32
    %c0_i32_0 = arith.constant 0 : i32
    return %arg0, %c0_i32 : i32, i32
  }
  func.func @transform_1(%arg0: i32) -> (i32, i32) {
    %c0_i32 = arith.constant 0 : i32
    %c0_i32_0 = arith.constant 0 : i32
    %c0_i32_1 = arith.constant 0 : i32
    return %c0_i32, %c0_i32_0 : i32, i32
  }
  func.func @transform_2(%arg0: i32) -> (i32, i32) {
    %c0_i32 = arith.constant 0 : i32
    %c0_i32_0 = arith.constant 0 : i32
    %c0_i32_1 = arith.constant 0 : i32
    return %c0_i32, %c0_i32_0 : i32, i32
  }
  func.func @transform_3(%arg0: i32) -> (i32, i32, i32) {
    %c0_i32 = arith.constant 0 : i32
    %c0_i32_0 = arith.constant 0 : i32
    %c0_i32_1 = arith.constant 0 : i32
    return %c0_i32, %arg0, %c0_i32_0 : i32, i32, i32
  }
}

module attributes {stable_mosaic.version = 11 : i64} {
  func.func @_attn_mix_kernel(%arg0: i32, %arg1: i32, %arg2: memref<1x1x1x8x32xbf16, #tpu.memory_space<vmem>>, %arg3: memref<1x2x1x8x32xbf16, #tpu.memory_space<vmem>>, %arg4: memref<1x2x1x8x32xbf16, #tpu.memory_space<vmem>>, %arg5: memref<2x1x1x8xi32, #tpu.memory_space<vmem>>, %arg6: memref<1x1x8x32xf32, #tpu.memory_space<vmem>>, %arg7: memref<32x32xbf16, #tpu.memory_space<vmem>>, %arg8: memref<1x32xf32, #tpu.memory_space<vmem>>, %arg9: memref<1x32xf32, #tpu.memory_space<vmem>>, %arg10: memref<1x32xf32, #tpu.memory_space<vmem>>, %arg11: memref<1x1x8x32xf32, #tpu.memory_space<vmem>>) attributes {dimension_semantics = [#tpu.dimension_semantics<parallel>, #tpu.dimension_semantics<arbitrary>], iteration_bounds = array<i64: 2, 2>, scalar_prefetch = 0 : i64, scratch_operands = 0 : i64, tpu.core_type = #tpu.core_type<tc>, window_params = [{transform_indices = @transform_0, window_bounds = array<i64: 1, 1, 1, 8, 32>}, {transform_indices = @transform_1, window_bounds = array<i64: 1, 2, 1, 8, 32>}, {transform_indices = @transform_2, window_bounds = array<i64: 1, 2, 1, 8, 32>}, {transform_indices = @transform_3, window_bounds = array<i64: 2, 1, 1, 8>}, {transform_indices = @transform_4, window_bounds = array<i64: 1, 1, 8, 32>}, {pipeline_mode = #tpu.pipeline_mode<synchronous>, transform_indices = @transform_5, window_bounds = array<i64: 32, 32>}, {pipeline_mode = #tpu.pipeline_mode<synchronous>, transform_indices = @transform_6, window_bounds = array<i64: 1, 32>}, {pipeline_mode = #tpu.pipeline_mode<synchronous>, transform_indices = @transform_7, window_bounds = array<i64: 1, 32>}, {pipeline_mode = #tpu.pipeline_mode<synchronous>, transform_indices = @transform_8, window_bounds = array<i64: 1, 32>}, {transform_indices = @transform_9, window_bounds = array<i64: 1, 1, 8, 32>}]} {
    %c0 = arith.constant 0 : index
    %c0_0 = arith.constant 0 : index
    %c0_1 = arith.constant 0 : index
    %c0_2 = arith.constant 0 : index
    %c0_3 = arith.constant 0 : index
    %0 = vector.load %arg2[%c0, %c0_0, %c0_1, %c0_2, %c0_3] : memref<1x1x1x8x32xbf16, #tpu.memory_space<vmem>>, vector<1x1x1x8x32xbf16>
    %1 = vector.shape_cast %0 : vector<1x1x1x8x32xbf16> to vector<8x32xbf16>
    %c0_4 = arith.constant 0 : index
    %c0_5 = arith.constant 0 : index
    %c0_6 = arith.constant 0 : index
    %c0_7 = arith.constant 0 : index
    %c0_8 = arith.constant 0 : index
    %2 = vector.load %arg3[%c0_4, %c0_5, %c0_6, %c0_7, %c0_8] : memref<1x2x1x8x32xbf16, #tpu.memory_space<vmem>>, vector<1x1x1x8x32xbf16>
    %3 = vector.shape_cast %2 : vector<1x1x1x8x32xbf16> to vector<8x32xbf16>
    %c0_9 = arith.constant 0 : index
    %c0_10 = arith.constant 0 : index
    %c0_11 = arith.constant 0 : index
    %c0_12 = arith.constant 0 : index
    %c0_13 = arith.constant 0 : index
    %4 = vector.load %arg4[%c0_9, %c0_10, %c0_11, %c0_12, %c0_13] : memref<1x2x1x8x32xbf16, #tpu.memory_space<vmem>>, vector<1x1x1x8x32xbf16>
    %5 = vector.shape_cast %4 : vector<1x1x1x8x32xbf16> to vector<8x32xbf16>
    %c0_14 = arith.constant 0 : index
    %c0_15 = arith.constant 0 : index
    %c0_16 = arith.constant 0 : index
    %c0_17 = arith.constant 0 : index
    %6 = vector.load %arg5[%c0_14, %c0_15, %c0_16, %c0_17] : memref<2x1x1x8xi32, #tpu.memory_space<vmem>>, vector<1x1x1x8xi32>
    %7 = vector.shape_cast %6 : vector<1x1x1x8xi32> to vector<1x8xi32>
    %c0_i32 = arith.constant 0 : i32
    %8 = vector.broadcast %c0_i32 : i32 to vector<1x8xi32>
    %9 = arith.cmpi sgt, %7, %8 : vector<1x8xi32>
    %cst = arith.constant -1.000000e+09 : f32
    %cst_18 = arith.constant 0.000000e+00 : f32
    %10 = vector.broadcast %cst : f32 to vector<1x8xf32>
    %11 = vector.broadcast %cst_18 : f32 to vector<1x8xf32>
    %12 = arith.select %9, %10, %11 : vector<1x8xi1>, vector<1x8xf32>
    %13 = vector.extract_strided_slice %1 {offsets = [0, 0], sizes = [8, 8], strides = [1, 1]} : vector<8x32xbf16> to vector<8x8xbf16>
    %14 = vector.extract_strided_slice %3 {offsets = [0, 0], sizes = [8, 8], strides = [1, 1]} : vector<8x32xbf16> to vector<8x8xbf16>
    %15 = vector.extract_strided_slice %5 {offsets = [0, 0], sizes = [8, 8], strides = [1, 1]} : vector<8x32xbf16> to vector<8x8xbf16>
    %cst_19 = arith.constant dense<0.000000e+00> : vector<8x8xf32>
    %16 = tpu.matmul %13, %14, %cst_19 {dimension_numbers = #tpu.dot_dimension_numbers<[1], [1], [0], [0], [0, 0, 1, 0], [], []>} : vector<8x8xbf16>, vector<8x8xbf16>, vector<8x8xf32> -> vector<8x8xf32>
    %cst_20 = arith.constant 0.353553385 : f32
    %17 = vector.broadcast %cst_20 : f32 to vector<8x8xf32>
    %18 = arith.mulf %16, %17 : vector<8x8xf32>
    %19 = vector.broadcast %12 : vector<1x8xf32> to vector<8x8xf32>
    %20 = arith.addf %18, %19 : vector<8x8xf32>
    %cst_21 = arith.constant dense<0xFF800000> : vector<8xf32>
    %21 = vector.multi_reduction <maximumf>, %20, %cst_21 [1] : vector<8x8xf32> to vector<8xf32>
    %22 = vector.shape_cast %21 : vector<8xf32> to vector<8x1xf32>
    %23 = vector.broadcast %22 : vector<8x1xf32> to vector<8x8xf32>
    %24 = arith.subf %20, %23 : vector<8x8xf32>
    %25 = math.exp %24 : vector<8x8xf32>
    %cst_22 = arith.constant dense<0.000000e+00> : vector<8xf32>
    %26 = vector.multi_reduction <add>, %25, %cst_22 [1] : vector<8x8xf32> to vector<8xf32>
    %27 = vector.shape_cast %26 : vector<8xf32> to vector<8x1xf32>
    %28 = tpu.reciprocal %27 {approx = true} : vector<8x1xf32> -> vector<8x1xf32>
    %29 = vector.broadcast %28 : vector<8x1xf32> to vector<8x8xf32>
    %30 = arith.mulf %25, %29 : vector<8x8xf32>
    %31 = arith.truncf %30 : vector<8x8xf32> to vector<8x8xbf16>
    %cst_23 = arith.constant dense<0.000000e+00> : vector<8x8xf32>
    %32 = tpu.matmul %31, %15, %cst_23 {dimension_numbers = #tpu.dot_dimension_numbers<[1], [0], [0], [1], [0, 0, 1, 1], [], []>} : vector<8x8xbf16>, vector<8x8xbf16>, vector<8x8xf32> -> vector<8x8xf32>
    %33 = vector.extract_strided_slice %1 {offsets = [0, 8], sizes = [8, 8], strides = [1, 1]} : vector<8x32xbf16> to vector<8x8xbf16>
    %34 = vector.extract_strided_slice %3 {offsets = [0, 8], sizes = [8, 8], strides = [1, 1]} : vector<8x32xbf16> to vector<8x8xbf16>
    %35 = vector.extract_strided_slice %5 {offsets = [0, 8], sizes = [8, 8], strides = [1, 1]} : vector<8x32xbf16> to vector<8x8xbf16>
    %cst_24 = arith.constant dense<0.000000e+00> : vector<8x8xf32>
    %36 = tpu.matmul %33, %34, %cst_24 {dimension_numbers = #tpu.dot_dimension_numbers<[1], [1], [0], [0], [0, 0, 1, 0], [], []>} : vector<8x8xbf16>, vector<8x8xbf16>, vector<8x8xf32> -> vector<8x8xf32>
    %cst_25 = arith.constant 0.353553385 : f32
    %37 = vector.broadcast %cst_25 : f32 to vector<8x8xf32>
    %38 = arith.mulf %36, %37 : vector<8x8xf32>
    %39 = vector.broadcast %12 : vector<1x8xf32> to vector<8x8xf32>
    %40 = arith.addf %38, %39 : vector<8x8xf32>
    %cst_26 = arith.constant dense<0xFF800000> : vector<8xf32>
    %41 = vector.multi_reduction <maximumf>, %40, %cst_26 [1] : vector<8x8xf32> to vector<8xf32>
    %42 = vector.shape_cast %41 : vector<8xf32> to vector<8x1xf32>
    %43 = vector.broadcast %42 : vector<8x1xf32> to vector<8x8xf32>
    %44 = arith.subf %40, %43 : vector<8x8xf32>
    %45 = math.exp %44 : vector<8x8xf32>
    %cst_27 = arith.constant dense<0.000000e+00> : vector<8xf32>
    %46 = vector.multi_reduction <add>, %45, %cst_27 [1] : vector<8x8xf32> to vector<8xf32>
    %47 = vector.shape_cast %46 : vector<8xf32> to vector<8x1xf32>
    %48 = tpu.reciprocal %47 {approx = true} : vector<8x1xf32> -> vector<8x1xf32>
    %49 = vector.broadcast %48 : vector<8x1xf32> to vector<8x8xf32>
    %50 = arith.mulf %45, %49 : vector<8x8xf32>
    %51 = arith.truncf %50 : vector<8x8xf32> to vector<8x8xbf16>
    %cst_28 = arith.constant dense<0.000000e+00> : vector<8x8xf32>
    %52 = tpu.matmul %51, %35, %cst_28 {dimension_numbers = #tpu.dot_dimension_numbers<[1], [0], [0], [1], [0, 0, 1, 1], [], []>} : vector<8x8xbf16>, vector<8x8xbf16>, vector<8x8xf32> -> vector<8x8xf32>
    %53 = vector.extract_strided_slice %1 {offsets = [0, 16], sizes = [8, 8], strides = [1, 1]} : vector<8x32xbf16> to vector<8x8xbf16>
    %54 = vector.extract_strided_slice %3 {offsets = [0, 16], sizes = [8, 8], strides = [1, 1]} : vector<8x32xbf16> to vector<8x8xbf16>
    %55 = vector.extract_strided_slice %5 {offsets = [0, 16], sizes = [8, 8], strides = [1, 1]} : vector<8x32xbf16> to vector<8x8xbf16>
    %cst_29 = arith.constant dense<0.000000e+00> : vector<8x8xf32>
    %56 = tpu.matmul %53, %54, %cst_29 {dimension_numbers = #tpu.dot_dimension_numbers<[1], [1], [0], [0], [0, 0, 1, 0], [], []>} : vector<8x8xbf16>, vector<8x8xbf16>, vector<8x8xf32> -> vector<8x8xf32>
    %cst_30 = arith.constant 0.353553385 : f32
    %57 = vector.broadcast %cst_30 : f32 to vector<8x8xf32>
    %58 = arith.mulf %56, %57 : vector<8x8xf32>
    %59 = vector.broadcast %12 : vector<1x8xf32> to vector<8x8xf32>
    %60 = arith.addf %58, %59 : vector<8x8xf32>
    %cst_31 = arith.constant dense<0xFF800000> : vector<8xf32>
    %61 = vector.multi_reduction <maximumf>, %60, %cst_31 [1] : vector<8x8xf32> to vector<8xf32>
    %62 = vector.shape_cast %61 : vector<8xf32> to vector<8x1xf32>
    %63 = vector.broadcast %62 : vector<8x1xf32> to vector<8x8xf32>
    %64 = arith.subf %60, %63 : vector<8x8xf32>
    %65 = math.exp %64 : vector<8x8xf32>
    %cst_32 = arith.constant dense<0.000000e+00> : vector<8xf32>
    %66 = vector.multi_reduction <add>, %65, %cst_32 [1] : vector<8x8xf32> to vector<8xf32>
    %67 = vector.shape_cast %66 : vector<8xf32> to vector<8x1xf32>
    %68 = tpu.reciprocal %67 {approx = true} : vector<8x1xf32> -> vector<8x1xf32>
    %69 = vector.broadcast %68 : vector<8x1xf32> to vector<8x8xf32>
    %70 = arith.mulf %65, %69 : vector<8x8xf32>
    %71 = arith.truncf %70 : vector<8x8xf32> to vector<8x8xbf16>
    %cst_33 = arith.constant dense<0.000000e+00> : vector<8x8xf32>
    %72 = tpu.matmul %71, %55, %cst_33 {dimension_numbers = #tpu.dot_dimension_numbers<[1], [0], [0], [1], [0, 0, 1, 1], [], []>} : vector<8x8xbf16>, vector<8x8xbf16>, vector<8x8xf32> -> vector<8x8xf32>
    %73 = vector.extract_strided_slice %1 {offsets = [0, 24], sizes = [8, 8], strides = [1, 1]} : vector<8x32xbf16> to vector<8x8xbf16>
    %74 = vector.extract_strided_slice %3 {offsets = [0, 24], sizes = [8, 8], strides = [1, 1]} : vector<8x32xbf16> to vector<8x8xbf16>
    %75 = vector.extract_strided_slice %5 {offsets = [0, 24], sizes = [8, 8], strides = [1, 1]} : vector<8x32xbf16> to vector<8x8xbf16>
    %cst_34 = arith.constant dense<0.000000e+00> : vector<8x8xf32>
    %76 = tpu.matmul %73, %74, %cst_34 {dimension_numbers = #tpu.dot_dimension_numbers<[1], [1], [0], [0], [0, 0, 1, 0], [], []>} : vector<8x8xbf16>, vector<8x8xbf16>, vector<8x8xf32> -> vector<8x8xf32>
    %cst_35 = arith.constant 0.353553385 : f32
    %77 = vector.broadcast %cst_35 : f32 to vector<8x8xf32>
    %78 = arith.mulf %76, %77 : vector<8x8xf32>
    %79 = vector.broadcast %12 : vector<1x8xf32> to vector<8x8xf32>
    %80 = arith.addf %78, %79 : vector<8x8xf32>
    %cst_36 = arith.constant dense<0xFF800000> : vector<8xf32>
    %81 = vector.multi_reduction <maximumf>, %80, %cst_36 [1] : vector<8x8xf32> to vector<8xf32>
    %82 = vector.shape_cast %81 : vector<8xf32> to vector<8x1xf32>
    %83 = vector.broadcast %82 : vector<8x1xf32> to vector<8x8xf32>
    %84 = arith.subf %80, %83 : vector<8x8xf32>
    %85 = math.exp %84 : vector<8x8xf32>
    %cst_37 = arith.constant dense<0.000000e+00> : vector<8xf32>
    %86 = vector.multi_reduction <add>, %85, %cst_37 [1] : vector<8x8xf32> to vector<8xf32>
    %87 = vector.shape_cast %86 : vector<8xf32> to vector<8x1xf32>
    %88 = tpu.reciprocal %87 {approx = true} : vector<8x1xf32> -> vector<8x1xf32>
    %89 = vector.broadcast %88 : vector<8x1xf32> to vector<8x8xf32>
    %90 = arith.mulf %85, %89 : vector<8x8xf32>
    %91 = arith.truncf %90 : vector<8x8xf32> to vector<8x8xbf16>
    %cst_38 = arith.constant dense<0.000000e+00> : vector<8x8xf32>
    %92 = tpu.matmul %91, %75, %cst_38 {dimension_numbers = #tpu.dot_dimension_numbers<[1], [0], [0], [1], [0, 0, 1, 1], [], []>} : vector<8x8xbf16>, vector<8x8xbf16>, vector<8x8xf32> -> vector<8x8xf32>
    %93 = tpu.concatenate %32, %52, %72, %92 in 1 : vector<8x8xf32>, vector<8x8xf32>, vector<8x8xf32>, vector<8x8xf32> -> vector<8x32xf32>
    %c0_39 = arith.constant 0 : index
    %c1 = arith.constant 1 : index
    %c0_40 = arith.constant 0 : index
    %c0_41 = arith.constant 0 : index
    %c0_42 = arith.constant 0 : index
    %94 = vector.load %arg3[%c0_39, %c1, %c0_40, %c0_41, %c0_42] : memref<1x2x1x8x32xbf16, #tpu.memory_space<vmem>>, vector<1x1x1x8x32xbf16>
    %95 = vector.shape_cast %94 : vector<1x1x1x8x32xbf16> to vector<8x32xbf16>
    %c0_43 = arith.constant 0 : index
    %c1_44 = arith.constant 1 : index
    %c0_45 = arith.constant 0 : index
    %c0_46 = arith.constant 0 : index
    %c0_47 = arith.constant 0 : index
    %96 = vector.load %arg4[%c0_43, %c1_44, %c0_45, %c0_46, %c0_47] : memref<1x2x1x8x32xbf16, #tpu.memory_space<vmem>>, vector<1x1x1x8x32xbf16>
    %97 = vector.shape_cast %96 : vector<1x1x1x8x32xbf16> to vector<8x32xbf16>
    %c1_48 = arith.constant 1 : index
    %c0_49 = arith.constant 0 : index
    %c0_50 = arith.constant 0 : index
    %c0_51 = arith.constant 0 : index
    %98 = vector.load %arg5[%c1_48, %c0_49, %c0_50, %c0_51] : memref<2x1x1x8xi32, #tpu.memory_space<vmem>>, vector<1x1x1x8xi32>
    %99 = vector.shape_cast %98 : vector<1x1x1x8xi32> to vector<1x8xi32>
    %c0_i32_52 = arith.constant 0 : i32
    %100 = vector.broadcast %c0_i32_52 : i32 to vector<1x8xi32>
    %101 = arith.cmpi sgt, %99, %100 : vector<1x8xi32>
    %cst_53 = arith.constant -1.000000e+09 : f32
    %cst_54 = arith.constant 0.000000e+00 : f32
    %102 = vector.broadcast %cst_53 : f32 to vector<1x8xf32>
    %103 = vector.broadcast %cst_54 : f32 to vector<1x8xf32>
    %104 = arith.select %101, %102, %103 : vector<1x8xi1>, vector<1x8xf32>
    %105 = vector.extract_strided_slice %1 {offsets = [0, 0], sizes = [8, 8], strides = [1, 1]} : vector<8x32xbf16> to vector<8x8xbf16>
    %106 = vector.extract_strided_slice %95 {offsets = [0, 0], sizes = [8, 8], strides = [1, 1]} : vector<8x32xbf16> to vector<8x8xbf16>
    %107 = vector.extract_strided_slice %97 {offsets = [0, 0], sizes = [8, 8], strides = [1, 1]} : vector<8x32xbf16> to vector<8x8xbf16>
    %cst_55 = arith.constant dense<0.000000e+00> : vector<8x8xf32>
    %108 = tpu.matmul %105, %106, %cst_55 {dimension_numbers = #tpu.dot_dimension_numbers<[1], [1], [0], [0], [0, 0, 1, 0], [], []>} : vector<8x8xbf16>, vector<8x8xbf16>, vector<8x8xf32> -> vector<8x8xf32>
    %cst_56 = arith.constant 0.353553385 : f32
    %109 = vector.broadcast %cst_56 : f32 to vector<8x8xf32>
    %110 = arith.mulf %108, %109 : vector<8x8xf32>
    %111 = vector.broadcast %104 : vector<1x8xf32> to vector<8x8xf32>
    %112 = arith.addf %110, %111 : vector<8x8xf32>
    %cst_57 = arith.constant dense<0xFF800000> : vector<8xf32>
    %113 = vector.multi_reduction <maximumf>, %112, %cst_57 [1] : vector<8x8xf32> to vector<8xf32>
    %114 = vector.shape_cast %113 : vector<8xf32> to vector<8x1xf32>
    %115 = vector.broadcast %114 : vector<8x1xf32> to vector<8x8xf32>
    %116 = arith.subf %112, %115 : vector<8x8xf32>
    %117 = math.exp %116 : vector<8x8xf32>
    %cst_58 = arith.constant dense<0.000000e+00> : vector<8xf32>
    %118 = vector.multi_reduction <add>, %117, %cst_58 [1] : vector<8x8xf32> to vector<8xf32>
    %119 = vector.shape_cast %118 : vector<8xf32> to vector<8x1xf32>
    %120 = tpu.reciprocal %119 {approx = true} : vector<8x1xf32> -> vector<8x1xf32>
    %121 = vector.broadcast %120 : vector<8x1xf32> to vector<8x8xf32>
    %122 = arith.mulf %117, %121 : vector<8x8xf32>
    %123 = arith.truncf %122 : vector<8x8xf32> to vector<8x8xbf16>
    %cst_59 = arith.constant dense<0.000000e+00> : vector<8x8xf32>
    %124 = tpu.matmul %123, %107, %cst_59 {dimension_numbers = #tpu.dot_dimension_numbers<[1], [0], [0], [1], [0, 0, 1, 1], [], []>} : vector<8x8xbf16>, vector<8x8xbf16>, vector<8x8xf32> -> vector<8x8xf32>
    %125 = vector.extract_strided_slice %1 {offsets = [0, 8], sizes = [8, 8], strides = [1, 1]} : vector<8x32xbf16> to vector<8x8xbf16>
    %126 = vector.extract_strided_slice %95 {offsets = [0, 8], sizes = [8, 8], strides = [1, 1]} : vector<8x32xbf16> to vector<8x8xbf16>
    %127 = vector.extract_strided_slice %97 {offsets = [0, 8], sizes = [8, 8], strides = [1, 1]} : vector<8x32xbf16> to vector<8x8xbf16>
    %cst_60 = arith.constant dense<0.000000e+00> : vector<8x8xf32>
    %128 = tpu.matmul %125, %126, %cst_60 {dimension_numbers = #tpu.dot_dimension_numbers<[1], [1], [0], [0], [0, 0, 1, 0], [], []>} : vector<8x8xbf16>, vector<8x8xbf16>, vector<8x8xf32> -> vector<8x8xf32>
    %cst_61 = arith.constant 0.353553385 : f32
    %129 = vector.broadcast %cst_61 : f32 to vector<8x8xf32>
    %130 = arith.mulf %128, %129 : vector<8x8xf32>
    %131 = vector.broadcast %104 : vector<1x8xf32> to vector<8x8xf32>
    %132 = arith.addf %130, %131 : vector<8x8xf32>
    %cst_62 = arith.constant dense<0xFF800000> : vector<8xf32>
    %133 = vector.multi_reduction <maximumf>, %132, %cst_62 [1] : vector<8x8xf32> to vector<8xf32>
    %134 = vector.shape_cast %133 : vector<8xf32> to vector<8x1xf32>
    %135 = vector.broadcast %134 : vector<8x1xf32> to vector<8x8xf32>
    %136 = arith.subf %132, %135 : vector<8x8xf32>
    %137 = math.exp %136 : vector<8x8xf32>
    %cst_63 = arith.constant dense<0.000000e+00> : vector<8xf32>
    %138 = vector.multi_reduction <add>, %137, %cst_63 [1] : vector<8x8xf32> to vector<8xf32>
    %139 = vector.shape_cast %138 : vector<8xf32> to vector<8x1xf32>
    %140 = tpu.reciprocal %139 {approx = true} : vector<8x1xf32> -> vector<8x1xf32>
    %141 = vector.broadcast %140 : vector<8x1xf32> to vector<8x8xf32>
    %142 = arith.mulf %137, %141 : vector<8x8xf32>
    %143 = arith.truncf %142 : vector<8x8xf32> to vector<8x8xbf16>
    %cst_64 = arith.constant dense<0.000000e+00> : vector<8x8xf32>
    %144 = tpu.matmul %143, %127, %cst_64 {dimension_numbers = #tpu.dot_dimension_numbers<[1], [0], [0], [1], [0, 0, 1, 1], [], []>} : vector<8x8xbf16>, vector<8x8xbf16>, vector<8x8xf32> -> vector<8x8xf32>
    %145 = vector.extract_strided_slice %1 {offsets = [0, 16], sizes = [8, 8], strides = [1, 1]} : vector<8x32xbf16> to vector<8x8xbf16>
    %146 = vector.extract_strided_slice %95 {offsets = [0, 16], sizes = [8, 8], strides = [1, 1]} : vector<8x32xbf16> to vector<8x8xbf16>
    %147 = vector.extract_strided_slice %97 {offsets = [0, 16], sizes = [8, 8], strides = [1, 1]} : vector<8x32xbf16> to vector<8x8xbf16>
    %cst_65 = arith.constant dense<0.000000e+00> : vector<8x8xf32>
    %148 = tpu.matmul %145, %146, %cst_65 {dimension_numbers = #tpu.dot_dimension_numbers<[1], [1], [0], [0], [0, 0, 1, 0], [], []>} : vector<8x8xbf16>, vector<8x8xbf16>, vector<8x8xf32> -> vector<8x8xf32>
    %cst_66 = arith.constant 0.353553385 : f32
    %149 = vector.broadcast %cst_66 : f32 to vector<8x8xf32>
    %150 = arith.mulf %148, %149 : vector<8x8xf32>
    %151 = vector.broadcast %104 : vector<1x8xf32> to vector<8x8xf32>
    %152 = arith.addf %150, %151 : vector<8x8xf32>
    %cst_67 = arith.constant dense<0xFF800000> : vector<8xf32>
    %153 = vector.multi_reduction <maximumf>, %152, %cst_67 [1] : vector<8x8xf32> to vector<8xf32>
    %154 = vector.shape_cast %153 : vector<8xf32> to vector<8x1xf32>
    %155 = vector.broadcast %154 : vector<8x1xf32> to vector<8x8xf32>
    %156 = arith.subf %152, %155 : vector<8x8xf32>
    %157 = math.exp %156 : vector<8x8xf32>
    %cst_68 = arith.constant dense<0.000000e+00> : vector<8xf32>
    %158 = vector.multi_reduction <add>, %157, %cst_68 [1] : vector<8x8xf32> to vector<8xf32>
    %159 = vector.shape_cast %158 : vector<8xf32> to vector<8x1xf32>
    %160 = tpu.reciprocal %159 {approx = true} : vector<8x1xf32> -> vector<8x1xf32>
    %161 = vector.broadcast %160 : vector<8x1xf32> to vector<8x8xf32>
    %162 = arith.mulf %157, %161 : vector<8x8xf32>
    %163 = arith.truncf %162 : vector<8x8xf32> to vector<8x8xbf16>
    %cst_69 = arith.constant dense<0.000000e+00> : vector<8x8xf32>
    %164 = tpu.matmul %163, %147, %cst_69 {dimension_numbers = #tpu.dot_dimension_numbers<[1], [0], [0], [1], [0, 0, 1, 1], [], []>} : vector<8x8xbf16>, vector<8x8xbf16>, vector<8x8xf32> -> vector<8x8xf32>
    %165 = vector.extract_strided_slice %1 {offsets = [0, 24], sizes = [8, 8], strides = [1, 1]} : vector<8x32xbf16> to vector<8x8xbf16>
    %166 = vector.extract_strided_slice %95 {offsets = [0, 24], sizes = [8, 8], strides = [1, 1]} : vector<8x32xbf16> to vector<8x8xbf16>
    %167 = vector.extract_strided_slice %97 {offsets = [0, 24], sizes = [8, 8], strides = [1, 1]} : vector<8x32xbf16> to vector<8x8xbf16>
    %cst_70 = arith.constant dense<0.000000e+00> : vector<8x8xf32>
    %168 = tpu.matmul %165, %166, %cst_70 {dimension_numbers = #tpu.dot_dimension_numbers<[1], [1], [0], [0], [0, 0, 1, 0], [], []>} : vector<8x8xbf16>, vector<8x8xbf16>, vector<8x8xf32> -> vector<8x8xf32>
    %cst_71 = arith.constant 0.353553385 : f32
    %169 = vector.broadcast %cst_71 : f32 to vector<8x8xf32>
    %170 = arith.mulf %168, %169 : vector<8x8xf32>
    %171 = vector.broadcast %104 : vector<1x8xf32> to vector<8x8xf32>
    %172 = arith.addf %170, %171 : vector<8x8xf32>
    %cst_72 = arith.constant dense<0xFF800000> : vector<8xf32>
    %173 = vector.multi_reduction <maximumf>, %172, %cst_72 [1] : vector<8x8xf32> to vector<8xf32>
    %174 = vector.shape_cast %173 : vector<8xf32> to vector<8x1xf32>
    %175 = vector.broadcast %174 : vector<8x1xf32> to vector<8x8xf32>
    %176 = arith.subf %172, %175 : vector<8x8xf32>
    %177 = math.exp %176 : vector<8x8xf32>
    %cst_73 = arith.constant dense<0.000000e+00> : vector<8xf32>
    %178 = vector.multi_reduction <add>, %177, %cst_73 [1] : vector<8x8xf32> to vector<8xf32>
    %179 = vector.shape_cast %178 : vector<8xf32> to vector<8x1xf32>
    %180 = tpu.reciprocal %179 {approx = true} : vector<8x1xf32> -> vector<8x1xf32>
    %181 = vector.broadcast %180 : vector<8x1xf32> to vector<8x8xf32>
    %182 = arith.mulf %177, %181 : vector<8x8xf32>
    %183 = arith.truncf %182 : vector<8x8xf32> to vector<8x8xbf16>
    %cst_74 = arith.constant dense<0.000000e+00> : vector<8x8xf32>
    %184 = tpu.matmul %183, %167, %cst_74 {dimension_numbers = #tpu.dot_dimension_numbers<[1], [0], [0], [1], [0, 0, 1, 1], [], []>} : vector<8x8xbf16>, vector<8x8xbf16>, vector<8x8xf32> -> vector<8x8xf32>
    %185 = tpu.concatenate %124, %144, %164, %184 in 1 : vector<8x8xf32>, vector<8x8xf32>, vector<8x8xf32>, vector<8x8xf32> -> vector<8x32xf32>
    %c0_i32_75 = arith.constant 0 : i32
    %186 = arith.cmpi eq, %arg1, %c0_i32_75 : i32
    %cst_76 = arith.constant 5.000000e-01 : f32
    %cst_77 = arith.constant 5.000000e-01 : f32
    %187 = arith.select %186, %cst_76, %cst_77 : f32
    %c0_i32_78 = arith.constant 0 : i32
    %188 = arith.cmpi eq, %arg1, %c0_i32_78 : i32
    %cst_79 = arith.constant 5.000000e-01 : f32
    %cst_80 = arith.constant 5.000000e-01 : f32
    %189 = arith.select %188, %cst_79, %cst_80 : f32
    %190 = vector.broadcast %187 : f32 to vector<8x32xf32>
    %191 = arith.mulf %190, %93 : vector<8x32xf32>
    %192 = vector.broadcast %189 : f32 to vector<8x32xf32>
    %193 = arith.mulf %192, %185 : vector<8x32xf32>
    %194 = arith.addf %191, %193 : vector<8x32xf32>
    %195 = arith.truncf %194 : vector<8x32xf32> to vector<8x32xbf16>
    %c0_81 = arith.constant 0 : index
    %c0_82 = arith.constant 0 : index
    %196 = vector.load %arg7[%c0_81, %c0_82] : memref<32x32xbf16, #tpu.memory_space<vmem>>, vector<32x32xbf16>
    %cst_83 = arith.constant dense<0.000000e+00> : vector<8x32xf32>
    %197 = tpu.matmul %195, %196, %cst_83 {dimension_numbers = #tpu.dot_dimension_numbers<[1], [0], [0], [1], [0, 0, 1, 1], [], []>} : vector<8x32xbf16>, vector<32x32xbf16>, vector<8x32xf32> -> vector<8x32xf32>
    %c0_84 = arith.constant 0 : index
    %c0_85 = arith.constant 0 : index
    %198 = vector.load %arg8[%c0_84, %c0_85] : memref<1x32xf32, #tpu.memory_space<vmem>>, vector<1x32xf32>
    %cst_86 = arith.constant 1.000000e+00 : f32
    %199 = vector.broadcast %cst_86 : f32 to vector<1x32xf32>
    %200 = arith.mulf %199, %198 : vector<1x32xf32>
    %201 = vector.broadcast %200 : vector<1x32xf32> to vector<8x32xf32>
    %202 = arith.addf %197, %201 : vector<8x32xf32>
    %c0_87 = arith.constant 0 : index
    %c0_88 = arith.constant 0 : index
    %c0_89 = arith.constant 0 : index
    %c0_90 = arith.constant 0 : index
    %203 = vector.load %arg6[%c0_87, %c0_88, %c0_89, %c0_90] : memref<1x1x8x32xf32, #tpu.memory_space<vmem>>, vector<1x1x8x32xf32>
    %204 = vector.shape_cast %203 : vector<1x1x8x32xf32> to vector<8x32xf32>
    %205 = arith.addf %202, %204 : vector<8x32xf32>
    %cst_91 = arith.constant dense<0.000000e+00> : vector<8xf32>
    %206 = vector.multi_reduction <add>, %205, %cst_91 [1] : vector<8x32xf32> to vector<8xf32>
    %207 = vector.shape_cast %206 : vector<8xf32> to vector<8x1xf32>
    %cst_92 = arith.constant 3.200000e+01 : f32
    %208 = vector.broadcast %cst_92 : f32 to vector<8x1xf32>
    %209 = arith.divf %207, %208 : vector<8x1xf32>
    %210 = vector.broadcast %209 : vector<8x1xf32> to vector<8x32xf32>
    %211 = arith.subf %205, %210 : vector<8x32xf32>
    %212 = arith.mulf %211, %211 : vector<8x32xf32>
    %cst_93 = arith.constant dense<0.000000e+00> : vector<8xf32>
    %213 = vector.multi_reduction <add>, %212, %cst_93 [1] : vector<8x32xf32> to vector<8xf32>
    %214 = vector.shape_cast %213 : vector<8xf32> to vector<8x1xf32>
    %cst_94 = arith.constant 3.200000e+01 : f32
    %215 = vector.broadcast %cst_94 : f32 to vector<8x1xf32>
    %216 = arith.divf %214, %215 : vector<8x1xf32>
    %217 = vector.broadcast %209 : vector<8x1xf32> to vector<8x32xf32>
    %218 = arith.subf %205, %217 : vector<8x32xf32>
    %cst_95 = arith.constant 9.99999974E-6 : f32
    %219 = vector.broadcast %cst_95 : f32 to vector<8x1xf32>
    %220 = arith.addf %216, %219 : vector<8x1xf32>
    %221 = math.rsqrt %220 : vector<8x1xf32>
    %222 = vector.broadcast %221 : vector<8x1xf32> to vector<8x32xf32>
    %223 = arith.mulf %218, %222 : vector<8x32xf32>
    %c0_96 = arith.constant 0 : index
    %c0_97 = arith.constant 0 : index
    %224 = vector.load %arg9[%c0_96, %c0_97] : memref<1x32xf32, #tpu.memory_space<vmem>>, vector<1x32xf32>
    %225 = vector.broadcast %224 : vector<1x32xf32> to vector<8x32xf32>
    %226 = arith.mulf %223, %225 : vector<8x32xf32>
    %c0_98 = arith.constant 0 : index
    %c0_99 = arith.constant 0 : index
    %227 = vector.load %arg10[%c0_98, %c0_99] : memref<1x32xf32, #tpu.memory_space<vmem>>, vector<1x32xf32>
    %228 = vector.broadcast %227 : vector<1x32xf32> to vector<8x32xf32>
    %229 = arith.addf %226, %228 : vector<8x32xf32>
    %c0_100 = arith.constant 0 : index
    %c0_101 = arith.constant 0 : index
    %c0_102 = arith.constant 0 : index
    %c0_103 = arith.constant 0 : index
    %230 = vector.load %arg11[%c0_100, %c0_101, %c0_102, %c0_103] : memref<1x1x8x32xf32, #tpu.memory_space<vmem>>, vector<1x1x8x32xf32>
    %231 = vector.shape_cast %230 : vector<1x1x8x32xf32> to vector<8x32xf32>
    %232 = vector.shape_cast %229 : vector<8x32xf32> to vector<1x1x8x32xf32>
    tpu.vector_store %arg11[%c0_100, %c0_101, %c0_102, %c0_103], %232 {strides = array<i32>} : memref<1x1x8x32xf32, #tpu.memory_space<vmem>>, vector<1x1x8x32xf32>,
    return
  }
  func.func @transform_0(%arg0: i32, %arg1: i32) -> (i32, i32, i32, i32, i32) {
    %c0_i32 = arith.constant 0 : i32
    %c0_i32_0 = arith.constant 0 : i32
    %c0_i32_1 = arith.constant 0 : i32
    %c0_i32_2 = arith.constant 0 : i32
    return %c0_i32, %arg1, %arg0, %c0_i32_0, %c0_i32_1 : i32, i32, i32, i32, i32
  }
  func.func @transform_1(%arg0: i32, %arg1: i32) -> (i32, i32, i32, i32, i32) {
    %c1_i32 = arith.constant 1 : i32
    %c0_i32 = arith.constant 0 : i32
    %c0_i32_0 = arith.constant 0 : i32
    %c0_i32_1 = arith.constant 0 : i32
    %c0_i32_2 = arith.constant 0 : i32
    return %c1_i32, %c0_i32, %arg0, %c0_i32_0, %c0_i32_1 : i32, i32, i32, i32, i32
  }
  func.func @transform_2(%arg0: i32, %arg1: i32) -> (i32, i32, i32, i32, i32) {
    %c2_i32 = arith.constant 2 : i32
    %c0_i32 = arith.constant 0 : i32
    %c0_i32_0 = arith.constant 0 : i32
    %c0_i32_1 = arith.constant 0 : i32
    %c0_i32_2 = arith.constant 0 : i32
    return %c2_i32, %c0_i32, %arg0, %c0_i32_0, %c0_i32_1 : i32, i32, i32, i32, i32
  }
  func.func @transform_3(%arg0: i32, %arg1: i32) -> (i32, i32, i32, i32) {
    %c0_i32 = arith.constant 0 : i32
    %c0_i32_0 = arith.constant 0 : i32
    %c0_i32_1 = arith.constant 0 : i32
    %c0_i32_2 = arith.constant 0 : i32
    return %c0_i32, %arg0, %c0_i32_0, %c0_i32_1 : i32, i32, i32, i32
  }
  func.func @transform_4(%arg0: i32, %arg1: i32) -> (i32, i32, i32, i32) {
    %c0_i32 = arith.constant 0 : i32
    %c0_i32_0 = arith.constant 0 : i32
    %c0_i32_1 = arith.constant 0 : i32
    return %arg1, %arg0, %c0_i32, %c0_i32_0 : i32, i32, i32, i32
  }
  func.func @transform_5(%arg0: i32, %arg1: i32) -> (i32, i32) {
    %c0_i32 = arith.constant 0 : i32
    %c0_i32_0 = arith.constant 0 : i32
    %c0_i32_1 = arith.constant 0 : i32
    return %c0_i32, %c0_i32_0 : i32, i32
  }
  func.func @transform_6(%arg0: i32, %arg1: i32) -> (i32, i32) {
    %c0_i32 = arith.constant 0 : i32
    %c0_i32_0 = arith.constant 0 : i32
    %c0_i32_1 = arith.constant 0 : i32
    return %c0_i32, %c0_i32_0 : i32, i32
  }
  func.func @transform_7(%arg0: i32, %arg1: i32) -> (i32, i32) {
    %c0_i32 = arith.constant 0 : i32
    %c0_i32_0 = arith.constant 0 : i32
    %c0_i32_1 = arith.constant 0 : i32
    return %c0_i32, %c0_i32_0 : i32, i32
  }
  func.func @transform_8(%arg0: i32, %arg1: i32) -> (i32, i32) {
    %c0_i32 = arith.constant 0 : i32
    %c0_i32_0 = arith.constant 0 : i32
    %c0_i32_1 = arith.constant 0 : i32
    return %c0_i32, %c0_i32_0 : i32, i32
  }
  func.func @transform_9(%arg0: i32, %arg1: i32) -> (i32, i32, i32, i32) {
    %c0_i32 = arith.constant 0 : i32
    %c0_i32_0 = arith.constant 0 : i32
    %c0_i32_1 = arith.constant 0 : i32
    return %arg1, %arg0, %c0_i32, %c0_i32_0 : i32, i32, i32, i32
  }
}

module attributes {stable_mosaic.version = 11 : i64} {
  func.func @_ffn_kernel(%arg0: i32, %arg1: memref<32x32xf32, #tpu.memory_space<vmem>>, %arg2: memref<32x64xbf16, #tpu.memory_space<vmem>>, %arg3: memref<1x64xf32, #tpu.memory_space<vmem>>, %arg4: memref<64x32xbf16, #tpu.memory_space<vmem>>, %arg5: memref<1x32xf32, #tpu.memory_space<vmem>>, %arg6: memref<1x32xf32, #tpu.memory_space<vmem>>, %arg7: memref<1x32xf32, #tpu.memory_space<vmem>>, %arg8: memref<32x32xf32, #tpu.memory_space<vmem>>) attributes {dimension_semantics = [#tpu.dimension_semantics<parallel>], iteration_bounds = array<i64: 1>, scalar_prefetch = 0 : i64, scratch_operands = 0 : i64, tpu.core_type = #tpu.core_type<tc>, window_params = [{transform_indices = @transform_0, window_bounds = array<i64: 32, 32>}, {pipeline_mode = #tpu.pipeline_mode<synchronous>, transform_indices = @transform_1, window_bounds = array<i64: 32, 64>}, {pipeline_mode = #tpu.pipeline_mode<synchronous>, transform_indices = @transform_2, window_bounds = array<i64: 1, 64>}, {pipeline_mode = #tpu.pipeline_mode<synchronous>, transform_indices = @transform_3, window_bounds = array<i64: 64, 32>}, {pipeline_mode = #tpu.pipeline_mode<synchronous>, transform_indices = @transform_4, window_bounds = array<i64: 1, 32>}, {pipeline_mode = #tpu.pipeline_mode<synchronous>, transform_indices = @transform_5, window_bounds = array<i64: 1, 32>}, {pipeline_mode = #tpu.pipeline_mode<synchronous>, transform_indices = @transform_6, window_bounds = array<i64: 1, 32>}, {transform_indices = @transform_7, window_bounds = array<i64: 32, 32>}]} {
    %c0 = arith.constant 0 : index
    %c0_0 = arith.constant 0 : index
    %0 = vector.load %arg1[%c0, %c0_0] : memref<32x32xf32, #tpu.memory_space<vmem>>, vector<32x32xf32>
    %1 = arith.truncf %0 : vector<32x32xf32> to vector<32x32xbf16>
    %c0_1 = arith.constant 0 : index
    %c0_2 = arith.constant 0 : index
    %2 = vector.load %arg2[%c0_1, %c0_2] : memref<32x64xbf16, #tpu.memory_space<vmem>>, vector<32x64xbf16>
    %cst = arith.constant dense<0.000000e+00> : vector<32x64xf32>
    %3 = tpu.matmul %1, %2, %cst {dimension_numbers = #tpu.dot_dimension_numbers<[1], [0], [0], [1], [0, 0, 1, 1], [], []>} : vector<32x32xbf16>, vector<32x64xbf16>, vector<32x64xf32> -> vector<32x64xf32>
    %c0_3 = arith.constant 0 : index
    %c0_4 = arith.constant 0 : index
    %4 = vector.load %arg3[%c0_3, %c0_4] : memref<1x64xf32, #tpu.memory_space<vmem>>, vector<1x64xf32>
    %5 = vector.broadcast %4 : vector<1x64xf32> to vector<32x64xf32>
    %6 = arith.addf %3, %5 : vector<32x64xf32>
    %cst_5 = arith.constant 0.000000e+00 : f32
    %7 = vector.broadcast %cst_5 : f32 to vector<32x64xf32>
    %8 = arith.maximumf %6, %7 : vector<32x64xf32>
    %9 = arith.truncf %8 : vector<32x64xf32> to vector<32x64xbf16>
    %c0_6 = arith.constant 0 : index
    %c0_7 = arith.constant 0 : index
    %10 = vector.load %arg4[%c0_6, %c0_7] : memref<64x32xbf16, #tpu.memory_space<vmem>>, vector<64x32xbf16>
    %cst_8 = arith.constant dense<0.000000e+00> : vector<32x32xf32>
    %11 = tpu.matmul %9, %10, %cst_8 {dimension_numbers = #tpu.dot_dimension_numbers<[1], [0], [0], [1], [0, 0, 1, 1], [], []>} : vector<32x64xbf16>, vector<64x32xbf16>, vector<32x32xf32> -> vector<32x32xf32>
    %c0_9 = arith.constant 0 : index
    %c0_10 = arith.constant 0 : index
    %12 = vector.load %arg5[%c0_9, %c0_10] : memref<1x32xf32, #tpu.memory_space<vmem>>, vector<1x32xf32>
    %13 = vector.broadcast %12 : vector<1x32xf32> to vector<32x32xf32>
    %14 = arith.addf %11, %13 : vector<32x32xf32>
    %15 = arith.addf %14, %0 : vector<32x32xf32>
    %cst_11 = arith.constant dense<0.000000e+00> : vector<32xf32>
    %16 = vector.multi_reduction <add>, %15, %cst_11 [1] : vector<32x32xf32> to vector<32xf32>
    %17 = vector.shape_cast %16 : vector<32xf32> to vector<32x1xf32>
    %cst_12 = arith.constant 3.200000e+01 : f32
    %18 = vector.broadcast %cst_12 : f32 to vector<32x1xf32>
    %19 = arith.divf %17, %18 : vector<32x1xf32>
    %20 = vector.broadcast %19 : vector<32x1xf32> to vector<32x32xf32>
    %21 = arith.subf %15, %20 : vector<32x32xf32>
    %22 = arith.mulf %21, %21 : vector<32x32xf32>
    %cst_13 = arith.constant dense<0.000000e+00> : vector<32xf32>
    %23 = vector.multi_reduction <add>, %22, %cst_13 [1] : vector<32x32xf32> to vector<32xf32>
    %24 = vector.shape_cast %23 : vector<32xf32> to vector<32x1xf32>
    %cst_14 = arith.constant 3.200000e+01 : f32
    %25 = vector.broadcast %cst_14 : f32 to vector<32x1xf32>
    %26 = arith.divf %24, %25 : vector<32x1xf32>
    %27 = vector.broadcast %19 : vector<32x1xf32> to vector<32x32xf32>
    %28 = arith.subf %15, %27 : vector<32x32xf32>
    %cst_15 = arith.constant 9.99999974E-6 : f32
    %29 = vector.broadcast %cst_15 : f32 to vector<32x1xf32>
    %30 = arith.addf %26, %29 : vector<32x1xf32>
    %31 = math.rsqrt %30 : vector<32x1xf32>
    %32 = vector.broadcast %31 : vector<32x1xf32> to vector<32x32xf32>
    %33 = arith.mulf %28, %32 : vector<32x32xf32>
    %c0_16 = arith.constant 0 : index
    %c0_17 = arith.constant 0 : index
    %34 = vector.load %arg6[%c0_16, %c0_17] : memref<1x32xf32, #tpu.memory_space<vmem>>, vector<1x32xf32>
    %35 = vector.broadcast %34 : vector<1x32xf32> to vector<32x32xf32>
    %36 = arith.mulf %33, %35 : vector<32x32xf32>
    %c0_18 = arith.constant 0 : index
    %c0_19 = arith.constant 0 : index
    %37 = vector.load %arg7[%c0_18, %c0_19] : memref<1x32xf32, #tpu.memory_space<vmem>>, vector<1x32xf32>
    %38 = vector.broadcast %37 : vector<1x32xf32> to vector<32x32xf32>
    %39 = arith.addf %36, %38 : vector<32x32xf32>
    %c0_20 = arith.constant 0 : index
    %c0_21 = arith.constant 0 : index
    %40 = vector.load %arg8[%c0_20, %c0_21] : memref<32x32xf32, #tpu.memory_space<vmem>>, vector<32x32xf32>
    tpu.vector_store %arg8[%c0_20, %c0_21], %39 {strides = array<i32>} : memref<32x32xf32, #tpu.memory_space<vmem>>, vector<32x32xf32>,
    return
  }
  func.func @transform_0(%arg0: i32) -> (i32, i32) {
    %c0_i32 = arith.constant 0 : i32
    %c0_i32_0 = arith.constant 0 : i32
    return %arg0, %c0_i32 : i32, i32
  }
  func.func @transform_1(%arg0: i32) -> (i32, i32) {
    %c0_i32 = arith.constant 0 : i32
    %c0_i32_0 = arith.constant 0 : i32
    %c0_i32_1 = arith.constant 0 : i32
    return %c0_i32, %c0_i32_0 : i32, i32
  }
  func.func @transform_2(%arg0: i32) -> (i32, i32) {
    %c0_i32 = arith.constant 0 : i32
    %c0_i32_0 = arith.constant 0 : i32
    %c0_i32_1 = arith.constant 0 : i32
    return %c0_i32, %c0_i32_0 : i32, i32
  }
  func.func @transform_3(%arg0: i32) -> (i32, i32) {
    %c0_i32 = arith.constant 0 : i32
    %c0_i32_0 = arith.constant 0 : i32
    %c0_i32_1 = arith.constant 0 : i32
    return %c0_i32, %c0_i32_0 : i32, i32
  }
  func.func @transform_4(%arg0: i32) -> (i32, i32) {
    %c0_i32 = arith.constant 0 : i32
    %c0_i32_0 = arith.constant 0 : i32
    %c0_i32_1 = arith.constant 0 : i32
    return %c0_i32, %c0_i32_0 : i32, i32
  }
  func.func @transform_5(%arg0: i32) -> (i32, i32) {
    %c0_i32 = arith.constant 0 : i32
    %c0_i32_0 = arith.constant 0 : i32
    %c0_i32_1 = arith.constant 0 : i32
    return %c0_i32, %c0_i32_0 : i32, i32
  }
  func.func @transform_6(%arg0: i32) -> (i32, i32) {
    %c0_i32 = arith.constant 0 : i32
    %c0_i32_0 = arith.constant 0 : i32
    %c0_i32_1 = arith.constant 0 : i32
    return %c0_i32, %c0_i32_0 : i32, i32
  }
  func.func @transform_7(%arg0: i32) -> (i32, i32) {
    %c0_i32 = arith.constant 0 : i32
    %c0_i32_0 = arith.constant 0 : i32
    return %arg0, %c0_i32 : i32, i32
  }
}

</mosaic_0001>

<llo_original>
// kernel: _lambda_.3
$region0: #{_lambda_.3}
  #allocation0 [shape = 'u32[]', space=smem, size = 0x4, offset = 0x4, fixed_abs, tag = 'smem constant byte address 0x4 - core index']
  #allocation1 [shape = 'u32[144,128]{1,0:T(1,128)}', space=vmem, size = 0x12000, scoped, tag = 'internal scratch']
  %s0 = inlined_call_operand.vmem [shape: f32[32,32], index: 0, kind: input, shape index: {}]
  %s1 = inlined_call_operand.vmem [shape: bf16[32,96], index: 1, kind: input, shape index: {}]
  %s2 = inlined_call_operand.vmem [shape: f32[1,96], index: 2, kind: input, shape index: {}]
  %s3 = inlined_call_operand.vmem [shape: bf16[3,32,32], index: 3, kind: output, shape index: {}]
  %s4 = sld [smem:[#allocation0]]
  $region22: #{_lambda_.3} parent=0
    _
  %s6 = ssub.s32 1, %s4
  %s7 = scalar_select 0, %s6, %s4
  // Predicated region
  $region2: #{_lambda_.3} parent=0 // pred_check
    _
  $region3: #{_lambda_.3} parent=0 // pred_check_branch
    %9 = sbr.rel (0) target = $region5
  $region4: #{_lambda_.3} parent=0 // pred_region
    _
  $region5: #{_lambda_.3} parent=0 // pred_fallthru
    _
  // Predicated region
  $region6: #{_lambda_.3} parent=0 // pred_check
    _
  $region7: #{_lambda_.3} parent=0 // pred_check_branch
    %11 = sbr.rel (0) target = $region9
  $region8: #{_lambda_.3} parent=0 // pred_region
    _
  $region9: #{_lambda_.3} parent=0 // pred_fallthru
    _
  // Predicated region
  $region10: #{_lambda_.3} parent=0 // pred_check
    _
  $region11: #{_lambda_.3} parent=0 // pred_check_branch
    %13 = sbr.rel (0) target = $region13
  $region12: #{_lambda_.3} parent=0 // pred_region
    _
  $region13: #{_lambda_.3} parent=0 // pred_fallthru
    _
  %v15 = vld [vmem:[%s0] sm:$0xff]
  %v16 = vld [vmem:[%s0 + $0x8] sm:$0xff]
  %v17 = vld [vmem:[%s0 + $0x10] sm:$0xff]
  %v18 = vld [vmem:[%s0 + $0x18] sm:$0xff]
  %v19 = vpack.c.bf16 %v16, %v15
  %v20 = vpack.c.bf16 %v18, %v17
  %v21 = vld [vmem:[%s1] sm:$0xf]
  %v22 = vld [vmem:[%s1 + $0x4] sm:$0xf]
  %v23 = vld [vmem:[%s1 + $0x8] sm:$0xf]
  %v24 = vld [vmem:[%s1 + $0xc] sm:$0xf]
  %v25 = vld [vmem:[%s2] sm:$0x1]
  %v27 = vlaneseq
  %v28 = vshrl.u32 %v27, 7
  %v29 = vsub.s32 0, %v28
  %v30 = vrot.slane %v25, %v29
  %v36 = vunpack.c.l.b16 %v21
  %v37 = vunpack.c.l.b16 %v22
  %v38 = vunpack.c.l.b16 %v23
  %v39 = vunpack.c.l.b16 %v24
  %v40 = vpack.c.b16 %v37, %v36
  %v41 = vpack.c.b16 %v39, %v38
  %vm44 = vcmask 261120
  %v46 = vsel %vm44, %v19, 0
  %v49 = vsel %vm44, %v20, 0
  %51 = vmatprep.subr.bf16.mxu0 0
  %52 = vmatpush1.bf16.msra.mxu0 %v40
  %53 = vmatprep.subr.bf16.mxu0 0
  %54 = vmatpush1.bf16.msra.mxu0 %v41
  %55 = vmatprep.subr.bf16.mxu0 0
  %56 = vmatpush1.bf16.msra.mxu0 0
  %57 = vmatprep.subr.bf16.mxu0 0
  %58 = vmatpush1.bf16.msra.mxu0 0
  %59 = vmatprep.subr.bf16.mxu0 0
  %60 = vmatpush1.bf16.msra.mxu0 0
  %61 = vmatprep.subr.bf16.mxu0 0
  %62 = vmatpush1.bf16.msra.mxu0 0
  %63 = vmatprep.subr.bf16.mxu0 0
  %64 = vmatpush1.bf16.msra.mxu0 0
  %65 = vmatprep.subr.bf16.mxu0 0
  %66 = vmatpush1.bf16.msra.mxu0 0
  %67 = vmatprep.subr.bf16.mxu0 0
  %68 = vmatpush1.bf16.msra.mxu0 0
  %69 = vmatprep.subr.bf16.mxu0 0
  %70 = vmatpush1.bf16.msra.mxu0 0
  %71 = vmatprep.subr.bf16.mxu0 0
  %72 = vmatpush1.bf16.msra.mxu0 0
  %73 = vmatprep.subr.bf16.mxu0 0
  %74 = vmatpush1.bf16.msra.mxu0 0
  %75 = vmatprep.subr.bf16.mxu0 0
  %76 = vmatpush1.bf16.msra.mxu0 0
  %77 = vmatprep.subr.bf16.mxu0 0
  %78 = vmatpush1.bf16.msra.mxu0 0
  %79 = vmatprep.subr.bf16.mxu0 0
  %80 = vmatpush1.bf16.msra.mxu0 0
  %81 = vmatprep.subr.bf16.mxu0 0
  %82 = vmatpush1.bf16.msra.mxu0 0
  %83 = vmatprep.mubr.bf16.mxu0 0
  %84 = vmatmul.mubr.bf16.gmra.mrb[0].mxu0 %v46
  %v85 = vpop.f32.mrb[0].mxu0
  %v86 = vadd.f32 %v30, %v85
  %v87 = vpop.f32.mrb[0].mxu0
  %v88 = vpop.f32.mrb[0].mxu0
  %v89 = vadd.f32 %v30, %v88
  %v90 = vpop.f32.mrb[0].mxu0
  %91 = vmatprep.mubr.bf16.mxu0 0
  %92 = vmatmul.mubr.bf16.gmra.mrb[0].mxu0 %v49
  %v93 = vpop.f32.mrb[0].mxu0
  %v94 = vadd.f32 %v30, %v93
  %v95 = vpop.f32.mrb[0].mxu0
  %v96 = vpop.f32.mrb[0].mxu0
  %v97 = vadd.f32 %v30, %v96
  %v98 = vpop.f32.mrb[0].mxu0
  %99 = vdwg.mxu0
  %v100 = vpack.c.bf16 %v89, %v86
  %v101 = vpack.c.bf16 %v97, %v94
  %v104 = vunpack.c.l.b16 %v100
  %v105 = vunpack.c.h.b16 %v100
  %v106 = vunpack.c.l.b16 %v101
  %v107 = vunpack.c.h.b16 %v101
  %v108 = vpack.c.b16 %v104, %v104
  %v109 = vpack.c.b16 %v105, %v105
  %v110 = vpack.c.b16 %v106, %v106
  %v111 = vpack.c.b16 %v107, %v107
  %vm116 = vcmask 257024
  %117 = vst.msk [vmem:[%s3] sm:$0xf] %vm116, %v108
  %118 = vst.msk [vmem:[%s3 + $0x4] sm:$0xf] %vm116, %v109
  %119 = vst.msk [vmem:[%s3 + $0x8] sm:$0xf] %vm116, %v110
  %120 = vst.msk [vmem:[%s3 + $0xc] sm:$0xf] %vm116, %v111
  %121 = vrot.lane.b32.xlu0 %v108, 96
  %v122 = vpop.permute.xlu0 %121
  %123 = vrot.lane.b32.xlu0 %v109, 96
  %v124 = vpop.permute.xlu0 %123
  %125 = vrot.lane.b32.xlu0 %v110, 96
  %v126 = vpop.permute.xlu0 %125
  %127 = vrot.lane.b32.xlu0 %v111, 96
  %v128 = vpop.permute.xlu0 %127
  %s133 = scalar_lea.vmem %s3, 16
  %134 = vst.msk [vmem:[%s133] sm:$0xf] %vm116, %v122
  %135 = vst.msk [vmem:[%s133 + $0x4] sm:$0xf] %vm116, %v124
  %136 = vst.msk [vmem:[%s133 + $0x8] sm:$0xf] %vm116, %v126
  %137 = vst.msk [vmem:[%s133 + $0xc] sm:$0xf] %vm116, %v128
  %138 = vrot.lane.b32.xlu0 %v108, 64
  %v139 = vpop.permute.xlu0 %138
  %140 = vrot.lane.b32.xlu0 %v109, 64
  %v141 = vpop.permute.xlu0 %140
  %142 = vrot.lane.b32.xlu0 %v110, 64
  %v143 = vpop.permute.xlu0 %142
  %144 = vrot.lane.b32.xlu0 %v111, 64
  %v145 = vpop.permute.xlu0 %144
  %s150 = scalar_lea.vmem %s3, 32
  %151 = vst.msk [vmem:[%s150] sm:$0xf] %vm116, %v139
  %152 = vst.msk [vmem:[%s150 + $0x4] sm:$0xf] %vm116, %v141
  %153 = vst.msk [vmem:[%s150 + $0x8] sm:$0xf] %vm116, %v143
  %154 = vst.msk [vmem:[%s150 + $0xc] sm:$0xf] %vm116, %v145
  // Predicated region
  $region14: #{_lambda_.3} parent=0 // pred_check
    _
  $region15: #{_lambda_.3} parent=0 // pred_check_branch
    %156 = sbr.rel (0) target = $region17
  $region16: #{_lambda_.3} parent=0 // pred_region
    _
  $region17: #{_lambda_.3} parent=0 // pred_fallthru
    _
  // Predicated region
  $region18: #{_lambda_.3} parent=0 // pred_check
    _
  $region19: #{_lambda_.3} parent=0 // pred_check_branch
    %158 = sbr.rel (0) target = $region21
  $region20: #{_lambda_.3} parent=0 // pred_region
    _
  $region21: #{_lambda_.3} parent=0 // pred_fallthru
    _

// kernel: _lambda_.5
$region0: #{_lambda_.5}
  #allocation0 [shape = 'u32[]', space=smem, size = 0x4, offset = 0x4, fixed_abs, tag = 'smem constant byte address 0x4 - core index']
  #allocation1 [shape = 'u32[144,128]{1,0:T(1,128)}', space=vmem, size = 0x12000, scoped, tag = 'internal scratch']
  %s0 = inlined_call_operand.vmem [shape: f32[32,32], index: 0, kind: input, shape index: {}]
  %s1 = inlined_call_operand.vmem [shape: bf16[32,64], index: 1, kind: input, shape index: {}]
  %s2 = inlined_call_operand.vmem [shape: f32[1,64], index: 2, kind: input, shape index: {}]
  %s3 = inlined_call_operand.vmem [shape: bf16[64,32], index: 3, kind: input, shape index: {}]
  %s4 = inlined_call_operand.vmem [shape: f32[1,32], index: 4, kind: input, shape index: {}]
  %s5 = inlined_call_operand.vmem [shape: f32[1,32], index: 5, kind: input, shape index: {}]
  %s6 = inlined_call_operand.vmem [shape: f32[1,32], index: 6, kind: input, shape index: {}]
  %s7 = inlined_call_operand.vmem [shape: f32[32,32], index: 7, kind: output, shape index: {}]
  %s8 = sld [smem:[#allocation0]]
  $region38: #{_lambda_.5} parent=0
    _
  %s10 = ssub.s32 1, %s8
  %s11 = scalar_select 0, %s10, %s8
  // Predicated region
  $region2: #{_lambda_.5} parent=0 // pred_check
    _
  $region3: #{_lambda_.5} parent=0 // pred_check_branch
    %13 = sbr.rel (0) target = $region5
  $region4: #{_lambda_.5} parent=0 // pred_region
    _
  $region5: #{_lambda_.5} parent=0 // pred_fallthru
    _
  // Predicated region
  $region6: #{_lambda_.5} parent=0 // pred_check
    _
  $region7: #{_lambda_.5} parent=0 // pred_check_branch
    %15 = sbr.rel (0) target = $region9
  $region8: #{_lambda_.5} parent=0 // pred_region
    _
  $region9: #{_lambda_.5} parent=0 // pred_fallthru
    _
  // Predicated region
  $region10: #{_lambda_.5} parent=0 // pred_check
    _
  $region11: #{_lambda_.5} parent=0 // pred_check_branch
    %17 = sbr.rel (0) target = $region13
  $region12: #{_lambda_.5} parent=0 // pred_region
    _
  $region13: #{_lambda_.5} parent=0 // pred_fallthru
    _
  // Predicated region
  $region14: #{_lambda_.5} parent=0 // pred_check
    _
  $region15: #{_lambda_.5} parent=0 // pred_check_branch
    %19 = sbr.rel (0) target = $region17
  $region16: #{_lambda_.5} parent=0 // pred_region
    _
  $region17: #{_lambda_.5} parent=0 // pred_fallthru
    _
  // Predicated region
  $region18: #{_lambda_.5} parent=0 // pred_check
    _
  $region19: #{_lambda_.5} parent=0 // pred_check_branch
    %21 = sbr.rel (0) target = $region21
  $region20: #{_lambda_.5} parent=0 // pred_region
    _
  $region21: #{_lambda_.5} parent=0 // pred_fallthru
    _
  // Predicated region
  $region22: #{_lambda_.5} parent=0 // pred_check
    _
  $region23: #{_lambda_.5} parent=0 // pred_check_branch
    %23 = sbr.rel (0) target = $region25
  $region24: #{_lambda_.5} parent=0 // pred_region
    _
  $region25: #{_lambda_.5} parent=0 // pred_fallthru
    _
  // Predicated region
  $region26: #{_lambda_.5} parent=0 // pred_check
    _
  $region27: #{_lambda_.5} parent=0 // pred_check_branch
    %25 = sbr.rel (0) target = $region29
  $region28: #{_lambda_.5} parent=0 // pred_region
    _
  $region29: #{_lambda_.5} parent=0 // pred_fallthru
    _
  %v27 = vld [vmem:[%s0] sm:$0xff]
  %v28 = vld [vmem:[%s0 + $0x8] sm:$0xff]
  %v29 = vld [vmem:[%s0 + $0x10] sm:$0xff]
  %v30 = vld [vmem:[%s0 + $0x18] sm:$0xff]
  %v31 = vpack.c.bf16 %v28, %v27
  %v32 = vpack.c.bf16 %v30, %v29
  %v33 = vld [vmem:[%s1] sm:$0xf]
  %v34 = vld [vmem:[%s1 + $0x4] sm:$0xf]
  %v35 = vld [vmem:[%s1 + $0x8] sm:$0xf]
  %v36 = vld [vmem:[%s1 + $0xc] sm:$0xf]
  %v37 = vld [vmem:[%s2] sm:$0x1]
  %v39 = vlaneseq
  %v40 = vshrl.u32 %v39, 7
  %v41 = vsub.s32 0, %v40
  %v42 = vrot.slane %v37, %v41
  %v48 = vunpack.c.l.b16 %v33
  %v49 = vunpack.c.l.b16 %v34
  %v50 = vunpack.c.l.b16 %v35
  %v51 = vunpack.c.l.b16 %v36
  %v52 = vpack.c.b16 %v49, %v48
  %v53 = vpack.c.b16 %v51, %v50
  %vm56 = vcmask 261120
  %v58 = vsel %vm56, %v31, 0
  %v61 = vsel %vm56, %v32, 0
  %63 = vmatprep.subr.bf16.mxu0 0
  %64 = vmatpush1.bf16.msra.mxu0 %v52
  %65 = vmatprep.subr.bf16.mxu0 0
  %66 = vmatpush1.bf16.msra.mxu0 %v53
  %67 = vmatprep.subr.bf16.mxu0 0
  %68 = vmatpush1.bf16.msra.mxu0 0
  %69 = vmatprep.subr.bf16.mxu0 0
  %70 = vmatpush1.bf16.msra.mxu0 0
  %71 = vmatprep.subr.bf16.mxu0 0
  %72 = vmatpush1.bf16.msra.mxu0 0
  %73 = vmatprep.subr.bf16.mxu0 0
  %74 = vmatpush1.bf16.msra.mxu0 0
  %75 = vmatprep.subr.bf16.mxu0 0
  %76 = vmatpush1.bf16.msra.mxu0 0
  %77 = vmatprep.subr.bf16.mxu0 0
  %78 = vmatpush1.bf16.msra.mxu0 0
  %79 = vmatprep.subr.bf16.mxu0 0
  %80 = vmatpush1.bf16.msra.mxu0 0
  %81 = vmatprep.subr.bf16.mxu0 0
  %82 = vmatpush1.bf16.msra.mxu0 0
  %83 = vmatprep.subr.bf16.mxu0 0
  %84 = vmatpush1.bf16.msra.mxu0 0
  %85 = vmatprep.subr.bf16.mxu0 0
  %86 = vmatpush1.bf16.msra.mxu0 0
  %87 = vmatprep.subr.bf16.mxu0 0
  %88 = vmatpush1.bf16.msra.mxu0 0
  %89 = vmatprep.subr.bf16.mxu0 0
  %90 = vmatpush1.bf16.msra.mxu0 0
  %91 = vmatprep.subr.bf16.mxu0 0
  %92 = vmatpush1.bf16.msra.mxu0 0
  %93 = vmatprep.subr.bf16.mxu0 0
  %94 = vmatpush1.bf16.msra.mxu0 0
  %95 = vmatprep.mubr.bf16.mxu0 0
  %96 = vmatmul.mubr.bf16.gmra.mrb[0].mxu0 %v58
  %v97 = vpop.f32.mrb[0].mxu0
  %v98 = vadd.f32 %v42, %v97
  %v99 = vpop.f32.mrb[0].mxu0
  %v100 = vpop.f32.mrb[0].mxu0
  %v101 = vadd.f32 %v42, %v100
  %v102 = vpop.f32.mrb[0].mxu0
  %103 = vmatprep.mubr.bf16.mxu0 0
  %104 = vmatmul.mubr.bf16.gmra.mrb[0].mxu0 %v61
  %v105 = vpop.f32.mrb[0].mxu0
  %v106 = vadd.f32 %v42, %v105
  %v107 = vpop.f32.mrb[0].mxu0
  %v108 = vpop.f32.mrb[0].mxu0
  %v109 = vadd.f32 %v42, %v108
  %v110 = vpop.f32.mrb[0].mxu0
  %111 = vdwg.mxu0
  %v112 = vmax.f32 %v98, 0.0
  %v113 = vmax.f32 %v101, 0.0
  %v114 = vmax.f32 %v106, 0.0
  %v115 = vmax.f32 %v109, 0.0
  %v116 = vpack.c.bf16 %v113, %v112
  %v117 = vpack.c.bf16 %v115, %v114
  %v118 = vld [vmem:[%s3] sm:$0xf]
  %v119 = vld [vmem:[%s3 + $0x4] sm:$0xf]
  %v120 = vld [vmem:[%s3 + $0x8] sm:$0xf]
  %v121 = vld [vmem:[%s3 + $0xc] sm:$0xf]
  %v122 = vld [vmem:[%s3 + $0x10] sm:$0xf]
  %v123 = vld [vmem:[%s3 + $0x14] sm:$0xf]
  %v124 = vld [vmem:[%s3 + $0x18] sm:$0xf]
  %v125 = vld [vmem:[%s3 + $0x1c] sm:$0xf]
  %v126 = vld [vmem:[%s4] sm:$0x1]
  %v128 = vlaneseq
  %v129 = vshrl.u32 %v128, 7
  %v130 = vsub.s32 0, %v129
  %v131 = vrot.slane %v126, %v130
  %v141 = vunpack.c.l.b16 %v118
  %v142 = vunpack.c.l.b16 %v119
  %v143 = vunpack.c.l.b16 %v120
  %v144 = vunpack.c.l.b16 %v121
  %v145 = vunpack.c.l.b16 %v122
  %v146 = vunpack.c.l.b16 %v123
  %v147 = vunpack.c.l.b16 %v124
  %v148 = vunpack.c.l.b16 %v125
  %v149 = vpack.c.b16 %v142, %v141
  %v150 = vpack.c.b16 %v144, %v143
  %v151 = vpack.c.b16 %v146, %v145
  %v152 = vpack.c.b16 %v148, %v147
  %vm157 = vcmask 523264
  %v159 = vsel %vm157, %v116, 0
  %v162 = vsel %vm157, %v117, 0
  %164 = vmatprep.subr.bf16.mxu0 0
  %165 = vmatpush1.bf16.msra.mxu0 %v149
  %166 = vmatprep.subr.bf16.mxu0 0
  %167 = vmatpush1.bf16.msra.mxu0 %v150
  %168 = vmatprep.subr.bf16.mxu0 0
  %169 = vmatpush1.bf16.msra.mxu0 %v151
  %170 = vmatprep.subr.bf16.mxu0 0
  %171 = vmatpush1.bf16.msra.mxu0 %v152
  %172 = vmatprep.subr.bf16.mxu0 0
  %173 = vmatpush1.bf16.msra.mxu0 0
  %174 = vmatprep.subr.bf16.mxu0 0
  %175 = vmatpush1.bf16.msra.mxu0 0
  %176 = vmatprep.subr.bf16.mxu0 0
  %177 = vmatpush1.bf16.msra.mxu0 0
  %178 = vmatprep.subr.bf16.mxu0 0
  %179 = vmatpush1.bf16.msra.mxu0 0
  %180 = vmatprep.subr.bf16.mxu0 0
  %181 = vmatpush1.bf16.msra.mxu0 0
  %182 = vmatprep.subr.bf16.mxu0 0
  %183 = vmatpush1.bf16.msra.mxu0 0
  %184 = vmatprep.subr.bf16.mxu0 0
  %185 = vmatpush1.bf16.msra.mxu0 0
  %186 = vmatprep.subr.bf16.mxu0 0
  %187 = vmatpush1.bf16.msra.mxu0 0
  %188 = vmatprep.subr.bf16.mxu0 0
  %189 = vmatpush1.bf16.msra.mxu0 0
  %190 = vmatprep.subr.bf16.mxu0 0
  %191 = vmatpush1.bf16.msra.mxu0 0
  %192 = vmatprep.subr.bf16.mxu0 0
  %193 = vmatpush1.bf16.msra.mxu0 0
  %194 = vmatprep.subr.bf16.mxu0 0
  %195 = vmatpush1.bf16.msra.mxu0 0
  %196 = vmatprep.mubr.bf16.mxu0 0
  %197 = vmatmul.mubr.bf16.gmra.mrb[0].mxu0 %v159
  %v198 = vpop.f32.mrb[0].mxu0
  %v199 = vadd.f32 %v131, %v198
  %v200 = vpop.f32.mrb[0].mxu0
  %v201 = vpop.f32.mrb[0].mxu0
  %v202 = vadd.f32 %v131, %v201
  %v203 = vpop.f32.mrb[0].mxu0
  %204 = vmatprep.mubr.bf16.mxu0 0
  %205 = vmatmul.mubr.bf16.gmra.mrb[0].mxu0 %v162
  %v206 = vpop.f32.mrb[0].mxu0
  %v207 = vadd.f32 %v131, %v206
  %v208 = vpop.f32.mrb[0].mxu0
  %v209 = vpop.f32.mrb[0].mxu0
  %v210 = vadd.f32 %v131, %v209
  %v211 = vpop.f32.mrb[0].mxu0
  %212 = vdwg.mxu0
  %v213 = vadd.f32 %v199, %v27
  %v214 = vadd.f32 %v202, %v28
  %v215 = vadd.f32 %v207, %v29
  %v216 = vadd.f32 %v210, %v30
  %v217 = vsel %vm56, %v213, 0.0
  %218 = vadd.xlane.f32.xlu0 %v217
  %v219 = vpop.xlane.xlu0 %218
  %v220 = vsel %vm56, %v214, 0.0
  %221 = vadd.xlane.f32.xlu0 %v220
  %v222 = vpop.xlane.xlu0 %221
  %v223 = vsel %vm56, %v215, 0.0
  %224 = vadd.xlane.f32.xlu0 %v223
  %v225 = vpop.xlane.xlu0 %224
  %v226 = vsel %vm56, %v216, 0.0
  %227 = vadd.xlane.f32.xlu0 %v226
  %v228 = vpop.xlane.xlu0 %227
  %v229 = vrcp.pop 32.0
  %v230 = vmul.f32 %v219, %v229
  %v231 = vmul.f32 %v222, %v229
  %v232 = vmul.f32 %v225, %v229
  %v233 = vmul.f32 %v228, %v229
  %v234 = vsub.f32 %v213, %v230
  %v235 = vsub.f32 %v214, %v231
  %v236 = vsub.f32 %v215, %v232
  %v237 = vsub.f32 %v216, %v233
  %v238 = vmul.f32 %v234, %v234
  %v239 = vmul.f32 %v235, %v235
  %v240 = vmul.f32 %v236, %v236
  %v241 = vmul.f32 %v237, %v237
  %v242 = vsel %vm56, %v238, 0.0
  %243 = vadd.xlane.f32.xlu0 %v242
  %v244 = vpop.xlane.xlu0 %243
  %v245 = vsel %vm56, %v239, 0.0
  %246 = vadd.xlane.f32.xlu0 %v245
  %v247 = vpop.xlane.xlu0 %246
  %v248 = vsel %vm56, %v240, 0.0
  %249 = vadd.xlane.f32.xlu0 %v248
  %v250 = vpop.xlane.xlu0 %249
  %v251 = vsel %vm56, %v241, 0.0
  %252 = vadd.xlane.f32.xlu0 %v251
  %v253 = vpop.xlane.xlu0 %252
  %v254 = vmul.f32 %v244, %v229
  %v255 = vmul.f32 %v247, %v229
  %v256 = vmul.f32 %v250, %v229
  %v257 = vmul.f32 %v253, %v229
  %v258 = vadd.f32 %v254, 1e-05
  %v259 = vadd.f32 %v255, 1e-05
  %v260 = vadd.f32 %v256, 1e-05
  %v261 = vadd.f32 %v257, 1e-05
  %v262 = vrsqrt.pop %v258
  %v263 = vrsqrt.pop %v259
  %v264 = vrsqrt.pop %v260
  %v265 = vrsqrt.pop %v261
  %v266 = vmul.f32 %v234, %v262
  %v267 = vmul.f32 %v235, %v263
  %v268 = vmul.f32 %v236, %v264
  %v269 = vmul.f32 %v237, %v265
  %v270 = vld [vmem:[%s5] sm:$0x1]
  %v272 = vlaneseq
  %v273 = vshrl.u32 %v272, 7
  %v274 = vsub.s32 0, %v273
  %v275 = vrot.slane %v270, %v274
  %v277 = vmul.f32 %v266, %v275
  %v278 = vmul.f32 %v267, %v275
  %v279 = vmul.f32 %v268, %v275
  %v280 = vmul.f32 %v269, %v275
  %v281 = vld [vmem:[%s6] sm:$0x1]
  %v283 = vlaneseq
  %v284 = vshrl.u32 %v283, 7
  %v285 = vsub.s32 0, %v284
  %v286 = vrot.slane %v281, %v285
  %v288 = vadd.f32 %v277, %v286
  %v289 = vadd.f32 %v278, %v286
  %v290 = vadd.f32 %v279, %v286
  %v291 = vadd.f32 %v280, %v286
  %292 = vst.msk [vmem:[%s7] sm:$0xff] %vm56, %v288
  %293 = vst.msk [vmem:[%s7 + $0x8] sm:$0xff] %vm56, %v289
  %294 = vst.msk [vmem:[%s7 + $0x10] sm:$0xff] %vm56, %v290
  %295 = vst.msk [vmem:[%s7 + $0x18] sm:$0xff] %vm56, %v291
  // Predicated region
  $region30: #{_lambda_.5} parent=0 // pred_check
    _
  $region31: #{_lambda_.5} parent=0 // pred_check_branch
    %297 = sbr.rel (0) target = $region33
  $region32: #{_lambda_.5} parent=0 // pred_region
    _
  $region33: #{_lambda_.5} parent=0 // pred_fallthru
    _
  // Predicated region
  $region34: #{_lambda_.5} parent=0 // pred_check
    _
  $region35: #{_lambda_.5} parent=0 // pred_check_branch
    %299 = sbr.rel (0) target = $region37
  $region36: #{_lambda_.5} parent=0 // pred_region
    _
  $region37: #{_lambda_.5} parent=0 // pred_fallthru
    _

// kernel: _lambda_.4
$region0: #{_lambda_.4}
  #allocation0 [shape = 'u32[]', space=smem, size = 0x4, offset = 0x4, fixed_abs, tag = 'smem constant byte address 0x4 - core index']
  #allocation1 [shape = 'u32[144,128]{1,0:T(1,128)}', space=vmem, size = 0x12000, scoped, tag = 'internal scratch']
  %s0 = inlined_call_operand.vmem [shape: bf16[3,2,2,8,32], index: 0, kind: input, shape index: {}, may-alias: {0,1,2}]
  %s1 = inlined_call_operand.vmem [shape: bf16[3,2,2,8,32], index: 1, kind: input, shape index: {}, may-alias: {0,1,2}]
  %s2 = inlined_call_operand.vmem [shape: bf16[3,2,2,8,32], index: 2, kind: input, shape index: {}, may-alias: {0,1,2}]
  %s3 = inlined_call_operand.vmem [shape: s32[2,2,1,8], index: 3, kind: input, shape index: {}]
  %s4 = inlined_call_operand.vmem [shape: f32[2,2,8,32], index: 4, kind: input, shape index: {}]
  %s5 = inlined_call_operand.vmem [shape: bf16[32,32], index: 5, kind: input, shape index: {}]
  %s6 = inlined_call_operand.vmem [shape: f32[1,32], index: 6, kind: input, shape index: {}]
  %s7 = inlined_call_operand.vmem [shape: f32[1,32], index: 7, kind: input, shape index: {}]
  %s8 = inlined_call_operand.vmem [shape: f32[1,32], index: 8, kind: input, shape index: {}]
  %s9 = inlined_call_operand.vmem [shape: f32[2,2,8,32], index: 9, kind: output, shape index: {}]
  %s10 = sld [smem:[#allocation0]]
  $region185: #{_lambda_.4} parent=0
    _
  %s12 = ssub.s32 1, %s10
  %s13 = scalar_select 0, %s12, %s10
  $region1: #{_lambda_.4} parent=0
    #allocation2 [shape = 'u8[8192]{0}', space=vmem, size = 0x2000, scoped, tag = 'input window, operand 1']
    #allocation3 [shape = 'u8[8192]{0}', space=vmem, size = 0x2000, scoped, tag = 'input window, operand 2']
    #allocation4 [shape = 'u8[2048]{0}', space=vmem, size = 0x800, scoped, tag = 'input window, operand 3']
    loop: start=0, step=1, limit=6
    $region2: #{_lambda_.4} parent=1 // loop_pre_header
      _
    $region3: #{_lambda_.4} parent=1 // loop_header
      %s15 = sphi 0, %s19
      %p16 = scmp.ge.s32.totalorder %s15, 6
      %s22 = sphi 0, %s34
      %s23 = sphi 0, %s30
      %s24 = sphi 0, %s22
      %s25 = sphi 0, %s23
      %s26 = sphi 0, %s24
      %s27 = sphi 0, %s25
      %s39 = sphi 0, %s41
      %s42 = sphi 0, %s39
      %s43 = sphi 0, %s42
      %s59 = sphi 0, %s43
      %s65 = sphi 0, %s67
      %s68 = sphi 0, %s65
      %s69 = sphi 0, %s68
      %s85 = sphi 0, %s69
      %s91 = sphi 0, %s93
      %s94 = sphi 0, %s91
      %s95 = sphi 0, %s94
      %s111 = sphi 0, %s95
      %s117 = sphi 0, %s119
      %s120 = sphi 0, %s117
      %s121 = sphi 0, %s120
      %s137 = sphi 0, %s121
      %s145 = sphi 0, %s147
      %s148 = sphi 0, %s145
      %s149 = sphi 0, %s148
      %s165 = sphi 0, %s149
      %s169 = sphi 0, %s169
      %s171 = sphi 0, %s169
      %s172 = sphi 0, %s171
      %s186 = sphi 0, %s172
      %s190 = sphi 0, %s190
      %s192 = sphi 0, %s190
      %s193 = sphi 0, %s192
      %s207 = sphi 0, %s193
      %s211 = sphi 0, %s211
      %s213 = sphi 0, %s211
      %s214 = sphi 0, %s213
      %s228 = sphi 0, %s214
      %s232 = sphi 0, %s232
      %s234 = sphi 0, %s232
      %s235 = sphi 0, %s234
      %s249 = sphi 0, %s235
      %s257 = sphi 0, %s259
      %s260 = sphi 0, %s257
      %s261 = sphi 0, %s260
      %s277 = sphi 0, %s261
    $region4: #{_lambda_.4} parent=1 // loop_header_branch
      %18 = sbr.rel (%p16) target = $region8
    $region5: #{_lambda_.4} parent=1 // loop_body
      %s20 = ssub.s32 %s15, 1
      %s21 = ssub.s32 %s15, 2
      %s28 = sadd.s32 1, %s23
      %p29 = scmp.ge.s32.totalorder %s28, 2
      %s30 = scalar_select %p29, 0, %s28
      %s31 = sadd.s32 1, %s22
      %s32 = scalar_select %p29, %s31, %s22
      %p33 = scmp.ge.s32.totalorder %s32, 2
      %s34 = scalar_select %p33, 0, %s32
      %s35 = ssub.s32 %s23, %s30
      %s36 = ssub.s32 %s22, %s34
      %s37 = sor.u32 %s35, %s36
      %p38 = scmp.eq.s32.totalorder %s37, 0
      %s40 = sadd.s32 %s39, 1
      %s41 = scalar_select %p38, %s39, %s40
      %p44 = pneg %p38
      %p45 = scmp.eq.s32.totalorder %s15, 3
      %p46 = por %p44, %p45
      %p47 = scmp.ne.s32.totalorder %s39, %s42
      %p48 = scmp.eq.s32.totalorder %s15, 0
      %p49 = por %p47, %p48
      %p50 = scmp.ne.s32.totalorder %s39, %s42
      %p51 = scmp.eq.s32.totalorder %s20, 3
      %p52 = por %p50, %p51
      %p53 = scmp.ne.s32.totalorder %s42, %s43
      %p54 = scmp.eq.s32.totalorder %s20, 0
      %p55 = por %p53, %p54
      %p56 = scmp.ne.s32.totalorder %s42, %s43
      %p57 = scmp.eq.s32.totalorder %s21, 3
      %p58 = por %p56, %p57
      %p60 = scmp.ne.s32.totalorder %s43, %s59
      %p61 = scmp.eq.s32.totalorder %s21, 0
      %p62 = por %p60, %p61
      %s63 = ssub.s32 %s22, %s34
      %p64 = scmp.eq.s32.totalorder %s63, 0
      %s66 = sadd.s32 %s65, 1
      %s67 = scalar_select %p64, %s65, %s66
      %p70 = pneg %p64
      %p71 = scmp.eq.s32.totalorder %s15, 3
      %p72 = por %p70, %p71
      %p73 = scmp.ne.s32.totalorder %s65, %s68
      %p74 = scmp.eq.s32.totalorder %s15, 0
      %p75 = por %p73, %p74
      %p76 = scmp.ne.s32.totalorder %s65, %s68
      %p77 = scmp.eq.s32.totalorder %s20, 3
      %p78 = por %p76, %p77
      %p79 = scmp.ne.s32.totalorder %s68, %s69
      %p80 = scmp.eq.s32.totalorder %s20, 0
      %p81 = por %p79, %p80
      %p82 = scmp.ne.s32.totalorder %s68, %s69
      %p83 = scmp.eq.s32.totalorder %s21, 3
      %p84 = por %p82, %p83
      %p86 = scmp.ne.s32.totalorder %s69, %s85
      %p87 = scmp.eq.s32.totalorder %s21, 0
      %p88 = por %p86, %p87
      %s89 = ssub.s32 %s22, %s34
      %p90 = scmp.eq.s32.totalorder %s89, 0
      %s92 = sadd.s32 %s91, 1
      %s93 = scalar_select %p90, %s91, %s92
      %p96 = pneg %p90
      %p97 = scmp.eq.s32.totalorder %s15, 3
      %p98 = por %p96, %p97
      %p99 = scmp.ne.s32.totalorder %s91, %s94
      %p100 = scmp.eq.s32.totalorder %s15, 0
      %p101 = por %p99, %p100
      %p102 = scmp.ne.s32.totalorder %s91, %s94
      %p103 = scmp.eq.s32.totalorder %s20, 3
      %p104 = por %p102, %p103
      %p105 = scmp.ne.s32.totalorder %s94, %s95
      %p106 = scmp.eq.s32.totalorder %s20, 0
      %p107 = por %p105, %p106
      %p108 = scmp.ne.s32.totalorder %s94, %s95
      %p109 = scmp.eq.s32.totalorder %s21, 3
      %p110 = por %p108, %p109
      %p112 = scmp.ne.s32.totalorder %s95, %s111
      %p113 = scmp.eq.s32.totalorder %s21, 0
      %p114 = por %p112, %p113
      %s115 = ssub.s32 %s22, %s34
      %p116 = scmp.eq.s32.totalorder %s115, 0
      %s118 = sadd.s32 %s117, 1
      %s119 = scalar_select %p116, %s117, %s118
      %p122 = pneg %p116
      %p123 = scmp.eq.s32.totalorder %s15, 3
      %p124 = por %p122, %p123
      %p125 = scmp.ne.s32.totalorder %s117, %s120
      %p126 = scmp.eq.s32.totalorder %s15, 0
      %p127 = por %p125, %p126
      %p128 = scmp.ne.s32.totalorder %s117, %s120
      %p129 = scmp.eq.s32.totalorder %s20, 3
      %p130 = por %p128, %p129
      %p131 = scmp.ne.s32.totalorder %s120, %s121
      %p132 = scmp.eq.s32.totalorder %s20, 0
      %p133 = por %p131, %p132
      %p134 = scmp.ne.s32.totalorder %s120, %s121
      %p135 = scmp.eq.s32.totalorder %s21, 3
      %p136 = por %p134, %p135
      %p138 = scmp.ne.s32.totalorder %s121, %s137
      %p139 = scmp.eq.s32.totalorder %s21, 0
      %p140 = por %p138, %p139
      %s141 = ssub.s32 %s23, %s30
      %s142 = ssub.s32 %s22, %s34
      %s143 = sor.u32 %s141, %s142
      %p144 = scmp.eq.s32.totalorder %s143, 0
      %s146 = sadd.s32 %s145, 1
      %s147 = scalar_select %p144, %s145, %s146
      %p150 = pneg %p144
      %p151 = scmp.eq.s32.totalorder %s15, 3
      %p152 = por %p150, %p151
      %p153 = scmp.ne.s32.totalorder %s145, %s148
      %p154 = scmp.eq.s32.totalorder %s15, 0
      %p155 = por %p153, %p154
      %p156 = scmp.ne.s32.totalorder %s145, %s148
      %p157 = scmp.eq.s32.totalorder %s20, 3
      %p158 = por %p156, %p157
      %p159 = scmp.ne.s32.totalorder %s148, %s149
      %p160 = scmp.eq.s32.totalorder %s20, 0
      %p161 = por %p159, %p160
      %p162 = scmp.ne.s32.totalorder %s148, %s149
      %p163 = scmp.eq.s32.totalorder %s21, 3
      %p164 = por %p162, %p163
      %p166 = scmp.ne.s32.totalorder %s149, %s165
      %p167 = scmp.eq.s32.totalorder %s21, 0
      %p168 = por %p166, %p167
      %s170 = sadd.s32 %s169, 1
      %p173 = scmp.eq.s32.totalorder %s15, 3
      %p174 = scmp.ne.s32.totalorder %s169, %s171
      %p175 = scmp.eq.s32.totalorder %s15, 0
      %p176 = por %p174, %p175
      %p177 = scmp.ne.s32.totalorder %s169, %s171
      %p178 = scmp.eq.s32.totalorder %s20, 3
      %p179 = por %p177, %p178
      %p180 = scmp.ne.s32.totalorder %s171, %s172
      %p181 = scmp.eq.s32.totalorder %s20, 0
      %p182 = por %p180, %p181
      %p183 = scmp.ne.s32.totalorder %s171, %s172
      %p184 = scmp.eq.s32.totalorder %s21, 3
      %p185 = por %p183, %p184
      %p187 = scmp.ne.s32.totalorder %s172, %s186
      %p188 = scmp.eq.s32.totalorder %s21, 0
      %p189 = por %p187, %p188
      %s191 = sadd.s32 %s190, 1
      %p194 = scmp.eq.s32.totalorder %s15, 3
      %p195 = scmp.ne.s32.totalorder %s190, %s192
      %p196 = scmp.eq.s32.totalorder %s15, 0
      %p197 = por %p195, %p196
      %p198 = scmp.ne.s32.totalorder %s190, %s192
      %p199 = scmp.eq.s32.totalorder %s20, 3
      %p200 = por %p198, %p199
      %p201 = scmp.ne.s32.totalorder %s192, %s193
      %p202 = scmp.eq.s32.totalorder %s20, 0
      %p203 = por %p201, %p202
      %p204 = scmp.ne.s32.totalorder %s192, %s193
      %p205 = scmp.eq.s32.totalorder %s21, 3
      %p206 = por %p204, %p205
      %p208 = scmp.ne.s32.totalorder %s193, %s207
      %p209 = scmp.eq.s32.totalorder %s21, 0
      %p210 = por %p208, %p209
      %s212 = sadd.s32 %s211, 1
      %p215 = scmp.eq.s32.totalorder %s15, 3
      %p216 = scmp.ne.s32.totalorder %s211, %s213
      %p217 = scmp.eq.s32.totalorder %s15, 0
      %p218 = por %p216, %p217
      %p219 = scmp.ne.s32.totalorder %s211, %s213
      %p220 = scmp.eq.s32.totalorder %s20, 3
      %p221 = por %p219, %p220
      %p222 = scmp.ne.s32.totalorder %s213, %s214
      %p223 = scmp.eq.s32.totalorder %s20, 0
      %p224 = por %p222, %p223
      %p225 = scmp.ne.s32.totalorder %s213, %s214
      %p226 = scmp.eq.s32.totalorder %s21, 3
      %p227 = por %p225, %p226
      %p229 = scmp.ne.s32.totalorder %s214, %s228
      %p230 = scmp.eq.s32.totalorder %s21, 0
      %p231 = por %p229, %p230
      %s233 = sadd.s32 %s232, 1
      %p236 = scmp.eq.s32.totalorder %s15, 3
      %p237 = scmp.ne.s32.totalorder %s232, %s234
      %p238 = scmp.eq.s32.totalorder %s15, 0
      %p239 = por %p237, %p238
      %p240 = scmp.ne.s32.totalorder %s232, %s234
      %p241 = scmp.eq.s32.totalorder %s20, 3
      %p242 = por %p240, %p241
      %p243 = scmp.ne.s32.totalorder %s234, %s235
      %p244 = scmp.eq.s32.totalorder %s20, 0
      %p245 = por %p243, %p244
      %p246 = scmp.ne.s32.totalorder %s234, %s235
      %p247 = scmp.eq.s32.totalorder %s21, 3
      %p248 = por %p246, %p247
      %p250 = scmp.ne.s32.totalorder %s235, %s249
      %p251 = scmp.eq.s32.totalorder %s21, 0
      %p252 = por %p250, %p251
      %s253 = ssub.s32 %s23, %s30
      %s254 = ssub.s32 %s22, %s34
      %s255 = sor.u32 %s253, %s254
      %p256 = scmp.eq.s32.totalorder %s255, 0
      %s258 = sadd.s32 %s257, 1
      %s259 = scalar_select %p256, %s257, %s258
      %p262 = pneg %p256
      %p263 = scmp.eq.s32.totalorder %s15, 3
      %p264 = por %p262, %p263
      %p265 = scmp.ne.s32.totalorder %s257, %s260
      %p266 = scmp.eq.s32.totalorder %s15, 0
      %p267 = por %p265, %p266
      %p268 = scmp.ne.s32.totalorder %s257, %s260
      %p269 = scmp.eq.s32.totalorder %s20, 3
      %p270 = por %p268, %p269
      %p271 = scmp.ne.s32.totalorder %s260, %s261
      %p272 = scmp.eq.s32.totalorder %s20, 0
      %p273 = por %p271, %p272
      %p274 = scmp.ne.s32.totalorder %s260, %s261
      %p275 = scmp.eq.s32.totalorder %s21, 3
      %p276 = por %p274, %p275
      %p278 = scmp.ne.s32.totalorder %s261, %s277
      %p279 = scmp.eq.s32.totalorder %s21, 0
      %p280 = por %p278, %p279
      %p281 = scmp.le.s32.totalorder 1, %s15
      %p282 = scmp.lt.s32.totalorder %s15, 5
      %p283 = pnand %p281, %p282
      %p284 = pneg %p283
      // Predicated region
      $region9: #{_lambda_.4} parent=5 // pred_check
        _
      $region10: #{_lambda_.4} parent=5 // pred_check_branch
        %286 = sbr.rel (%p283) target = $region12
      $region11: #{_lambda_.4} parent=5 // pred_region
        %s287 = ssub.s32 %s15, 1
        // Predicated region
        $region13: #{_lambda_.4} parent=11 // pred_check
          %p288 = pneg %p182
        $region14: #{_lambda_.4} parent=11 // pred_check_branch
          %290 = sbr.rel (%p288) target = $region16
        $region15: #{_lambda_.4} parent=11 // pred_region
          _
        $region16: #{_lambda_.4} parent=11 // pred_fallthru
          _
        // Predicated region
        $region17: #{_lambda_.4} parent=11 // pred_check
          %p291 = pneg %p203
        $region18: #{_lambda_.4} parent=11 // pred_check_branch
          %293 = sbr.rel (%p291) target = $region20
        $region19: #{_lambda_.4} parent=11 // pred_region
          _
        $region20: #{_lambda_.4} parent=11 // pred_fallthru
          _
        // Predicated region
        $region21: #{_lambda_.4} parent=11 // pred_check
          %p294 = pneg %p224
        $region22: #{_lambda_.4} parent=11 // pred_check_branch
          %296 = sbr.rel (%p294) target = $region24
        $region23: #{_lambda_.4} parent=11 // pred_region
          _
        $region24: #{_lambda_.4} parent=11 // pred_fallthru
          _
        // Predicated region
        $region25: #{_lambda_.4} parent=11 // pred_check
          %p297 = pneg %p245
        $region26: #{_lambda_.4} parent=11 // pred_check_branch
          %299 = sbr.rel (%p297) target = $region28
        $region27: #{_lambda_.4} parent=11 // pred_region
          _
        $region28: #{_lambda_.4} parent=11 // pred_fallthru
          _
      $region12: #{_lambda_.4} parent=5 // pred_fallthru
        _
      %p300 = scmp.lt.s32.totalorder %s15, 4
      // Predicated region
      $region29: #{_lambda_.4} parent=5 // pred_check
        %p301 = pneg %p300
      $region30: #{_lambda_.4} parent=5 // pred_check_branch
        %303 = sbr.rel (%p301) target = $region32
      $region31: #{_lambda_.4} parent=5 // pred_region
        // Predicated region
        $region33: #{_lambda_.4} parent=31 // pred_check
          %p304 = pneg %p49
        $region34: #{_lambda_.4} parent=31 // pred_check_branch
          %306 = sbr.rel (%p304) target = $region36
        $region35: #{_lambda_.4} parent=31 // pred_region
          %p307 = scmp.lt.s32.totalorder %s23, 1
          %s308 = scalar_select %p307, %s23, 1
          %p309 = scmp.lt.s32.totalorder %s22, 1
          %s310 = scalar_select %p309, %s22, 1
          %s311 = smul.addr %s308, 2
          %s312 = sadd.s32 %s310, %s311
          %s313 = smul.addr %s312, 4
          %s314 = scalar_lea.vmem %s0, %s313
        $region36: #{_lambda_.4} parent=31 // pred_fallthru
          _
        // Predicated region
        $region37: #{_lambda_.4} parent=31 // pred_check
          %p315 = pneg %p75
        $region38: #{_lambda_.4} parent=31 // pred_check_branch
          %317 = sbr.rel (%p315) target = $region40
        $region39: #{_lambda_.4} parent=31 // pred_region
          %s318 = sand.u32 %s65, 1
          %s319 = sand.u32 %s65, 1
          %s320 = smul.addr %s319, 8
          %s321 = scalar_lea.vmem [#allocation2], %s320
          %s322 = sadd.s32 %s22, 4
          %s323 = smul.addr %s322, 4
          %s324 = scalar_lea.vmem %s1, %s323
          // Predicated region
          $region41: #{_lambda_.4} parent=39 // pred_check
            _
          $region42: #{_lambda_.4} parent=39 // pred_check_branch
            %326 = sbr.rel (0) target = $region44
          $region43: #{_lambda_.4} parent=39 // pred_region
            // Predicated region
            $region45: #{_lambda_.4} parent=43 // pred_check
              _
            $region46: #{_lambda_.4} parent=43 // pred_check_branch
              %328 = sbr.rel target = $region48
            $region47: #{_lambda_.4} parent=43 // pred_region
              // Predicated region
              $region60: #{_lambda_.4} parent=47 // pred_check
                _
              $region61: #{_lambda_.4} parent=47 // pred_check_branch
                %345 = sbr.rel (0) target = $region63
              $region62: #{_lambda_.4} parent=47 // pred_region
                loop: start=0, step=1, limit=1
                $region64: #{_lambda_.4} parent=62 // loop_pre_header
                  _
                $region65: #{_lambda_.4} parent=62 // loop_header
                  %s347 = sphi 0, %s351
                  %p348 = scmp.ge.s32.totalorder %s347, 1
                  %s352 = sphi %s324, %s324
                  %s353 = sphi %s321, %s321
                $region66: #{_lambda_.4} parent=62 // loop_header_branch
                  %350 = sbr.rel (%p348) target = $region70
                $region67: #{_lambda_.4} parent=62 // loop_body
                  _
                $region68: #{_lambda_.4} parent=62 // loop_footer
                  %s351 = sadd.s32 1, %s347
                $region69: #{_lambda_.4} parent=62 // loop_footer_branch
                  %346 = sbr.rel target = $region65
                $region70: #{_lambda_.4} parent=62 // loop_exit
                  _
                loop: start=0, step=1, limit=1
                $region71: #{_lambda_.4} parent=62 // loop_pre_header
                  _
                $region72: #{_lambda_.4} parent=62 // loop_header
                  %s356 = sphi 0, %s360
                  %p357 = scmp.ge.s32.totalorder %s356, 1
                  %s361 = sphi %s324, %s324
                  %s362 = sphi %s321, %s321
                $region73: #{_lambda_.4} parent=62 // loop_header_branch
                  %359 = sbr.rel (%p357) target = $region77
                $region74: #{_lambda_.4} parent=62 // loop_body
                  %v363 = vld [vmem:[%s361] sm:$0xf]
                  %364 = vst [vmem:[%s362] sm:$0xf] %v363
                  %v365 = vld [vmem:[%s361 + $0x8] sm:$0xf]
                  %366 = vst [vmem:[%s362 + $0x4] sm:$0xf] %v365
                $region75: #{_lambda_.4} parent=62 // loop_footer
                  %s360 = sadd.s32 1, %s356
                $region76: #{_lambda_.4} parent=62 // loop_footer_branch
                  %355 = sbr.rel target = $region72
                $region77: #{_lambda_.4} parent=62 // loop_exit
                  _
              $region63: #{_lambda_.4} parent=47 // pred_fallthru
                _
            $region48: #{_lambda_.4} parent=43 // pred_fallthru
              _
            // Predicated region
            $region49: #{_lambda_.4} parent=43 // pred_check
              _
            $region50: #{_lambda_.4} parent=43 // pred_check_branch
              %330 = sbr.rel (0) target = $region52
            $region51: #{_lambda_.4} parent=43 // pred_region
              loop: start=0, step=1, limit=1
              $region53: #{_lambda_.4} parent=51 // loop_pre_header
                _
              $region54: #{_lambda_.4} parent=51 // loop_header
                %s333 = sphi 0, %s337
                %p334 = scmp.ge.s32.totalorder %s333, 1
                %s338 = sphi %s324, %s324
                %s339 = sphi %s321, %s321
              $region55: #{_lambda_.4} parent=51 // loop_header_branch
                %336 = sbr.rel (%p334) target = $region59
              $region56: #{_lambda_.4} parent=51 // loop_body
                %v340 = vld [vmem:[%s338] sm:$0xf]
                %341 = vst [vmem:[%s339] sm:$0xf] %v340
                %v342 = vld [vmem:[%s338 + $0x8] sm:$0xf]
                %343 = vst [vmem:[%s339 + $0x4] sm:$0xf] %v342
              $region57: #{_lambda_.4} parent=51 // loop_footer
                %s337 = sadd.s32 1, %s333
              $region58: #{_lambda_.4} parent=51 // loop_footer_branch
                %332 = sbr.rel target = $region54
              $region59: #{_lambda_.4} parent=51 // loop_exit
                _
            $region52: #{_lambda_.4} parent=43 // pred_fallthru
              _
          $region44: #{_lambda_.4} parent=39 // pred_fallthru
            _
          %367 = vnop
        $region40: #{_lambda_.4} parent=31 // pred_fallthru
          _
        // Predicated region
        $region78: #{_lambda_.4} parent=31 // pred_check
          %p368 = pneg %p101
        $region79: #{_lambda_.4} parent=31 // pred_check_branch
          %370 = sbr.rel (%p368) target = $region81
        $region80: #{_lambda_.4} parent=31 // pred_region
          %s371 = sand.u32 %s91, 1
          %s372 = sand.u32 %s91, 1
          %s373 = smul.addr %s372, 8
          %s374 = scalar_lea.vmem [#allocation3], %s373
          %s375 = sadd.s32 %s22, 8
          %s376 = smul.addr %s375, 4
          %s377 = scalar_lea.vmem %s2, %s376
          // Predicated region
          $region82: #{_lambda_.4} parent=80 // pred_check
            _
          $region83: #{_lambda_.4} parent=80 // pred_check_branch
            %379 = sbr.rel (0) target = $region85
          $region84: #{_lambda_.4} parent=80 // pred_region
            // Predicated region
            $region86: #{_lambda_.4} parent=84 // pred_check
              _
            $region87: #{_lambda_.4} parent=84 // pred_check_branch
              %381 = sbr.rel target = $region89
            $region88: #{_lambda_.4} parent=84 // pred_region
              // Predicated region
              $region101: #{_lambda_.4} parent=88 // pred_check
                _
              $region102: #{_lambda_.4} parent=88 // pred_check_branch
                %398 = sbr.rel (0) target = $region104
              $region103: #{_lambda_.4} parent=88 // pred_region
                loop: start=0, step=1, limit=1
                $region105: #{_lambda_.4} parent=103 // loop_pre_header
                  _
                $region106: #{_lambda_.4} parent=103 // loop_header
                  %s400 = sphi 0, %s404
                  %p401 = scmp.ge.s32.totalorder %s400, 1
                  %s405 = sphi %s377, %s377
                  %s406 = sphi %s374, %s374
                $region107: #{_lambda_.4} parent=103 // loop_header_branch
                  %403 = sbr.rel (%p401) target = $region111
                $region108: #{_lambda_.4} parent=103 // loop_body
                  _
                $region109: #{_lambda_.4} parent=103 // loop_footer
                  %s404 = sadd.s32 1, %s400
                $region110: #{_lambda_.4} parent=103 // loop_footer_branch
                  %399 = sbr.rel target = $region106
                $region111: #{_lambda_.4} parent=103 // loop_exit
                  _
                loop: start=0, step=1, limit=1
                $region112: #{_lambda_.4} parent=103 // loop_pre_header
                  _
                $region113: #{_lambda_.4} parent=103 // loop_header
                  %s409 = sphi 0, %s413
                  %p410 = scmp.ge.s32.totalorder %s409, 1
                  %s414 = sphi %s377, %s377
                  %s415 = sphi %s374, %s374
                $region114: #{_lambda_.4} parent=103 // loop_header_branch
                  %412 = sbr.rel (%p410) target = $region118
                $region115: #{_lambda_.4} parent=103 // loop_body
                  %v416 = vld [vmem:[%s414] sm:$0xf]
                  %417 = vst [vmem:[%s415] sm:$0xf] %v416
                  %v418 = vld [vmem:[%s414 + $0x8] sm:$0xf]
                  %419 = vst [vmem:[%s415 + $0x4] sm:$0xf] %v418
                $region116: #{_lambda_.4} parent=103 // loop_footer
                  %s413 = sadd.s32 1, %s409
                $region117: #{_lambda_.4} parent=103 // loop_footer_branch
                  %408 = sbr.rel target = $region113
                $region118: #{_lambda_.4} parent=103 // loop_exit
                  _
              $region104: #{_lambda_.4} parent=88 // pred_fallthru
                _
            $region89: #{_lambda_.4} parent=84 // pred_fallthru
              _
            // Predicated region
            $region90: #{_lambda_.4} parent=84 // pred_check
              _
            $region91: #{_lambda_.4} parent=84 // pred_check_branch
              %383 = sbr.rel (0) target = $region93
            $region92: #{_lambda_.4} parent=84 // pred_region
              loop: start=0, step=1, limit=1
              $region94: #{_lambda_.4} parent=92 // loop_pre_header
                _
              $region95: #{_lambda_.4} parent=92 // loop_header
                %s386 = sphi 0, %s390
                %p387 = scmp.ge.s32.totalorder %s386, 1
                %s391 = sphi %s377, %s377
                %s392 = sphi %s374, %s374
              $region96: #{_lambda_.4} parent=92 // loop_header_branch
                %389 = sbr.rel (%p387) target = $region100
              $region97: #{_lambda_.4} parent=92 // loop_body
                %v393 = vld [vmem:[%s391] sm:$0xf]
                %394 = vst [vmem:[%s392] sm:$0xf] %v393
                %v395 = vld [vmem:[%s391 + $0x8] sm:$0xf]
                %396 = vst [vmem:[%s392 + $0x4] sm:$0xf] %v395
              $region98: #{_lambda_.4} parent=92 // loop_footer
                %s390 = sadd.s32 1, %s386
              $region99: #{_lambda_.4} parent=92 // loop_footer_branch
                %385 = sbr.rel target = $region95
              $region100: #{_lambda_.4} parent=92 // loop_exit
                _
            $region93: #{_lambda_.4} parent=84 // pred_fallthru
              _
          $region85: #{_lambda_.4} parent=80 // pred_fallthru
            _
          %420 = vnop
        $region81: #{_lambda_.4} parent=31 // pred_fallthru
          _
        // Predicated region
        $region119: #{_lambda_.4} parent=31 // pred_check
          %p421 = pneg %p127
        $region120: #{_lambda_.4} parent=31 // pred_check_branch
          %423 = sbr.rel (%p421) target = $region122
        $region121: #{_lambda_.4} parent=31 // pred_region
          %s424 = sand.u32 %s117, 1
          %s425 = sand.u32 %s117, 1
          %s426 = smul.addr %s425, 2
          %s427 = scalar_lea.vmem [#allocation4], %s426
          %s428 = scalar_lea.vmem %s3, %s22
          // Predicated region
          $region123: #{_lambda_.4} parent=121 // pred_check
            _
          $region124: #{_lambda_.4} parent=121 // pred_check_branch
            %430 = sbr.rel (0) target = $region126
          $region125: #{_lambda_.4} parent=121 // pred_region
            // Predicated region
            $region127: #{_lambda_.4} parent=125 // pred_check
              _
            $region128: #{_lambda_.4} parent=125 // pred_check_branch
              %432 = sbr.rel target = $region130
            $region129: #{_lambda_.4} parent=125 // pred_region
              // Predicated region
              $region142: #{_lambda_.4} parent=129 // pred_check
                _
              $region143: #{_lambda_.4} parent=129 // pred_check_branch
                %449 = sbr.rel (0) target = $region145
              $region144: #{_lambda_.4} parent=129 // pred_region
                loop: start=0, step=1, limit=1
                $region146: #{_lambda_.4} parent=144 // loop_pre_header
                  _
                $region147: #{_lambda_.4} parent=144 // loop_header
                  %s452 = sphi 0, %s456
                  %p453 = scmp.ge.s32.totalorder %s452, 1
                  %s457 = sphi %s428, %s428
                  %s458 = sphi %s427, %s427
                $region148: #{_lambda_.4} parent=144 // loop_header_branch
                  %455 = sbr.rel (%p453) target = $region152
                $region149: #{_lambda_.4} parent=144 // loop_body
                  %v459 = vld [vmem:[%s457] sm:$0x1]
                  %460 = vst [vmem:[%s458] sm:$0x1] %v459
                  %v461 = vld [vmem:[%s457 + $0x2] sm:$0x1]
                  %462 = vst [vmem:[%s458 + $0x1] sm:$0x1] %v461
                $region150: #{_lambda_.4} parent=144 // loop_footer
                  %s456 = sadd.s32 1, %s452
                $region151: #{_lambda_.4} parent=144 // loop_footer_branch
                  %451 = sbr.rel target = $region147
                $region152: #{_lambda_.4} parent=144 // loop_exit
                  _
              $region145: #{_lambda_.4} parent=129 // pred_fallthru
                _
            $region130: #{_lambda_.4} parent=125 // pred_fallthru
              _
            // Predicated region
            $region131: #{_lambda_.4} parent=125 // pred_check
              _
            $region132: #{_lambda_.4} parent=125 // pred_check_branch
              %434 = sbr.rel (0) target = $region134
            $region133: #{_lambda_.4} parent=125 // pred_region
              loop: start=0, step=1, limit=1
              $region135: #{_lambda_.4} parent=133 // loop_pre_header
                _
              $region136: #{_lambda_.4} parent=133 // loop_header
                %s437 = sphi 0, %s441
                %p438 = scmp.ge.s32.totalorder %s437, 1
                %s442 = sphi %s428, %s428
                %s443 = sphi %s427, %s427
              $region137: #{_lambda_.4} parent=133 // loop_header_branch
                %440 = sbr.rel (%p438) target = $region141
              $region138: #{_lambda_.4} parent=133 // loop_body
                %v444 = vld [vmem:[%s442] sm:$0x1]
                %445 = vst [vmem:[%s443] sm:$0x1] %v444
                %v446 = vld [vmem:[%s442 + $0x2] sm:$0x1]
                %447 = vst [vmem:[%s443 + $0x1] sm:$0x1] %v446
              $region139: #{_lambda_.4} parent=133 // loop_footer
                %s441 = sadd.s32 1, %s437
              $region140: #{_lambda_.4} parent=133 // loop_footer_branch
                %436 = sbr.rel target = $region136
              $region141: #{_lambda_.4} parent=133 // loop_exit
                _
            $region134: #{_lambda_.4} parent=125 // pred_fallthru
              _
          $region126: #{_lambda_.4} parent=121 // pred_fallthru
            _
          %463 = vnop
        $region122: #{_lambda_.4} parent=31 // pred_fallthru
          _
        // Predicated region
        $region153: #{_lambda_.4} parent=31 // pred_check
          %p464 = pneg %p155
        $region154: #{_lambda_.4} parent=31 // pred_check_branch
          %466 = sbr.rel (%p464) target = $region156
        $region155: #{_lambda_.4} parent=31 // pred_region
          %p467 = scmp.lt.s32.totalorder %s23, 1
          %s468 = scalar_select %p467, %s23, 1
          %p469 = scmp.lt.s32.totalorder %s22, 1
          %s470 = scalar_select %p469, %s22, 1
          %s471 = smul.addr %s468, 2
          %s472 = sadd.s32 %s470, %s471
          %s473 = smul.addr %s472, 8
          %s474 = scalar_lea.vmem %s4, %s473
        $region156: #{_lambda_.4} parent=31 // pred_fallthru
          _
      $region32: #{_lambda_.4} parent=5 // pred_fallthru
        _
      %p475 = scmp.le.s32.totalorder 1, %s15
      %p476 = scmp.lt.s32.totalorder %s15, 5
      %p477 = pnand %p475, %p476
      %p478 = pneg %p477
      // Predicated region
      $region157: #{_lambda_.4} parent=5 // pred_check
        _
      $region158: #{_lambda_.4} parent=5 // pred_check_branch
        %480 = sbr.rel (%p477) target = $region160
      $region159: #{_lambda_.4} parent=5 // pred_region
        %s481 = ssub.s32 %s15, 1
        %s482 = sand.u32 %s68, 1
        %s483 = sand.u32 %s68, 1
        %s484 = smul.addr %s483, 8
        %s485 = scalar_lea.vmem [#allocation2], %s484
        // Predicated region
        $region161: #{_lambda_.4} parent=159 // pred_check
          %p486 = pneg %p81
        $region162: #{_lambda_.4} parent=159 // pred_check_branch
          %488 = sbr.rel (%p486) target = $region164
        $region163: #{_lambda_.4} parent=159 // pred_region
          _
        $region164: #{_lambda_.4} parent=159 // pred_fallthru
          _
        %s489 = sand.u32 %s94, 1
        %s490 = sand.u32 %s94, 1
        %s491 = smul.addr %s490, 8
        %s492 = scalar_lea.vmem [#allocation3], %s491
        // Predicated region
        $region165: #{_lambda_.4} parent=159 // pred_check
          %p493 = pneg %p107
        $region166: #{_lambda_.4} parent=159 // pred_check_branch
          %495 = sbr.rel (%p493) target = $region168
        $region167: #{_lambda_.4} parent=159 // pred_region
          _
        $region168: #{_lambda_.4} parent=159 // pred_fallthru
          _
        %s496 = sand.u32 %s120, 1
        %s497 = sand.u32 %s120, 1
        %s498 = smul.addr %s497, 2
        %s499 = scalar_lea.vmem [#allocation4], %s498
        // Predicated region
        $region169: #{_lambda_.4} parent=159 // pred_check
          %p500 = pneg %p133
        $region170: #{_lambda_.4} parent=159 // pred_check_branch
          %502 = sbr.rel (%p500) target = $region172
        $region171: #{_lambda_.4} parent=159 // pred_region
          _
        $region172: #{_lambda_.4} parent=159 // pred_fallthru
          _
        %p503 = scmp.lt.s32.totalorder %s25, 1
        %s504 = scalar_select %p503, %s25, 1
        %p505 = scmp.lt.s32.totalorder %s24, 1
        %s506 = scalar_select %p505, %s24, 1
        %s507 = smul.addr %s504, 2
        %s508 = sadd.s32 %s506, %s507
        %s509 = smul.addr %s508, 4
        %s510 = scalar_lea.vmem %s0, %s509
        %p511 = pneg %p55
        %p512 = pneg %p52
        %s513 = sand.u32 %s68, 1
        %s514 = sand.u32 %s68, 1
        %s515 = smul.addr %s514, 8
        %s516 = scalar_lea.vmem [#allocation2], %s515
        %p517 = pneg %p81
        %p518 = pneg %p78
        %s519 = sand.u32 %s94, 1
        %s520 = sand.u32 %s94, 1
        %s521 = smul.addr %s520, 8
        %s522 = scalar_lea.vmem [#allocation3], %s521
        %p523 = pneg %p107
        %p524 = pneg %p104
        %s525 = sand.u32 %s120, 1
        %s526 = sand.u32 %s120, 1
        %s527 = smul.addr %s526, 2
        %s528 = scalar_lea.vmem [#allocation4], %s527
        %p529 = pneg %p133
        %p530 = pneg %p130
        %p531 = scmp.lt.s32.totalorder %s25, 1
        %s532 = scalar_select %p531, %s25, 1
        %p533 = scmp.lt.s32.totalorder %s24, 1
        %s534 = scalar_select %p533, %s24, 1
        %s535 = smul.addr %s532, 2
        %s536 = sadd.s32 %s534, %s535
        %s537 = smul.addr %s536, 8
        %s538 = scalar_lea.vmem %s4, %s537
        %p539 = pneg %p161
        %p540 = pneg %p158
        %p541 = pneg %p182
        %p542 = pneg %p179
        %p543 = pneg %p203
        %p544 = pneg %p200
        %p545 = pneg %p224
        %p546 = pneg %p221
        %p547 = pneg %p245
        %p548 = pneg %p242
        %p549 = pneg %p273
        %p550 = pneg %p270
        %p551 = scmp.lt.s32.totalorder %s25, 1
        %s552 = scalar_select %p551, %s25, 1
        %p553 = scmp.lt.s32.totalorder %s24, 1
        %s554 = scalar_select %p553, %s24, 1
        %s555 = smul.addr %s552, 2
        %s556 = sadd.s32 %s554, %s555
        %s557 = smul.addr %s556, 8
        %s558 = scalar_lea.vmem %s9, %s557
        %p559 = scmp.lt.s32.totalorder %s25, 1
        %s560 = scalar_select %p559, %s25, 1
        %p561 = scmp.lt.s32.totalorder %s24, 1
        %s562 = scalar_select %p561, %s24, 1
        %s563 = smul.addr %s560, 2
        %s564 = sadd.s32 %s562, %s563
        %s565 = smul.addr %s564, 4
        %s566 = scalar_lea.vmem %s0, %s565
        %p567 = scmp.lt.s32.totalorder %s25, 1
        %s568 = scalar_select %p567, %s25, 1
        %p569 = scmp.lt.s32.totalorder %s24, 1
        %s570 = scalar_select %p569, %s24, 1
        %s571 = smul.addr %s568, 2
        %s572 = sadd.s32 %s570, %s571
        %s573 = smul.addr %s572, 8
        %s574 = scalar_lea.vmem %s4, %s573
        %p575 = scmp.lt.s32.totalorder %s25, 1
        %s576 = scalar_select %p575, %s25, 1
        %p577 = scmp.lt.s32.totalorder %s24, 1
        %s578 = scalar_select %p577, %s24, 1
        %s579 = smul.addr %s576, 2
        %s580 = sadd.s32 %s578, %s579
        %s581 = smul.addr %s580, 8
        %s582 = scalar_lea.vmem %s9, %s581
        %v584 = vld [vmem:[%s566] sm:$0xf]
        %v585 = vld [vmem:[%s485] sm:$0xf]
        %v586 = vld [vmem:[%s492] sm:$0xf]
        %v587 = vld [vmem:[%s499] sm:$0x1]
        %vm588 = vcmp.gt.s32.totalorder %v587, 0
        %v589 = vsel %vm588, -1e+09, 0.0
        %vm590 = vcmask 64512
        %v592 = vsel %vm590, %v584, 0
        %v595 = vsel %vm590, %v585, 0
        %597 = vmatprep.subr.bf16.mxu0 0
        %598 = vmatpush1.bf16.xpose.msra.mxu0 %v595
        %599 = vmatprep.subr.bf16.mxu0 0
        %600 = vmatpush1.bf16.xpose.msra.mxu0 0
        %601 = vmatprep.subr.bf16.mxu0 0
        %602 = vmatpush1.bf16.xpose.msra.mxu0 0
        %603 = vmatprep.subr.bf16.mxu0 0
        %604 = vmatpush1.bf16.xpose.msra.mxu0 0
        %605 = vmatprep.subr.bf16.mxu0 0
        %606 = vmatpush1.bf16.xpose.msra.mxu0 0
        %607 = vmatprep.subr.bf16.mxu0 0
        %608 = vmatpush1.bf16.xpose.msra.mxu0 0
        %609 = vmatprep.subr.bf16.mxu0 0
        %610 = vmatpush1.bf16.xpose.msra.mxu0 0
        %611 = vmatprep.subr.bf16.mxu0 0
        %612 = vmatpush1.bf16.xpose.msra.mxu0 0
        %613 = vmatprep.subr.bf16.mxu0 0
        %614 = vmatpush1.bf16.xpose.msra.mxu0 0
        %615 = vmatprep.subr.bf16.mxu0 0
        %616 = vmatpush1.bf16.xpose.msra.mxu0 0
        %617 = vmatprep.subr.bf16.mxu0 0
        %618 = vmatpush1.bf16.xpose.msra.mxu0 0
        %619 = vmatprep.subr.bf16.mxu0 0
        %620 = vmatpush1.bf16.xpose.msra.mxu0 0
        %621 = vmatprep.subr.bf16.mxu0 0
        %622 = vmatpush1.bf16.xpose.msra.mxu0 0
        %623 = vmatprep.subr.bf16.mxu0 0
        %624 = vmatpush1.bf16.xpose.msra.mxu0 0
        %625 = vmatprep.subr.bf16.mxu0 0
        %626 = vmatpush1.bf16.xpose.msra.mxu0 0
        %627 = vmatprep.subr.bf16.mxu0 0
        %628 = vmatpush1.bf16.xpose.msra.mxu0 0
        %629 = vmatprep.mubr.bf16.mxu0 0
        %630 = vmatmul.mubr.bf16.gmra.mrb[0].mxu0 %v592
        %v631 = vpop.f32.mrb[0].mxu0
        %v632 = vadd.f32 0.0, %v631
        %v633 = vpop.f32.mrb[0].mxu0
        %v634 = vpop.f32.mrb[0].mxu0
        %v635 = vpop.f32.mrb[0].mxu0
        %636 = vdwg.mxu0
        %v637 = vmul.f32 %v632, 0.35355338
        %v639 = vlaneseq
        %v640 = vshrl.u32 %v639, 7
        %v641 = vsub.s32 0, %v640
        %v642 = vrot.slane %v589, %v641
        %v644 = vadd.f32 %v637, %v642
        %v645 = vsel %vm590, %v644, -inf
        %646 = vmax.xlane.f32.xlu0 %v645
        %v647 = vpop.xlane.xlu0 %646
        %v648 = vsub.f32 %v644, %v647
        %v649 = vmul.f32 %v648, 1.442695
        %v650 = vpow.pop %v649
        %v651 = vsel %vm590, %v650, 0.0
        %652 = vadd.xlane.f32.xlu0 %v651
        %v653 = vpop.xlane.xlu0 %652
        %v654 = vrcp.pop %v653
        %v655 = vmul.f32 %v650, %v654
        %v656 = vpack.c.bf16 %v655, %v655
        %v658 = vsel %vm590, %v656, 0
        %vm660 = vcmask 1043456
        %v662 = vsel %vm660, %v586, 0
        %664 = vmatprep.subr.bf16.mxu0 0
        %665 = vmatpush1.bf16.msra.mxu0 %v662
        %666 = vmatprep.subr.bf16.mxu0 0
        %667 = vmatpush1.bf16.msra.mxu0 0
        %668 = vmatprep.subr.bf16.mxu0 0
        %669 = vmatpush1.bf16.msra.mxu0 0
        %670 = vmatprep.subr.bf16.mxu0 0
        %671 = vmatpush1.bf16.msra.mxu0 0
        %672 = vmatprep.subr.bf16.mxu0 0
        %673 = vmatpush1.bf16.msra.mxu0 0
        %674 = vmatprep.subr.bf16.mxu0 0
        %675 = vmatpush1.bf16.msra.mxu0 0
        %676 = vmatprep.subr.bf16.mxu0 0
        %677 = vmatpush1.bf16.msra.mxu0 0
        %678 = vmatprep.subr.bf16.mxu0 0
        %679 = vmatpush1.bf16.msra.mxu0 0
        %680 = vmatprep.subr.bf16.mxu0 0
        %681 = vmatpush1.bf16.msra.mxu0 0
        %682 = vmatprep.subr.bf16.mxu0 0
        %683 = vmatpush1.bf16.msra.mxu0 0
        %684 = vmatprep.subr.bf16.mxu0 0
        %685 = vmatpush1.bf16.msra.mxu0 0
        %686 = vmatprep.subr.bf16.mxu0 0
        %687 = vmatpush1.bf16.msra.mxu0 0
        %688 = vmatprep.subr.bf16.mxu0 0
        %689 = vmatpush1.bf16.msra.mxu0 0
        %690 = vmatprep.subr.bf16.mxu0 0
        %691 = vmatpush1.bf16.msra.mxu0 0
        %692 = vmatprep.subr.bf16.mxu0 0
        %693 = vmatpush1.bf16.msra.mxu0 0
        %694 = vmatprep.subr.bf16.mxu0 0
        %695 = vmatpush1.bf16.msra.mxu0 0
        %696 = vmatprep.mubr.bf16.mxu0 0
        %697 = vmatmul.mubr.bf16.gmra.mrb[0].mxu0 %v658
        %v698 = vpop.f32.mrb[0].mxu0
        %v699 = vadd.f32 0.0, %v698
        %v700 = vpop.f32.mrb[0].mxu0
        %v701 = vpop.f32.mrb[0].mxu0
        %v702 = vpop.f32.mrb[0].mxu0
        %703 = vdwg.mxu0
        %v705 = vunpack.c.l.b16 %v584
        %v706 = vpack.c.b16 %v705, %v705
        %707 = vrot.lane.b32.xlu0 %v706, 120
        %v708 = vpop.permute.xlu0 %707
        %v710 = vunpack.c.l.b16 %v585
        %v711 = vpack.c.b16 %v710, %v710
        %712 = vrot.lane.b32.xlu0 %v711, 120
        %v713 = vpop.permute.xlu0 %712
        %v715 = vsel %vm590, %v708, 0
        %v718 = vsel %vm590, %v713, 0
        %720 = vmatprep.subr.bf16.mxu0 0
        %721 = vmatpush1.bf16.xpose.msra.mxu0 %v718
        %722 = vmatprep.subr.bf16.mxu0 0
        %723 = vmatpush1.bf16.xpose.msra.mxu0 0
        %724 = vmatprep.subr.bf16.mxu0 0
        %725 = vmatpush1.bf16.xpose.msra.mxu0 0
        %726 = vmatprep.subr.bf16.mxu0 0
        %727 = vmatpush1.bf16.xpose.msra.mxu0 0
        %728 = vmatprep.subr.bf16.mxu0 0
        %729 = vmatpush1.bf16.xpose.msra.mxu0 0
        %730 = vmatprep.subr.bf16.mxu0 0
        %731 = vmatpush1.bf16.xpose.msra.mxu0 0
        %732 = vmatprep.subr.bf16.mxu0 0
        %733 = vmatpush1.bf16.xpose.msra.mxu0 0
        %734 = vmatprep.subr.bf16.mxu0 0
        %735 = vmatpush1.bf16.xpose.msra.mxu0 0
        %736 = vmatprep.subr.bf16.mxu0 0
        %737 = vmatpush1.bf16.xpose.msra.mxu0 0
        %738 = vmatprep.subr.bf16.mxu0 0
        %739 = vmatpush1.bf16.xpose.msra.mxu0 0
        %740 = vmatprep.subr.bf16.mxu0 0
        %741 = vmatpush1.bf16.xpose.msra.mxu0 0
        %742 = vmatprep.subr.bf16.mxu0 0
        %743 = vmatpush1.bf16.xpose.msra.mxu0 0
        %744 = vmatprep.subr.bf16.mxu0 0
        %745 = vmatpush1.bf16.xpose.msra.mxu0 0
        %746 = vmatprep.subr.bf16.mxu0 0
        %747 = vmatpush1.bf16.xpose.msra.mxu0 0
        %748 = vmatprep.subr.bf16.mxu0 0
        %749 = vmatpush1.bf16.xpose.msra.mxu0 0
        %750 = vmatprep.subr.bf16.mxu0 0
        %751 = vmatpush1.bf16.xpose.msra.mxu0 0
        %752 = vmatprep.mubr.bf16.mxu0 0
        %753 = vmatmul.mubr.bf16.gmra.mrb[0].mxu0 %v715
        %v754 = vpop.f32.mrb[0].mxu0
        %v755 = vadd.f32 0.0, %v754
        %v756 = vpop.f32.mrb[0].mxu0
        %v757 = vpop.f32.mrb[0].mxu0
        %v758 = vpop.f32.mrb[0].mxu0
        %759 = vdwg.mxu0
        %v760 = vmul.f32 %v755, 0.35355338
        %v761 = vadd.f32 %v760, %v642
        %v762 = vsel %vm590, %v761, -inf
        %763 = vmax.xlane.f32.xlu0 %v762
        %v764 = vpop.xlane.xlu0 %763
        %v765 = vsub.f32 %v761, %v764
        %v766 = vmul.f32 %v765, 1.442695
        %v767 = vpow.pop %v766
        %v768 = vsel %vm590, %v767, 0.0
        %769 = vadd.xlane.f32.xlu0 %v768
        %v770 = vpop.xlane.xlu0 %769
        %v771 = vrcp.pop %v770
        %v772 = vmul.f32 %v767, %v771
        %v773 = vpack.c.bf16 %v772, %v772
        %v775 = vunpack.c.l.b16 %v586
        %v776 = vpack.c.b16 %v775, %v775
        %777 = vrot.lane.b32.xlu0 %v776, 120
        %v778 = vpop.permute.xlu0 %777
        %v780 = vsel %vm590, %v773, 0
        %v783 = vsel %vm660, %v778, 0
        %785 = vmatprep.subr.bf16.mxu0 0
        %786 = vmatpush1.bf16.msra.mxu0 %v783
        %787 = vmatprep.subr.bf16.mxu0 0
        %788 = vmatpush1.bf16.msra.mxu0 0
        %789 = vmatprep.subr.bf16.mxu0 0
        %790 = vmatpush1.bf16.msra.mxu0 0
        %791 = vmatprep.subr.bf16.mxu0 0
        %792 = vmatpush1.bf16.msra.mxu0 0
        %793 = vmatprep.subr.bf16.mxu0 0
        %794 = vmatpush1.bf16.msra.mxu0 0
        %795 = vmatprep.subr.bf16.mxu0 0
        %796 = vmatpush1.bf16.msra.mxu0 0
        %797 = vmatprep.subr.bf16.mxu0 0
        %798 = vmatpush1.bf16.msra.mxu0 0
        %799 = vmatprep.subr.bf16.mxu0 0
        %800 = vmatpush1.bf16.msra.mxu0 0
        %801 = vmatprep.subr.bf16.mxu0 0
        %802 = vmatpush1.bf16.msra.mxu0 0
        %803 = vmatprep.subr.bf16.mxu0 0
        %804 = vmatpush1.bf16.msra.mxu0 0
        %805 = vmatprep.subr.bf16.mxu0 0
        %806 = vmatpush1.bf16.msra.mxu0 0
        %807 = vmatprep.subr.bf16.mxu0 0
        %808 = vmatpush1.bf16.msra.mxu0 0
        %809 = vmatprep.subr.bf16.mxu0 0
        %810 = vmatpush1.bf16.msra.mxu0 0
        %811 = vmatprep.subr.bf16.mxu0 0
        %812 = vmatpush1.bf16.msra.mxu0 0
        %813 = vmatprep.subr.bf16.mxu0 0
        %814 = vmatpush1.bf16.msra.mxu0 0
        %815 = vmatprep.subr.bf16.mxu0 0
        %816 = vmatpush1.bf16.msra.mxu0 0
        %817 = vmatprep.mubr.bf16.mxu0 0
        %818 = vmatmul.mubr.bf16.gmra.mrb[0].mxu0 %v780
        %v819 = vpop.f32.mrb[0].mxu0
        %v820 = vadd.f32 0.0, %v819
        %v821 = vpop.f32.mrb[0].mxu0
        %v822 = vpop.f32.mrb[0].mxu0
        %v823 = vpop.f32.mrb[0].mxu0
        %824 = vdwg.mxu0
        %825 = vrot.lane.b32.xlu0 %v706, 112
        %v826 = vpop.permute.xlu0 %825
        %827 = vrot.lane.b32.xlu0 %v711, 112
        %v828 = vpop.permute.xlu0 %827
        %v830 = vsel %vm590, %v826, 0
        %v833 = vsel %vm590, %v828, 0
        %835 = vmatprep.subr.bf16.mxu0 0
        %836 = vmatpush1.bf16.xpose.msra.mxu0 %v833
        %837 = vmatprep.subr.bf16.mxu0 0
        %838 = vmatpush1.bf16.xpose.msra.mxu0 0
        %839 = vmatprep.subr.bf16.mxu0 0
        %840 = vmatpush1.bf16.xpose.msra.mxu0 0
        %841 = vmatprep.subr.bf16.mxu0 0
        %842 = vmatpush1.bf16.xpose.msra.mxu0 0
        %843 = vmatprep.subr.bf16.mxu0 0
        %844 = vmatpush1.bf16.xpose.msra.mxu0 0
        %845 = vmatprep.subr.bf16.mxu0 0
        %846 = vmatpush1.bf16.xpose.msra.mxu0 0
        %847 = vmatprep.subr.bf16.mxu0 0
        %848 = vmatpush1.bf16.xpose.msra.mxu0 0
        %849 = vmatprep.subr.bf16.mxu0 0
        %850 = vmatpush1.bf16.xpose.msra.mxu0 0
        %851 = vmatprep.subr.bf16.mxu0 0
        %852 = vmatpush1.bf16.xpose.msra.mxu0 0
        %853 = vmatprep.subr.bf16.mxu0 0
        %854 = vmatpush1.bf16.xpose.msra.mxu0 0
        %855 = vmatprep.subr.bf16.mxu0 0
        %856 = vmatpush1.bf16.xpose.msra.mxu0 0
        %857 = vmatprep.subr.bf16.mxu0 0
        %858 = vmatpush1.bf16.xpose.msra.mxu0 0
        %859 = vmatprep.subr.bf16.mxu0 0
        %860 = vmatpush1.bf16.xpose.msra.mxu0 0
        %861 = vmatprep.subr.bf16.mxu0 0
        %862 = vmatpush1.bf16.xpose.msra.mxu0 0
        %863 = vmatprep.subr.bf16.mxu0 0
        %864 = vmatpush1.bf16.xpose.msra.mxu0 0
        %865 = vmatprep.subr.bf16.mxu0 0
        %866 = vmatpush1.bf16.xpose.msra.mxu0 0
        %867 = vmatprep.mubr.bf16.mxu0 0
        %868 = vmatmul.mubr.bf16.gmra.mrb[0].mxu0 %v830
        %v869 = vpop.f32.mrb[0].mxu0
        %v870 = vadd.f32 0.0, %v869
        %v871 = vpop.f32.mrb[0].mxu0
        %v872 = vpop.f32.mrb[0].mxu0
        %v873 = vpop.f32.mrb[0].mxu0
        %874 = vdwg.mxu0
        %v875 = vmul.f32 %v870, 0.35355338
        %v876 = vadd.f32 %v875, %v642
        %v877 = vsel %vm590, %v876, -inf
        %878 = vmax.xlane.f32.xlu0 %v877
        %v879 = vpop.xlane.xlu0 %878
        %v880 = vsub.f32 %v876, %v879
        %v881 = vmul.f32 %v880, 1.442695
        %v882 = vpow.pop %v881
        %v883 = vsel %vm590, %v882, 0.0
        %884 = vadd.xlane.f32.xlu0 %v883
        %v885 = vpop.xlane.xlu0 %884
        %v886 = vrcp.pop %v885
        %v887 = vmul.f32 %v882, %v886
        %v888 = vpack.c.bf16 %v887, %v887
        %889 = vrot.lane.b32.xlu0 %v776, 112
        %v890 = vpop.permute.xlu0 %889
        %v892 = vsel %vm590, %v888, 0
        %v895 = vsel %vm660, %v890, 0
        %897 = vmatprep.subr.bf16.mxu0 0
        %898 = vmatpush1.bf16.msra.mxu0 %v895
        %899 = vmatprep.subr.bf16.mxu0 0
        %900 = vmatpush1.bf16.msra.mxu0 0
        %901 = vmatprep.subr.bf16.mxu0 0
        %902 = vmatpush1.bf16.msra.mxu0 0
        %903 = vmatprep.subr.bf16.mxu0 0
        %904 = vmatpush1.bf16.msra.mxu0 0
        %905 = vmatprep.subr.bf16.mxu0 0
        %906 = vmatpush1.bf16.msra.mxu0 0
        %907 = vmatprep.subr.bf16.mxu0 0
        %908 = vmatpush1.bf16.msra.mxu0 0
        %909 = vmatprep.subr.bf16.mxu0 0
        %910 = vmatpush1.bf16.msra.mxu0 0
        %911 = vmatprep.subr.bf16.mxu0 0
        %912 = vmatpush1.bf16.msra.mxu0 0
        %913 = vmatprep.subr.bf16.mxu0 0
        %914 = vmatpush1.bf16.msra.mxu0 0
        %915 = vmatprep.subr.bf16.mxu0 0
        %916 = vmatpush1.bf16.msra.mxu0 0
        %917 = vmatprep.subr.bf16.mxu0 0
        %918 = vmatpush1.bf16.msra.mxu0 0
        %919 = vmatprep.subr.bf16.mxu0 0
        %920 = vmatpush1.bf16.msra.mxu0 0
        %921 = vmatprep.subr.bf16.mxu0 0
        %922 = vmatpush1.bf16.msra.mxu0 0
        %923 = vmatprep.subr.bf16.mxu0 0
        %924 = vmatpush1.bf16.msra.mxu0 0
        %925 = vmatprep.subr.bf16.mxu0 0
        %926 = vmatpush1.bf16.msra.mxu0 0
        %927 = vmatprep.subr.bf16.mxu0 0
        %928 = vmatpush1.bf16.msra.mxu0 0
        %929 = vmatprep.mubr.bf16.mxu0 0
        %930 = vmatmul.mubr.bf16.gmra.mrb[0].mxu0 %v892
        %v931 = vpop.f32.mrb[0].mxu0
        %v932 = vadd.f32 0.0, %v931
        %v933 = vpop.f32.mrb[0].mxu0
        %v934 = vpop.f32.mrb[0].mxu0
        %v935 = vpop.f32.mrb[0].mxu0
        %936 = vdwg.mxu0
        %937 = vrot.lane.b32.xlu0 %v706, 104
        %v938 = vpop.permute.xlu0 %937
        %939 = vrot.lane.b32.xlu0 %v711, 104
        %v940 = vpop.permute.xlu0 %939
        %v942 = vsel %vm590, %v938, 0
        %v945 = vsel %vm590, %v940, 0
        %947 = vmatprep.subr.bf16.mxu0 0
        %948 = vmatpush1.bf16.xpose.msra.mxu0 %v945
        %949 = vmatprep.subr.bf16.mxu0 0
        %950 = vmatpush1.bf16.xpose.msra.mxu0 0
        %951 = vmatprep.subr.bf16.mxu0 0
        %952 = vmatpush1.bf16.xpose.msra.mxu0 0
        %953 = vmatprep.subr.bf16.mxu0 0
        %954 = vmatpush1.bf16.xpose.msra.mxu0 0
        %955 = vmatprep.subr.bf16.mxu0 0
        %956 = vmatpush1.bf16.xpose.msra.mxu0 0
        %957 = vmatprep.subr.bf16.mxu0 0
        %958 = vmatpush1.bf16.xpose.msra.mxu0 0
        %959 = vmatprep.subr.bf16.mxu0 0
        %960 = vmatpush1.bf16.xpose.msra.mxu0 0
        %961 = vmatprep.subr.bf16.mxu0 0
        %962 = vmatpush1.bf16.xpose.msra.mxu0 0
        %963 = vmatprep.subr.bf16.mxu0 0
        %964 = vmatpush1.bf16.xpose.msra.mxu0 0
        %965 = vmatprep.subr.bf16.mxu0 0
        %966 = vmatpush1.bf16.xpose.msra.mxu0 0
        %967 = vmatprep.subr.bf16.mxu0 0
        %968 = vmatpush1.bf16.xpose.msra.mxu0 0
        %969 = vmatprep.subr.bf16.mxu0 0
        %970 = vmatpush1.bf16.xpose.msra.mxu0 0
        %971 = vmatprep.subr.bf16.mxu0 0
        %972 = vmatpush1.bf16.xpose.msra.mxu0 0
        %973 = vmatprep.subr.bf16.mxu0 0
        %974 = vmatpush1.bf16.xpose.msra.mxu0 0
        %975 = vmatprep.subr.bf16.mxu0 0
        %976 = vmatpush1.bf16.xpose.msra.mxu0 0
        %977 = vmatprep.subr.bf16.mxu0 0
        %978 = vmatpush1.bf16.xpose.msra.mxu0 0
        %979 = vmatprep.mubr.bf16.mxu0 0
        %980 = vmatmul.mubr.bf16.gmra.mrb[0].mxu0 %v942
        %v981 = vpop.f32.mrb[0].mxu0
        %v982 = vadd.f32 0.0, %v981
        %v983 = vpop.f32.mrb[0].mxu0
        %v984 = vpop.f32.mrb[0].mxu0
        %v985 = vpop.f32.mrb[0].mxu0
        %986 = vdwg.mxu0
        %v987 = vmul.f32 %v982, 0.35355338
        %v988 = vadd.f32 %v987, %v642
        %v989 = vsel %vm590, %v988, -inf
        %990 = vmax.xlane.f32.xlu0 %v989
        %v991 = vpop.xlane.xlu0 %990
        %v992 = vsub.f32 %v988, %v991
        %v993 = vmul.f32 %v992, 1.442695
        %v994 = vpow.pop %v993
        %v995 = vsel %vm590, %v994, 0.0
        %996 = vadd.xlane.f32.xlu0 %v995
        %v997 = vpop.xlane.xlu0 %996
        %v998 = vrcp.pop %v997
        %v999 = vmul.f32 %v994, %v998
        %v1000 = vpack.c.bf16 %v999, %v999
        %1001 = vrot.lane.b32.xlu0 %v776, 104
        %v1002 = vpop.permute.xlu0 %1001
        %v1004 = vsel %vm590, %v1000, 0
        %v1007 = vsel %vm660, %v1002, 0
        %1009 = vmatprep.subr.bf16.mxu0 0
        %1010 = vmatpush1.bf16.msra.mxu0 %v1007
        %1011 = vmatprep.subr.bf16.mxu0 0
        %1012 = vmatpush1.bf16.msra.mxu0 0
        %1013 = vmatprep.subr.bf16.mxu0 0
        %1014 = vmatpush1.bf16.msra.mxu0 0
        %1015 = vmatprep.subr.bf16.mxu0 0
        %1016 = vmatpush1.bf16.msra.mxu0 0
        %1017 = vmatprep.subr.bf16.mxu0 0
        %1018 = vmatpush1.bf16.msra.mxu0 0
        %1019 = vmatprep.subr.bf16.mxu0 0
        %1020 = vmatpush1.bf16.msra.mxu0 0
        %1021 = vmatprep.subr.bf16.mxu0 0
        %1022 = vmatpush1.bf16.msra.mxu0 0
        %1023 = vmatprep.subr.bf16.mxu0 0
        %1024 = vmatpush1.bf16.msra.mxu0 0
        %1025 = vmatprep.subr.bf16.mxu0 0
        %1026 = vmatpush1.bf16.msra.mxu0 0
        %1027 = vmatprep.subr.bf16.mxu0 0
        %1028 = vmatpush1.bf16.msra.mxu0 0
        %1029 = vmatprep.subr.bf16.mxu0 0
        %1030 = vmatpush1.bf16.msra.mxu0 0
        %1031 = vmatprep.subr.bf16.mxu0 0
        %1032 = vmatpush1.bf16.msra.mxu0 0
        %1033 = vmatprep.subr.bf16.mxu0 0
        %1034 = vmatpush1.bf16.msra.mxu0 0
        %1035 = vmatprep.subr.bf16.mxu0 0
        %1036 = vmatpush1.bf16.msra.mxu0 0
        %1037 = vmatprep.subr.bf16.mxu0 0
        %1038 = vmatpush1.bf16.msra.mxu0 0
        %1039 = vmatprep.subr.bf16.mxu0 0
        %1040 = vmatpush1.bf16.msra.mxu0 0
        %1041 = vmatprep.mubr.bf16.mxu0 0
        %1042 = vmatmul.mubr.bf16.gmra.mrb[0].mxu0 %v1004
        %v1043 = vpop.f32.mrb[0].mxu0
        %v1044 = vadd.f32 0.0, %v1043
        %v1045 = vpop.f32.mrb[0].mxu0
        %v1046 = vpop.f32.mrb[0].mxu0
        %v1047 = vpop.f32.mrb[0].mxu0
        %1048 = vdwg.mxu0
        %1050 = vrot.lane.b32.xlu0 %v820, 8
        %v1051 = vpop.permute.xlu0 %1050
        %1054 = vrot.lane.b32.xlu0 %v932, 16
        %v1055 = vpop.permute.xlu0 %1054
        %1058 = vrot.lane.b32.xlu0 %v1044, 24
        %v1059 = vpop.permute.xlu0 %1058
        %v1061 = vsel %vm590, %v699, %v1051
        %vm1062 = vcmask 130048
        %v1063 = vsel %vm1062, %v1061, %v1055
        %vm1064 = vcmask 195584
        %v1065 = vsel %vm1064, %v1063, %v1059
        %s1066 = scalar_lea.vmem %s485, 4 [#allocation2]
        %v1067 = vld [vmem:[%s1066] sm:$0xf]
        %s1068 = scalar_lea.vmem %s492, 4 [#allocation3]
        %v1069 = vld [vmem:[%s1068] sm:$0xf]
        %s1070 = scalar_lea.vmem %s499, 1 [#allocation4]
        %v1071 = vld [vmem:[%s1070] sm:$0x1]
        %vm1072 = vcmp.gt.s32.totalorder %v1071, 0
        %v1073 = vsel %vm1072, -1e+09, 0.0
        %v1075 = vsel %vm590, %v1067, 0
        %1077 = vmatprep.subr.bf16.mxu0 0
        %1078 = vmatpush1.bf16.xpose.msra.mxu0 %v1075
        %1079 = vmatprep.subr.bf16.mxu0 0
        %1080 = vmatpush1.bf16.xpose.msra.mxu0 0
        %1081 = vmatprep.subr.bf16.mxu0 0
        %1082 = vmatpush1.bf16.xpose.msra.mxu0 0
        %1083 = vmatprep.subr.bf16.mxu0 0
        %1084 = vmatpush1.bf16.xpose.msra.mxu0 0
        %1085 = vmatprep.subr.bf16.mxu0 0
        %1086 = vmatpush1.bf16.xpose.msra.mxu0 0
        %1087 = vmatprep.subr.bf16.mxu0 0
        %1088 = vmatpush1.bf16.xpose.msra.mxu0 0
        %1089 = vmatprep.subr.bf16.mxu0 0
        %1090 = vmatpush1.bf16.xpose.msra.mxu0 0
        %1091 = vmatprep.subr.bf16.mxu0 0
        %1092 = vmatpush1.bf16.xpose.msra.mxu0 0
        %1093 = vmatprep.subr.bf16.mxu0 0
        %1094 = vmatpush1.bf16.xpose.msra.mxu0 0
        %1095 = vmatprep.subr.bf16.mxu0 0
        %1096 = vmatpush1.bf16.xpose.msra.mxu0 0
        %1097 = vmatprep.subr.bf16.mxu0 0
        %1098 = vmatpush1.bf16.xpose.msra.mxu0 0
        %1099 = vmatprep.subr.bf16.mxu0 0
        %1100 = vmatpush1.bf16.xpose.msra.mxu0 0
        %1101 = vmatprep.subr.bf16.mxu0 0
        %1102 = vmatpush1.bf16.xpose.msra.mxu0 0
        %1103 = vmatprep.subr.bf16.mxu0 0
        %1104 = vmatpush1.bf16.xpose.msra.mxu0 0
        %1105 = vmatprep.subr.bf16.mxu0 0
        %1106 = vmatpush1.bf16.xpose.msra.mxu0 0
        %1107 = vmatprep.subr.bf16.mxu0 0
        %1108 = vmatpush1.bf16.xpose.msra.mxu0 0
        %1109 = vmatprep.mubr.bf16.mxu0 0
        %1110 = vmatmul.mubr.bf16.gmra.mrb[0].mxu0 %v592
        %v1111 = vpop.f32.mrb[0].mxu0
        %v1112 = vadd.f32 0.0, %v1111
        %v1113 = vpop.f32.mrb[0].mxu0
        %v1114 = vpop.f32.mrb[0].mxu0
        %v1115 = vpop.f32.mrb[0].mxu0
        %1116 = vdwg.mxu0
        %v1117 = vmul.f32 %v1112, 0.35355338
        %v1119 = vlaneseq
        %v1120 = vshrl.u32 %v1119, 7
        %v1121 = vsub.s32 0, %v1120
        %v1122 = vrot.slane %v1073, %v1121
        %v1124 = vadd.f32 %v1117, %v1122
        %v1125 = vsel %vm590, %v1124, -inf
        %1126 = vmax.xlane.f32.xlu0 %v1125
        %v1127 = vpop.xlane.xlu0 %1126
        %v1128 = vsub.f32 %v1124, %v1127
        %v1129 = vmul.f32 %v1128, 1.442695
        %v1130 = vpow.pop %v1129
        %v1131 = vsel %vm590, %v1130, 0.0
        %1132 = vadd.xlane.f32.xlu0 %v1131
        %v1133 = vpop.xlane.xlu0 %1132
        %v1134 = vrcp.pop %v1133
        %v1135 = vmul.f32 %v1130, %v1134
        %v1136 = vpack.c.bf16 %v1135, %v1135
        %v1138 = vsel %vm590, %v1136, 0
        %v1141 = vsel %vm660, %v1069, 0
        %1143 = vmatprep.subr.bf16.mxu0 0
        %1144 = vmatpush1.bf16.msra.mxu0 %v1141
        %1145 = vmatprep.subr.bf16.mxu0 0
        %1146 = vmatpush1.bf16.msra.mxu0 0
        %1147 = vmatprep.subr.bf16.mxu0 0
        %1148 = vmatpush1.bf16.msra.mxu0 0
        %1149 = vmatprep.subr.bf16.mxu0 0
        %1150 = vmatpush1.bf16.msra.mxu0 0
        %1151 = vmatprep.subr.bf16.mxu0 0
        %1152 = vmatpush1.bf16.msra.mxu0 0
        %1153 = vmatprep.subr.bf16.mxu0 0
        %1154 = vmatpush1.bf16.msra.mxu0 0
        %1155 = vmatprep.subr.bf16.mxu0 0
        %1156 = vmatpush1.bf16.msra.mxu0 0
        %1157 = vmatprep.subr.bf16.mxu0 0
        %1158 = vmatpush1.bf16.msra.mxu0 0
        %1159 = vmatprep.subr.bf16.mxu0 0
        %1160 = vmatpush1.bf16.msra.mxu0 0
        %1161 = vmatprep.subr.bf16.mxu0 0
        %1162 = vmatpush1.bf16.msra.mxu0 0
        %1163 = vmatprep.subr.bf16.mxu0 0
        %1164 = vmatpush1.bf16.msra.mxu0 0
        %1165 = vmatprep.subr.bf16.mxu0 0
        %1166 = vmatpush1.bf16.msra.mxu0 0
        %1167 = vmatprep.subr.bf16.mxu0 0
        %1168 = vmatpush1.bf16.msra.mxu0 0
        %1169 = vmatprep.subr.bf16.mxu0 0
        %1170 = vmatpush1.bf16.msra.mxu0 0
        %1171 = vmatprep.subr.bf16.mxu0 0
        %1172 = vmatpush1.bf16.msra.mxu0 0
        %1173 = vmatprep.subr.bf16.mxu0 0
        %1174 = vmatpush1.bf16.msra.mxu0 0
        %1175 = vmatprep.mubr.bf16.mxu0 0
        %1176 = vmatmul.mubr.bf16.gmra.mrb[0].mxu0 %v1138
        %v1177 = vpop.f32.mrb[0].mxu0
        %v1178 = vadd.f32 0.0, %v1177
        %v1179 = vpop.f32.mrb[0].mxu0
        %v1180 = vpop.f32.mrb[0].mxu0
        %v1181 = vpop.f32.mrb[0].mxu0
        %1182 = vdwg.mxu0
        %v1184 = vunpack.c.l.b16 %v1067
        %v1185 = vpack.c.b16 %v1184, %v1184
        %1186 = vrot.lane.b32.xlu0 %v1185, 120
        %v1187 = vpop.permute.xlu0 %1186
        %v1189 = vsel %vm590, %v1187, 0
        %1191 = vmatprep.subr.bf16.mxu0 0
        %1192 = vmatpush1.bf16.xpose.msra.mxu0 %v1189
        %1193 = vmatprep.subr.bf16.mxu0 0
        %1194 = vmatpush1.bf16.xpose.msra.mxu0 0
        %1195 = vmatprep.subr.bf16.mxu0 0
        %1196 = vmatpush1.bf16.xpose.msra.mxu0 0
        %1197 = vmatprep.subr.bf16.mxu0 0
        %1198 = vmatpush1.bf16.xpose.msra.mxu0 0
        %1199 = vmatprep.subr.bf16.mxu0 0
        %1200 = vmatpush1.bf16.xpose.msra.mxu0 0
        %1201 = vmatprep.subr.bf16.mxu0 0
        %1202 = vmatpush1.bf16.xpose.msra.mxu0 0
        %1203 = vmatprep.subr.bf16.mxu0 0
        %1204 = vmatpush1.bf16.xpose.msra.mxu0 0
        %1205 = vmatprep.subr.bf16.mxu0 0
        %1206 = vmatpush1.bf16.xpose.msra.mxu0 0
        %1207 = vmatprep.subr.bf16.mxu0 0
        %1208 = vmatpush1.bf16.xpose.msra.mxu0 0
        %1209 = vmatprep.subr.bf16.mxu0 0
        %1210 = vmatpush1.bf16.xpose.msra.mxu0 0
        %1211 = vmatprep.subr.bf16.mxu0 0
        %1212 = vmatpush1.bf16.xpose.msra.mxu0 0
        %1213 = vmatprep.subr.bf16.mxu0 0
        %1214 = vmatpush1.bf16.xpose.msra.mxu0 0
        %1215 = vmatprep.subr.bf16.mxu0 0
        %1216 = vmatpush1.bf16.xpose.msra.mxu0 0
        %1217 = vmatprep.subr.bf16.mxu0 0
        %1218 = vmatpush1.bf16.xpose.msra.mxu0 0
        %1219 = vmatprep.subr.bf16.mxu0 0
        %1220 = vmatpush1.bf16.xpose.msra.mxu0 0
        %1221 = vmatprep.subr.bf16.mxu0 0
        %1222 = vmatpush1.bf16.xpose.msra.mxu0 0
        %1223 = vmatprep.mubr.bf16.mxu0 0
        %1224 = vmatmul.mubr.bf16.gmra.mrb[0].mxu0 %v715
        %v1225 = vpop.f32.mrb[0].mxu0
        %v1226 = vadd.f32 0.0, %v1225
        %v1227 = vpop.f32.mrb[0].mxu0
        %v1228 = vpop.f32.mrb[0].mxu0
        %v1229 = vpop.f32.mrb[0].mxu0
        %1230 = vdwg.mxu0
        %v1231 = vmul.f32 %v1226, 0.35355338
        %v1232 = vadd.f32 %v1231, %v1122
        %v1233 = vsel %vm590, %v1232, -inf
        %1234 = vmax.xlane.f32.xlu0 %v1233
        %v1235 = vpop.xlane.xlu0 %1234
        %v1236 = vsub.f32 %v1232, %v1235
        %v1237 = vmul.f32 %v1236, 1.442695
        %v1238 = vpow.pop %v1237
        %v1239 = vsel %vm590, %v1238, 0.0
        %1240 = vadd.xlane.f32.xlu0 %v1239
        %v1241 = vpop.xlane.xlu0 %1240
        %v1242 = vrcp.pop %v1241
        %v1243 = vmul.f32 %v1238, %v1242
        %v1244 = vpack.c.bf16 %v1243, %v1243
        %v1246 = vunpack.c.l.b16 %v1069
        %v1247 = vpack.c.b16 %v1246, %v1246
        %1248 = vrot.lane.b32.xlu0 %v1247, 120
        %v1249 = vpop.permute.xlu0 %1248
        %v1251 = vsel %vm590, %v1244, 0
        %v1254 = vsel %vm660, %v1249, 0
        %1256 = vmatprep.subr.bf16.mxu0 0
        %1257 = vmatpush1.bf16.msra.mxu0 %v1254
        %1258 = vmatprep.subr.bf16.mxu0 0
        %1259 = vmatpush1.bf16.msra.mxu0 0
        %1260 = vmatprep.subr.bf16.mxu0 0
        %1261 = vmatpush1.bf16.msra.mxu0 0
        %1262 = vmatprep.subr.bf16.mxu0 0
        %1263 = vmatpush1.bf16.msra.mxu0 0
        %1264 = vmatprep.subr.bf16.mxu0 0
        %1265 = vmatpush1.bf16.msra.mxu0 0
        %1266 = vmatprep.subr.bf16.mxu0 0
        %1267 = vmatpush1.bf16.msra.mxu0 0
        %1268 = vmatprep.subr.bf16.mxu0 0
        %1269 = vmatpush1.bf16.msra.mxu0 0
        %1270 = vmatprep.subr.bf16.mxu0 0
        %1271 = vmatpush1.bf16.msra.mxu0 0
        %1272 = vmatprep.subr.bf16.mxu0 0
        %1273 = vmatpush1.bf16.msra.mxu0 0
        %1274 = vmatprep.subr.bf16.mxu0 0
        %1275 = vmatpush1.bf16.msra.mxu0 0
        %1276 = vmatprep.subr.bf16.mxu0 0
        %1277 = vmatpush1.bf16.msra.mxu0 0
        %1278 = vmatprep.subr.bf16.mxu0 0
        %1279 = vmatpush1.bf16.msra.mxu0 0
        %1280 = vmatprep.subr.bf16.mxu0 0
        %1281 = vmatpush1.bf16.msra.mxu0 0
        %1282 = vmatprep.subr.bf16.mxu0 0
        %1283 = vmatpush1.bf16.msra.mxu0 0
        %1284 = vmatprep.subr.bf16.mxu0 0
        %1285 = vmatpush1.bf16.msra.mxu0 0
        %1286 = vmatprep.subr.bf16.mxu0 0
        %1287 = vmatpush1.bf16.msra.mxu0 0
        %1288 = vmatprep.mubr.bf16.mxu0 0
        %1289 = vmatmul.mubr.bf16.gmra.mrb[0].mxu0 %v1251
        %v1290 = vpop.f32.mrb[0].mxu0
        %v1291 = vadd.f32 0.0, %v1290
        %v1292 = vpop.f32.mrb[0].mxu0
        %v1293 = vpop.f32.mrb[0].mxu0
        %v1294 = vpop.f32.mrb[0].mxu0
        %1295 = vdwg.mxu0
        %1296 = vrot.lane.b32.xlu0 %v1185, 112
        %v1297 = vpop.permute.xlu0 %1296
        %v1299 = vsel %vm590, %v1297, 0
        %1301 = vmatprep.subr.bf16.mxu0 0
        %1302 = vmatpush1.bf16.xpose.msra.mxu0 %v1299
        %1303 = vmatprep.subr.bf16.mxu0 0
        %1304 = vmatpush1.bf16.xpose.msra.mxu0 0
        %1305 = vmatprep.subr.bf16.mxu0 0
        %1306 = vmatpush1.bf16.xpose.msra.mxu0 0
        %1307 = vmatprep.subr.bf16.mxu0 0
        %1308 = vmatpush1.bf16.xpose.msra.mxu0 0
        %1309 = vmatprep.subr.bf16.mxu0 0
        %1310 = vmatpush1.bf16.xpose.msra.mxu0 0
        %1311 = vmatprep.subr.bf16.mxu0 0
        %1312 = vmatpush1.bf16.xpose.msra.mxu0 0
        %1313 = vmatprep.subr.bf16.mxu0 0
        %1314 = vmatpush1.bf16.xpose.msra.mxu0 0
        %1315 = vmatprep.subr.bf16.mxu0 0
        %1316 = vmatpush1.bf16.xpose.msra.mxu0 0
        %1317 = vmatprep.subr.bf16.mxu0 0
        %1318 = vmatpush1.bf16.xpose.msra.mxu0 0
        %1319 = vmatprep.subr.bf16.mxu0 0
        %1320 = vmatpush1.bf16.xpose.msra.mxu0 0
        %1321 = vmatprep.subr.bf16.mxu0 0
        %1322 = vmatpush1.bf16.xpose.msra.mxu0 0
        %1323 = vmatprep.subr.bf16.mxu0 0
        %1324 = vmatpush1.bf16.xpose.msra.mxu0 0
        %1325 = vmatprep.subr.bf16.mxu0 0
        %1326 = vmatpush1.bf16.xpose.msra.mxu0 0
        %1327 = vmatprep.subr.bf16.mxu0 0
        %1328 = vmatpush1.bf16.xpose.msra.mxu0 0
        %1329 = vmatprep.subr.bf16.mxu0 0
        %1330 = vmatpush1.bf16.xpose.msra.mxu0 0
        %1331 = vmatprep.subr.bf16.mxu0 0
        %1332 = vmatpush1.bf16.xpose.msra.mxu0 0
        %1333 = vmatprep.mubr.bf16.mxu0 0
        %1334 = vmatmul.mubr.bf16.gmra.mrb[0].mxu0 %v830
        %v1335 = vpop.f32.mrb[0].mxu0
        %v1336 = vadd.f32 0.0, %v1335
        %v1337 = vpop.f32.mrb[0].mxu0
        %v1338 = vpop.f32.mrb[0].mxu0
        %v1339 = vpop.f32.mrb[0].mxu0
        %1340 = vdwg.mxu0
        %v1341 = vmul.f32 %v1336, 0.35355338
        %v1342 = vadd.f32 %v1341, %v1122
        %v1343 = vsel %vm590, %v1342, -inf
        %1344 = vmax.xlane.f32.xlu0 %v1343
        %v1345 = vpop.xlane.xlu0 %1344
        %v1346 = vsub.f32 %v1342, %v1345
        %v1347 = vmul.f32 %v1346, 1.442695
        %v1348 = vpow.pop %v1347
        %v1349 = vsel %vm590, %v1348, 0.0
        %1350 = vadd.xlane.f32.xlu0 %v1349
        %v1351 = vpop.xlane.xlu0 %1350
        %v1352 = vrcp.pop %v1351
        %v1353 = vmul.f32 %v1348, %v1352
        %v1354 = vpack.c.bf16 %v1353, %v1353
        %1355 = vrot.lane.b32.xlu0 %v1247, 112
        %v1356 = vpop.permute.xlu0 %1355
        %v1358 = vsel %vm590, %v1354, 0
        %v1361 = vsel %vm660, %v1356, 0
        %1363 = vmatprep.subr.bf16.mxu0 0
        %1364 = vmatpush1.bf16.msra.mxu0 %v1361
        %1365 = vmatprep.subr.bf16.mxu0 0
        %1366 = vmatpush1.bf16.msra.mxu0 0
        %1367 = vmatprep.subr.bf16.mxu0 0
        %1368 = vmatpush1.bf16.msra.mxu0 0
        %1369 = vmatprep.subr.bf16.mxu0 0
        %1370 = vmatpush1.bf16.msra.mxu0 0
        %1371 = vmatprep.subr.bf16.mxu0 0
        %1372 = vmatpush1.bf16.msra.mxu0 0
        %1373 = vmatprep.subr.bf16.mxu0 0
        %1374 = vmatpush1.bf16.msra.mxu0 0
        %1375 = vmatprep.subr.bf16.mxu0 0
        %1376 = vmatpush1.bf16.msra.mxu0 0
        %1377 = vmatprep.subr.bf16.mxu0 0
        %1378 = vmatpush1.bf16.msra.mxu0 0
        %1379 = vmatprep.subr.bf16.mxu0 0
        %1380 = vmatpush1.bf16.msra.mxu0 0
        %1381 = vmatprep.subr.bf16.mxu0 0
        %1382 = vmatpush1.bf16.msra.mxu0 0
        %1383 = vmatprep.subr.bf16.mxu0 0
        %1384 = vmatpush1.bf16.msra.mxu0 0
        %1385 = vmatprep.subr.bf16.mxu0 0
        %1386 = vmatpush1.bf16.msra.mxu0 0
        %1387 = vmatprep.subr.bf16.mxu0 0
        %1388 = vmatpush1.bf16.msra.mxu0 0
        %1389 = vmatprep.subr.bf16.mxu0 0
        %1390 = vmatpush1.bf16.msra.mxu0 0
        %1391 = vmatprep.subr.bf16.mxu0 0
        %1392 = vmatpush1.bf16.msra.mxu0 0
        %1393 = vmatprep.subr.bf16.mxu0 0
        %1394 = vmatpush1.bf16.msra.mxu0 0
        %1395 = vmatprep.mubr.bf16.mxu0 0
        %1396 = vmatmul.mubr.bf16.gmra.mrb[0].mxu0 %v1358
        %v1397 = vpop.f32.mrb[0].mxu0
        %v1398 = vadd.f32 0.0, %v1397
        %v1399 = vpop.f32.mrb[0].mxu0
        %v1400 = vpop.f32.mrb[0].mxu0
        %v1401 = vpop.f32.mrb[0].mxu0
        %1402 = vdwg.mxu0
        %1403 = vrot.lane.b32.xlu0 %v1185, 104
        %v1404 = vpop.permute.xlu0 %1403
        %v1406 = vsel %vm590, %v1404, 0
        %1408 = vmatprep.subr.bf16.mxu0 0
        %1409 = vmatpush1.bf16.xpose.msra.mxu0 %v1406
        %1410 = vmatprep.subr.bf16.mxu0 0
        %1411 = vmatpush1.bf16.xpose.msra.mxu0 0
        %1412 = vmatprep.subr.bf16.mxu0 0
        %1413 = vmatpush1.bf16.xpose.msra.mxu0 0
        %1414 = vmatprep.subr.bf16.mxu0 0
        %1415 = vmatpush1.bf16.xpose.msra.mxu0 0
        %1416 = vmatprep.subr.bf16.mxu0 0
        %1417 = vmatpush1.bf16.xpose.msra.mxu0 0
        %1418 = vmatprep.subr.bf16.mxu0 0
        %1419 = vmatpush1.bf16.xpose.msra.mxu0 0
        %1420 = vmatprep.subr.bf16.mxu0 0
        %1421 = vmatpush1.bf16.xpose.msra.mxu0 0
        %1422 = vmatprep.subr.bf16.mxu0 0
        %1423 = vmatpush1.bf16.xpose.msra.mxu0 0
        %1424 = vmatprep.subr.bf16.mxu0 0
        %1425 = vmatpush1.bf16.xpose.msra.mxu0 0
        %1426 = vmatprep.subr.bf16.mxu0 0
        %1427 = vmatpush1.bf16.xpose.msra.mxu0 0
        %1428 = vmatprep.subr.bf16.mxu0 0
        %1429 = vmatpush1.bf16.xpose.msra.mxu0 0
        %1430 = vmatprep.subr.bf16.mxu0 0
        %1431 = vmatpush1.bf16.xpose.msra.mxu0 0
        %1432 = vmatprep.subr.bf16.mxu0 0
        %1433 = vmatpush1.bf16.xpose.msra.mxu0 0
        %1434 = vmatprep.subr.bf16.mxu0 0
        %1435 = vmatpush1.bf16.xpose.msra.mxu0 0
        %1436 = vmatprep.subr.bf16.mxu0 0
        %1437 = vmatpush1.bf16.xpose.msra.mxu0 0
        %1438 = vmatprep.subr.bf16.mxu0 0
        %1439 = vmatpush1.bf16.xpose.msra.mxu0 0
        %1440 = vmatprep.mubr.bf16.mxu0 0
        %1441 = vmatmul.mubr.bf16.gmra.mrb[0].mxu0 %v942
        %v1442 = vpop.f32.mrb[0].mxu0
        %v1443 = vadd.f32 0.0, %v1442
        %v1444 = vpop.f32.mrb[0].mxu0
        %v1445 = vpop.f32.mrb[0].mxu0
        %v1446 = vpop.f32.mrb[0].mxu0
        %1447 = vdwg.mxu0
        %v1448 = vmul.f32 %v1443, 0.35355338
        %v1449 = vadd.f32 %v1448, %v1122
        %v1450 = vsel %vm590, %v1449, -inf
        %1451 = vmax.xlane.f32.xlu0 %v1450
        %v1452 = vpop.xlane.xlu0 %1451
        %v1453 = vsub.f32 %v1449, %v1452
        %v1454 = vmul.f32 %v1453, 1.442695
        %v1455 = vpow.pop %v1454
        %v1456 = vsel %vm590, %v1455, 0.0
        %1457 = vadd.xlane.f32.xlu0 %v1456
        %v1458 = vpop.xlane.xlu0 %1457
        %v1459 = vrcp.pop %v1458
        %v1460 = vmul.f32 %v1455, %v1459
        %v1461 = vpack.c.bf16 %v1460, %v1460
        %1462 = vrot.lane.b32.xlu0 %v1247, 104
        %v1463 = vpop.permute.xlu0 %1462
        %v1465 = vsel %vm590, %v1461, 0
        %v1468 = vsel %vm660, %v1463, 0
        %1470 = vmatprep.subr.bf16.mxu0 0
        %1471 = vmatpush1.bf16.msra.mxu0 %v1468
        %1472 = vmatprep.subr.bf16.mxu0 0
        %1473 = vmatpush1.bf16.msra.mxu0 0
        %1474 = vmatprep.subr.bf16.mxu0 0
        %1475 = vmatpush1.bf16.msra.mxu0 0
        %1476 = vmatprep.subr.bf16.mxu0 0
        %1477 = vmatpush1.bf16.msra.mxu0 0
        %1478 = vmatprep.subr.bf16.mxu0 0
        %1479 = vmatpush1.bf16.msra.mxu0 0
        %1480 = vmatprep.subr.bf16.mxu0 0
        %1481 = vmatpush1.bf16.msra.mxu0 0
        %1482 = vmatprep.subr.bf16.mxu0 0
        %1483 = vmatpush1.bf16.msra.mxu0 0
        %1484 = vmatprep.subr.bf16.mxu0 0
        %1485 = vmatpush1.bf16.msra.mxu0 0
        %1486 = vmatprep.subr.bf16.mxu0 0
        %1487 = vmatpush1.bf16.msra.mxu0 0
        %1488 = vmatprep.subr.bf16.mxu0 0
        %1489 = vmatpush1.bf16.msra.mxu0 0
        %1490 = vmatprep.subr.bf16.mxu0 0
        %1491 = vmatpush1.bf16.msra.mxu0 0
        %1492 = vmatprep.subr.bf16.mxu0 0
        %1493 = vmatpush1.bf16.msra.mxu0 0
        %1494 = vmatprep.subr.bf16.mxu0 0
        %1495 = vmatpush1.bf16.msra.mxu0 0
        %1496 = vmatprep.subr.bf16.mxu0 0
        %1497 = vmatpush1.bf16.msra.mxu0 0
        %1498 = vmatprep.subr.bf16.mxu0 0
        %1499 = vmatpush1.bf16.msra.mxu0 0
        %1500 = vmatprep.subr.bf16.mxu0 0
        %1501 = vmatpush1.bf16.msra.mxu0 0
        %1502 = vmatprep.mubr.bf16.mxu0 0
        %1503 = vmatmul.mubr.bf16.gmra.mrb[0].mxu0 %v1465
        %v1504 = vpop.f32.mrb[0].mxu0
        %v1505 = vadd.f32 0.0, %v1504
        %v1506 = vpop.f32.mrb[0].mxu0
        %v1507 = vpop.f32.mrb[0].mxu0
        %v1508 = vpop.f32.mrb[0].mxu0
        %1509 = vdwg.mxu0
        %1511 = vrot.lane.b32.xlu0 %v1291, 8
        %v1512 = vpop.permute.xlu0 %1511
        %1515 = vrot.lane.b32.xlu0 %v1398, 16
        %v1516 = vpop.permute.xlu0 %1515
        %1519 = vrot.lane.b32.xlu0 %v1505, 24
        %v1520 = vpop.permute.xlu0 %1519
        %v1522 = vsel %vm590, %v1178, %v1512
        %v1523 = vsel %vm1062, %v1522, %v1516
        %v1524 = vsel %vm1064, %v1523, %v1520
        %v1525 = vmul.f32 %v1065, 0.5
        %v1526 = vmul.f32 %v1524, 0.5
        %v1527 = vadd.f32 %v1525, %v1526
        %v1528 = vpack.c.bf16 %v1527, %v1527
        %v1529 = vld [vmem:[%s5] sm:$0xf]
        %v1530 = vld [vmem:[%s5 + $0x4] sm:$0xf]
        %v1531 = vld [vmem:[%s5 + $0x8] sm:$0xf]
        %v1532 = vld [vmem:[%s5 + $0xc] sm:$0xf]
        %v1533 = vld [vmem:[%s6] sm:$0x1]
        %v1535 = vlaneseq
        %v1536 = vshrl.u32 %v1535, 7
        %v1537 = vsub.s32 0, %v1536
        %v1538 = vrot.slane %v1533, %v1537
        %v1544 = vunpack.c.l.b16 %v1529
        %v1545 = vunpack.c.l.b16 %v1530
        %v1546 = vunpack.c.l.b16 %v1531
        %v1547 = vunpack.c.l.b16 %v1532
        %v1548 = vpack.c.b16 %v1545, %v1544
        %v1549 = vpack.c.b16 %v1547, %v1546
        %vm1552 = vcmask 261120
        %v1554 = vsel %vm1552, %v1528, 0
        %1556 = vmatprep.subr.bf16.mxu0 0
        %1557 = vmatpush1.bf16.msra.mxu0 %v1548
        %1558 = vmatprep.subr.bf16.mxu0 0
        %1559 = vmatpush1.bf16.msra.mxu0 %v1549
        %1560 = vmatprep.subr.bf16.mxu0 0
        %1561 = vmatpush1.bf16.msra.mxu0 0
        %1562 = vmatprep.subr.bf16.mxu0 0
        %1563 = vmatpush1.bf16.msra.mxu0 0
        %1564 = vmatprep.subr.bf16.mxu0 0
        %1565 = vmatpush1.bf16.msra.mxu0 0
        %1566 = vmatprep.subr.bf16.mxu0 0
        %1567 = vmatpush1.bf16.msra.mxu0 0
        %1568 = vmatprep.subr.bf16.mxu0 0
        %1569 = vmatpush1.bf16.msra.mxu0 0
        %1570 = vmatprep.subr.bf16.mxu0 0
        %1571 = vmatpush1.bf16.msra.mxu0 0
        %1572 = vmatprep.subr.bf16.mxu0 0
        %1573 = vmatpush1.bf16.msra.mxu0 0
        %1574 = vmatprep.subr.bf16.mxu0 0
        %1575 = vmatpush1.bf16.msra.mxu0 0
        %1576 = vmatprep.subr.bf16.mxu0 0
        %1577 = vmatpush1.bf16.msra.mxu0 0
        %1578 = vmatprep.subr.bf16.mxu0 0
        %1579 = vmatpush1.bf16.msra.mxu0 0
        %1580 = vmatprep.subr.bf16.mxu0 0
        %1581 = vmatpush1.bf16.msra.mxu0 0
        %1582 = vmatprep.subr.bf16.mxu0 0
        %1583 = vmatpush1.bf16.msra.mxu0 0
        %1584 = vmatprep.subr.bf16.mxu0 0
        %1585 = vmatpush1.bf16.msra.mxu0 0
        %1586 = vmatprep.subr.bf16.mxu0 0
        %1587 = vmatpush1.bf16.msra.mxu0 0
        %1588 = vmatprep.mubr.bf16.mxu0 0
        %1589 = vmatmul.mubr.bf16.gmra.mrb[0].mxu0 %v1554
        %v1590 = vpop.f32.mrb[0].mxu0
        %v1591 = vadd.f32 %v1538, %v1590
        %v1592 = vpop.f32.mrb[0].mxu0
        %v1593 = vpop.f32.mrb[0].mxu0
        %v1594 = vpop.f32.mrb[0].mxu0
        %1595 = vdwg.mxu0
        %v1596 = vld [vmem:[%s574] sm:$0xff]
        %v1597 = vadd.f32 %v1591, %v1596
        %v1598 = vsel %vm1552, %v1597, 0.0
        %1599 = vadd.xlane.f32.xlu0 %v1598
        %v1600 = vpop.xlane.xlu0 %1599
        %v1601 = vrcp.pop 32.0
        %v1602 = vmul.f32 %v1600, %v1601
        %v1603 = vsub.f32 %v1597, %v1602
        %v1604 = vmul.f32 %v1603, %v1603
        %v1605 = vsel %vm1552, %v1604, 0.0
        %1606 = vadd.xlane.f32.xlu0 %v1605
        %v1607 = vpop.xlane.xlu0 %1606
        %v1608 = vmul.f32 %v1607, %v1601
        %v1609 = vadd.f32 %v1608, 1e-05
        %v1610 = vrsqrt.pop %v1609
        %v1611 = vmul.f32 %v1603, %v1610
        %v1612 = vld [vmem:[%s7] sm:$0x1]
        %v1614 = vlaneseq
        %v1615 = vshrl.u32 %v1614, 7
        %v1616 = vsub.s32 0, %v1615
        %v1617 = vrot.slane %v1612, %v1616
        %v1619 = vmul.f32 %v1611, %v1617
        %v1620 = vld [vmem:[%s8] sm:$0x1]
        %v1622 = vlaneseq
        %v1623 = vshrl.u32 %v1622, 7
        %v1624 = vsub.s32 0, %v1623
        %v1625 = vrot.slane %v1620, %v1624
        %v1627 = vadd.f32 %v1619, %v1625
        %1628 = vst.msk [vmem:[%s582] sm:$0xff] %vm1552, %v1627
        %p1629 = scmp.lt.s32.totalorder %s25, 1
        %s1630 = scalar_select %p1629, %s25, 1
        %p1631 = scmp.lt.s32.totalorder %s24, 1
        %s1632 = scalar_select %p1631, %s24, 1
        %s1633 = smul.addr %s1630, 2
        %s1634 = sadd.s32 %s1632, %s1633
        %s1635 = smul.addr %s1634, 8
        %s1636 = scalar_lea.vmem %s9, %s1635
        // Predicated region
        $region173: #{_lambda_.4} parent=159 // pred_check
          %p1637 = pneg %p270
        $region174: #{_lambda_.4} parent=159 // pred_check_branch
          %1639 = sbr.rel (%p1637) target = $region176
        $region175: #{_lambda_.4} parent=159 // pred_region
          _
        $region176: #{_lambda_.4} parent=159 // pred_fallthru
          _
      $region160: #{_lambda_.4} parent=5 // pred_fallthru
        _
      %p1640 = scmp.le.s32.totalorder 2, %s15
      // Predicated region
      $region177: #{_lambda_.4} parent=5 // pred_check
        %p1641 = pneg %p1640
      $region178: #{_lambda_.4} parent=5 // pred_check_branch
        %1643 = sbr.rel (%p1641) target = $region180
      $region179: #{_lambda_.4} parent=5 // pred_region
        %s1644 = ssub.s32 %s15, 2
        // Predicated region
        $region181: #{_lambda_.4} parent=179 // pred_check
          %p1645 = pneg %p276
        $region182: #{_lambda_.4} parent=179 // pred_check_branch
          %1647 = sbr.rel (%p1645) target = $region184
        $region183: #{_lambda_.4} parent=179 // pred_region
          %p1648 = scmp.lt.s32.totalorder %s27, 1
          %s1649 = scalar_select %p1648, %s27, 1
          %p1650 = scmp.lt.s32.totalorder %s26, 1
          %s1651 = scalar_select %p1650, %s26, 1
          %s1652 = smul.addr %s1649, 2
          %s1653 = sadd.s32 %s1651, %s1652
          %s1654 = smul.addr %s1653, 8
          %s1655 = scalar_lea.vmem %s9, %s1654
        $region184: #{_lambda_.4} parent=179 // pred_fallthru
          _
      $region180: #{_lambda_.4} parent=5 // pred_fallthru
        _
    $region6: #{_lambda_.4} parent=1 // loop_footer
      %s19 = sadd.s32 1, %s15
    $region7: #{_lambda_.4} parent=1 // loop_footer_branch
      %14 = sbr.rel target = $region3
    $region8: #{_lambda_.4} parent=1 // loop_exit
      _

</llo_original>
